<compile_context>
chip_gen: v5e
topology: v5e:2x2
jax: 0.10.0
libtpu: 0.0.40
codegen_flags: <defaults>
</compile_context>

<pallas_src>
import functools

import jax
import jax.numpy as jnp
from jax import lax
from jax.experimental import pallas as pl
from jax.experimental.pallas import tpu as pltpu

LANE = 128
_COMPUTE_DTYPE = jnp.bfloat16


def _round_up(x, m):
    return (x + m - 1) // m * m


def _pick_row_block(H, W_out):
    """Largest divisor TH of H with >= 2 row-blocks, TH >= 4 (bounded halo
    overhead) and M = TH * W_out <= 4096; falls back to the whole height."""
    divs = [d for d in range(1, H + 1) if H % d == 0]

    def best(cands):
        ok = [d for d in cands if d * W_out <= 4096]
        return max(ok) if ok else min(cands)

    good = [d for d in divs if H // d >= 2 and d >= 4]
    if good:
        return best(good)
    return best(divs)


def _vmem_limit_bytes():
    # Generation-aware scoped-VMEM limit: 3/4 of physical, <= 100 MiB.
    try:
        cap = int(pltpu.get_tpu_info().vmem_capacity_bytes)
    except Exception:
        cap = 64 * 1024 * 1024          # conservative (v7x-sized) fallback
    return min(cap * 3 // 4, 100 * 1024 * 1024)


# ----------------------------------------------------------------------------
# Fused kernel: one (batch, row-block) tile per grid step.
# ----------------------------------------------------------------------------
def _basic_block_kernel(xc_ref, xt0_ref, xt1_ref, xb0_ref, xb1_ref,
                        w1_ref, s1_ref, b1_ref,
                        w2_ref, s2_ref, b2_ref,
                        out_ref,
                        xpad_ref, midp_ref, slab_ref,
                        *, TH, W, W_out, WP, DS, HB, Cp):
    """Refs:
      xc_ref           : (1, TH, W, Cp) bf16   centre rows (also the residual)
      xt0/xt1/xb0/xb1  : (1, 1,  W, Cp) bf16   1-row halos (2 above, 2 below)
      w1/w2_ref        : (3, 3*Cp, Cp)  bf16   dx-concatenated 3x3 taps
      s*/b*_ref        : (1, Cp)        f32    folded eval-mode BN scale/bias
      out_ref          : (1, TH, W, Cp) bf16
      xpad_ref         : (TH+4, WP, Cp) bf16   zero-padded input window
      midp_ref         : (TH+2, WP, Cp) bf16   zero-padded conv1 output
      slab_ref         : ((TH+4)*W_out, 3*Cp) bf16  shared dx-im2col slab
    """
    hb = pl.program_id(1)
    HM = TH + 2                     # conv1 output rows needed by conv2
    RP = TH + 4                     # zero-padded input rows
    M1 = HM * W_out
    M2 = TH * W_out
    c0 = DS - 1                     # first input column used by output col 0
    f32 = jnp.float32
    bf16 = _COMPUTE_DTYPE

    # -------------------- stage zero-padded input window --------------------
    xpad_ref[...] = jnp.zeros((RP, WP, Cp), bf16)
    xpad_ref[2:2 + TH, DS:DS + W, :] = xc_ref[0]          # aligned data start

    @pl.when(hb > 0)                                      # 2-row halo above
    def _():
        xpad_ref[0:1, DS:DS + W, :] = xt0_ref[0]
        xpad_ref[1:2, DS:DS + W, :] = xt1_ref[0]

    @pl.when(hb < HB - 1)                                 # 2-row halo below
    def _():
        xpad_ref[TH + 2:TH + 3, DS:DS + W, :] = xb0_ref[0]
        xpad_ref[TH + 3:TH + 4, DS:DS + W, :] = xb1_ref[0]

    # -------------------- conv1 + bn1 + relu  (3 dots, K = 3*Cp) ------------
    for dx in range(3):                                   # dx-im2col (3 copies)
        src = xpad_ref[:, c0 + dx:c0 + dx + W_out, :]     # (RP, W_out, Cp)
        slab_ref[:, dx * Cp:(dx + 1) * Cp] = src.reshape(RP * W_out, Cp)

    acc1 = None
    for dy in range(3):                                   # aligned flat slices
        lhs = slab_ref[dy * W_out:dy * W_out + M1, :]     # (M1, 3*Cp)
        p = jnp.dot(lhs, w1_ref[dy], preferred_element_type=f32)
        acc1 = p if acc1 is None else acc1 + p
    mid = jnp.maximum(acc1 * s1_ref[0] + b1_ref[0], 0.0).astype(bf16)

    # stage zero-padded conv1 output for conv2 (junk cols >= W dropped here)
    midp_ref[...] = jnp.zeros((HM, WP, Cp), bf16)
    midp_ref[:, DS:DS + W, :] = mid.reshape(HM, W_out, Cp)[:, :W, :]

    @pl.when(hb == 0)                                     # conv2 zero-pad rows
    def _():
        midp_ref[0:1, DS:DS + W, :] = jnp.zeros((1, W, Cp), bf16)

    @pl.when(hb == HB - 1)
    def _():
        midp_ref[HM - 1:HM, DS:DS + W, :] = jnp.zeros((1, W, Cp), bf16)

    # -------------------- conv2 + bn2 + residual + relu ----------------------
    for dx in range(3):
        src = midp_ref[:, c0 + dx:c0 + dx + W_out, :]     # (HM, W_out, Cp)
        slab_ref[0:M1, dx * Cp:(dx + 1) * Cp] = src.reshape(M1, Cp)

    acc2 = None
    for dy in range(3):
        lhs = slab_ref[dy * W_out:dy * W_out + M2, :]     # (M2, 3*Cp)
        p = jnp.dot(lhs, w2_ref[dy], preferred_element_type=f32)
        acc2 = p if acc2 is None else acc2 + p

    y = (acc2 * s2_ref[0] + b2_ref[0]).reshape(TH, W_out, Cp)[:, :W, :]
    identity = xc_ref[0].astype(f32)                      # (TH, W, Cp)
    out_ref[0] = jnp.maximum(y + identity, 0.0).astype(out_ref.dtype)


# ----------------------------------------------------------------------------
# Wrapper
# ----------------------------------------------------------------------------
def _fold_bn(gamma, beta, mean, var, eps=1e-5):
    scale = gamma / jnp.sqrt(var + eps)
    return scale, beta - mean * scale


def _pad_last(a, cp):
    pad = cp - a.shape[-1]
    if pad:
        a = jnp.pad(a, [(0, 0)] * (a.ndim - 1) + [(0, pad)])
    return a


@jax.jit
def basic_block_forward(x_nchw, params):
    """Pallas BasicBlock.forward (stride=1, downsample=None, inplanes==planes)."""
    N, C, H, W = x_nchw.shape
    Cin, planes = params["w1"].shape[2], params["w1"].shape[3]
    assert C == Cin and planes == Cin, (
        "TODO(synk): stride>1 / downsample branch not implemented")

    Cp = _round_up(planes, LANE)       # lane-dense channel dim (multiple of 128)
    W_out = _round_up(W, 16)           # bf16 sublane-tile aligned output cols
    TH = _pick_row_block(H, W_out)
    HB = H // TH
    DS = 16                            # aligned data-column start in scratch
    WP = DS + W_out + 2                # scratch cols (covers taps to W_out+16)

    # Boundary layout pass: NCHW -> NHWC, cast to bf16, pad channels to Cp.
    x = jnp.transpose(x_nchw, (0, 2, 3, 1)).astype(_COMPUTE_DTYPE)
    x = _pad_last(x, Cp)

    def prep_w(w):                     # HWIO -> (3, 3*Cp, Cp) bf16 (dx-major K)
        w = _pad_last(w, Cp)
        w = jnp.pad(w, ((0, 0), (0, 0), (0, Cp - w.shape[2]), (0, 0)))
        return w.reshape(3, 3 * Cp, Cp).astype(_COMPUTE_DTYPE)

    def prep_bn(bn):                   # folded eval-mode BN, f32, padded
        s, b = _fold_bn(*bn)
        return (_pad_last(s, Cp).reshape(1, Cp).astype(jnp.float32),
                _pad_last(b, Cp).reshape(1, Cp).astype(jnp.float32))

    w1, w2 = prep_w(params["w1"]), prep_w(params["w2"])
    s1, b1 = prep_bn(params["bn1"])
    s2, b2 = prep_bn(params["bn2"])

    # 1-row halo streams (2 above, 2 below), clamped at the image border; the
    # clamped rows are simply never written into the zero-filled scratch.
    top0 = lambda n, h: (n, jnp.maximum(h * TH - 2, 0), 0, 0)
    top1 = lambda n, h: (n, jnp.maximum(h * TH - 1, 0), 0, 0)
    bot0 = lambda n, h: (n, jnp.minimum(h * TH + TH, H - 1), 0, 0)
    bot1 = lambda n, h: (n, jnp.minimum(h * TH + TH + 1, H - 1), 0, 0)

    kernel = functools.partial(_basic_block_kernel, TH=TH, W=W, W_out=W_out,
                               WP=WP, DS=DS, HB=HB, Cp=Cp)

    cost = pl.CostEstimate(
        flops=int(36 * N * H * W_out * Cp * Cp),          # 2 convs x 9 taps x MAC
        transcendentals=0,
        bytes_accessed=int(2 * N * H * W * Cp * 2 + 2 * 9 * Cp * Cp * 2))

    out = pl.pallas_call(
        kernel,
        out_shape=jax.ShapeDtypeStruct((N, H, W, Cp), _COMPUTE_DTYPE),
        grid_spec=pltpu.PrefetchScalarGridSpec(
            num_scalar_prefetch=0,
            grid=(N, HB),
            in_specs=[
                pl.BlockSpec((1, TH, W, Cp), lambda n, h: (n, h, 0, 0)),  # centre
                pl.BlockSpec((1, 1, W, Cp), top0),                        # halo -2
                pl.BlockSpec((1, 1, W, Cp), top1),                        # halo -1
                pl.BlockSpec((1, 1, W, Cp), bot0),                        # halo +0
                pl.BlockSpec((1, 1, W, Cp), bot1),                        # halo +1
                pl.BlockSpec((3, 3 * Cp, Cp), lambda n, h: (0, 0, 0)),    # w1
                pl.BlockSpec((1, Cp), lambda n, h: (0, 0)),               # bn1 scale
                pl.BlockSpec((1, Cp), lambda n, h: (0, 0)),               # bn1 bias
                pl.BlockSpec((3, 3 * Cp, Cp), lambda n, h: (0, 0, 0)),    # w2
                pl.BlockSpec((1, Cp), lambda n, h: (0, 0)),               # bn2 scale
                pl.BlockSpec((1, Cp), lambda n, h: (0, 0)),               # bn2 bias
            ],
            out_specs=pl.BlockSpec((1, TH, W, Cp), lambda n, h: (n, h, 0, 0)),
            scratch_shapes=[
                pltpu.VMEM((TH + 4, WP, Cp), _COMPUTE_DTYPE),             # xpad
                pltpu.VMEM((TH + 2, WP, Cp), _COMPUTE_DTYPE),             # mid pad
                pltpu.VMEM(((TH + 4) * W_out, 3 * Cp), _COMPUTE_DTYPE),   # im2col
            ]),
        compiler_params=pltpu.CompilerParams(
            dimension_semantics=("parallel", "parallel"),
            vmem_limit_bytes=_vmem_limit_bytes()),
        cost_estimate=cost,
    )(x, x, x, x, x, w1, s1, b1, w2, s2, b2)

    out = out[..., :planes].astype(x_nchw.dtype)          # drop channel padding
    return jnp.transpose(out, (0, 3, 1, 2))               # NHWC -> NCHW


# ----------------------------------------------------------------------------
# Pure-JAX f32 reference (for correctness check)
# ----------------------------------------------------------------------------
def _ref_forward(x_nchw, params):
    x = jnp.transpose(x_nchw, (0, 2, 3, 1))

    def conv(z, w):
        return lax.conv_general_dilated(
            z, w, window_strides=(1, 1), padding="SAME",
            dimension_numbers=("NHWC", "HWIO", "NHWC"))

    def bn(z, p, eps=1e-5):
        g, b, m, v = p
        return (z - m) / jnp.sqrt(v + eps) * g + b

    out = jax.nn.relu(bn(conv(x, params["w1"]), params["bn1"]))
    out = bn(conv(out, params["w2"]), params["bn2"]) + x
    out = jax.nn.relu(out)
    return jnp.transpose(out, (0, 3, 1, 2))


# ----------------------------------------------------------------------------
if __name__ == "__main__":
    key = jax.random.PRNGKey(0)
    N, C_in, H, W = 2, 4, 16, 16
    planes = C_in   # residual path requires inplanes == planes (no downsample)

    k = jax.random.split(key, 8)
    params = {
        "w1": 0.1 * jax.random.normal(k[0], (3, 3, C_in, planes), jnp.float32),
        "w2": 0.1 * jax.random.normal(k[1], (3, 3, planes, planes), jnp.float32),
        # BN params: (gamma, beta, running_mean, running_var)
        "bn1": (1.0 + 0.1 * jax.random.normal(k[2], (planes,), jnp.float32),
                0.1 * jax.random.normal(k[3], (planes,), jnp.float32),
                0.05 * jax.random.normal(k[4], (planes,), jnp.float32),
                jnp.abs(1.0 + 0.1 * jax.random.normal(k[5], (planes,), jnp.float32))),
        "bn2": (jnp.ones((planes,), jnp.float32),
                jnp.zeros((planes,), jnp.float32),
                jnp.zeros((planes,), jnp.float32),
                jnp.ones((planes,), jnp.float32)),
    }

    x = jax.random.normal(k[6], (N, C_in, H, W), jnp.float32)

    out = jax.block_until_ready(basic_block_forward(x, params))
    ref = jax.block_until_ready(_ref_forward(x, params))

    assert out.shape == (N, planes, H, W)
    # bf16 matmul operands / bf16 intermediate (f32 accumulation) -> loose tol
    assert jnp.allclose(out, ref, atol=5e-2, rtol=5e-2), "mismatch vs reference"

    print("KERNEL_OK")
</pallas_src>

<mosaic_0001>
module attributes {stable_mosaic.version = 11 : i64} {
  func.func @_basic_block_kernel(%arg0: i32, %arg1: i32, %arg2: memref<1x8x16x128xbf16, #tpu.memory_space<vmem>>, %arg3: memref<1x1x16x128xbf16, #tpu.memory_space<vmem>>, %arg4: memref<1x1x16x128xbf16, #tpu.memory_space<vmem>>, %arg5: memref<1x1x16x128xbf16, #tpu.memory_space<vmem>>, %arg6: memref<1x1x16x128xbf16, #tpu.memory_space<vmem>>, %arg7: memref<3x384x128xbf16, #tpu.memory_space<vmem>>, %arg8: memref<1x128xf32, #tpu.memory_space<vmem>>, %arg9: memref<1x128xf32, #tpu.memory_space<vmem>>, %arg10: memref<3x384x128xbf16, #tpu.memory_space<vmem>>, %arg11: memref<1x128xf32, #tpu.memory_space<vmem>>, %arg12: memref<1x128xf32, #tpu.memory_space<vmem>>, %arg13: memref<1x8x16x128xbf16, #tpu.memory_space<vmem>>, %arg14: memref<12x34x128xbf16, #tpu.memory_space<vmem>>, %arg15: memref<10x34x128xbf16, #tpu.memory_space<vmem>>, %arg16: memref<192x384xbf16, #tpu.memory_space<vmem>>) attributes {dimension_semantics = [#tpu.dimension_semantics<parallel>, #tpu.dimension_semantics<parallel>], iteration_bounds = array<i64: 2, 2>, scalar_prefetch = 0 : i64, scratch_operands = 3 : i64, tpu.core_type = #tpu.core_type<tc>, window_params = [{transform_indices = @transform_0, window_bounds = array<i64: 1, 8, 16, 128>}, {transform_indices = @transform_1, window_bounds = array<i64: 1, 1, 16, 128>}, {transform_indices = @transform_2, window_bounds = array<i64: 1, 1, 16, 128>}, {transform_indices = @transform_3, window_bounds = array<i64: 1, 1, 16, 128>}, {transform_indices = @transform_4, window_bounds = array<i64: 1, 1, 16, 128>}, {pipeline_mode = #tpu.pipeline_mode<synchronous>, transform_indices = @transform_5, window_bounds = array<i64: 3, 384, 128>}, {pipeline_mode = #tpu.pipeline_mode<synchronous>, transform_indices = @transform_6, window_bounds = array<i64: 1, 128>}, {pipeline_mode = #tpu.pipeline_mode<synchronous>, transform_indices = @transform_7, window_bounds = array<i64: 1, 128>}, {pipeline_mode = #tpu.pipeline_mode<synchronous>, transform_indices = @transform_8, window_bounds = array<i64: 3, 384, 128>}, {pipeline_mode = #tpu.pipeline_mode<synchronous>, transform_indices = @transform_9, window_bounds = array<i64: 1, 128>}, {pipeline_mode = #tpu.pipeline_mode<synchronous>, transform_indices = @transform_10, window_bounds = array<i64: 1, 128>}, {transform_indices = @transform_11, window_bounds = array<i64: 1, 8, 16, 128>}]} {
    %cst = arith.constant 0.000000e+00 : bf16
    %0 = vector.broadcast %cst : bf16 to vector<12x34x128xbf16>
    %c0 = arith.constant 0 : index
    %c0_0 = arith.constant 0 : index
    %c0_1 = arith.constant 0 : index
    %1 = vector.load %arg14[%c0, %c0_0, %c0_1] : memref<12x34x128xbf16, #tpu.memory_space<vmem>>, vector<12x34x128xbf16>
    tpu.vector_store %arg14[%c0, %c0_0, %c0_1], %0 {strides = array<i32>} : memref<12x34x128xbf16, #tpu.memory_space<vmem>>, vector<12x34x128xbf16>,
    %c0_2 = arith.constant 0 : index
    %c0_3 = arith.constant 0 : index
    %c0_4 = arith.constant 0 : index
    %c0_5 = arith.constant 0 : index
    %2 = vector.load %arg2[%c0_2, %c0_3, %c0_4, %c0_5] : memref<1x8x16x128xbf16, #tpu.memory_space<vmem>>, vector<1x8x16x128xbf16>
    %3 = vector.shape_cast %2 : vector<1x8x16x128xbf16> to vector<8x16x128xbf16>
    %c2 = arith.constant 2 : index
    %c16 = arith.constant 16 : index
    %c0_6 = arith.constant 0 : index
    %4 = vector.load %arg14[%c2, %c16, %c0_6] : memref<12x34x128xbf16, #tpu.memory_space<vmem>>, vector<8x16x128xbf16>
    tpu.vector_store %arg14[%c2, %c16, %c0_6], %3 {strides = array<i32>} : memref<12x34x128xbf16, #tpu.memory_space<vmem>>, vector<8x16x128xbf16>,
    %c0_i32 = arith.constant 0 : i32
    %5 = arith.cmpi sgt, %arg1, %c0_i32 : i32
    %6 = arith.extui %5 : i1 to i32
    %c0_i32_7 = arith.constant 0 : i32
    %7 = arith.cmpi ne, %6, %c0_i32_7 : i32
    scf.if %7 {
      %c0_98 = arith.constant 0 : index
      %c0_99 = arith.constant 0 : index
      %c0_100 = arith.constant 0 : index
      %c0_101 = arith.constant 0 : index
      %101 = vector.load %arg3[%c0_98, %c0_99, %c0_100, %c0_101] : memref<1x1x16x128xbf16, #tpu.memory_space<vmem>>, vector<1x1x16x128xbf16>
      %102 = vector.shape_cast %101 : vector<1x1x16x128xbf16> to vector<1x16x128xbf16>
      %c0_102 = arith.constant 0 : index
      %c16_103 = arith.constant 16 : index
      %c0_104 = arith.constant 0 : index
      %103 = vector.load %arg14[%c0_102, %c16_103, %c0_104] : memref<12x34x128xbf16, #tpu.memory_space<vmem>>, vector<1x16x128xbf16>
      tpu.vector_store %arg14[%c0_102, %c16_103, %c0_104], %102 {strides = array<i32>} : memref<12x34x128xbf16, #tpu.memory_space<vmem>>, vector<1x16x128xbf16>,
      %c0_105 = arith.constant 0 : index
      %c0_106 = arith.constant 0 : index
      %c0_107 = arith.constant 0 : index
      %c0_108 = arith.constant 0 : index
      %104 = vector.load %arg4[%c0_105, %c0_106, %c0_107, %c0_108] : memref<1x1x16x128xbf16, #tpu.memory_space<vmem>>, vector<1x1x16x128xbf16>
      %105 = vector.shape_cast %104 : vector<1x1x16x128xbf16> to vector<1x16x128xbf16>
      %c1_109 = arith.constant 1 : index
      %c16_110 = arith.constant 16 : index
      %c0_111 = arith.constant 0 : index
      %106 = vector.load %arg14[%c1_109, %c16_110, %c0_111] : memref<12x34x128xbf16, #tpu.memory_space<vmem>>, vector<1x16x128xbf16>
      tpu.vector_store %arg14[%c1_109, %c16_110, %c0_111], %105 {strides = array<i32>} : memref<12x34x128xbf16, #tpu.memory_space<vmem>>, vector<1x16x128xbf16>,
    } else {
    }
    %c1_i32 = arith.constant 1 : i32
    %8 = arith.cmpi slt, %arg1, %c1_i32 : i32
    %9 = arith.extui %8 : i1 to i32
    %c0_i32_8 = arith.constant 0 : i32
    %10 = arith.cmpi ne, %9, %c0_i32_8 : i32
    scf.if %10 {
      %c0_98 = arith.constant 0 : index
      %c0_99 = arith.constant 0 : index
      %c0_100 = arith.constant 0 : index
      %c0_101 = arith.constant 0 : index
      %101 = vector.load %arg5[%c0_98, %c0_99, %c0_100, %c0_101] : memref<1x1x16x128xbf16, #tpu.memory_space<vmem>>, vector<1x1x16x128xbf16>
      %102 = vector.shape_cast %101 : vector<1x1x16x128xbf16> to vector<1x16x128xbf16>
      %c10 = arith.constant 10 : index
      %c16_102 = arith.constant 16 : index
      %c0_103 = arith.constant 0 : index
      %103 = vector.load %arg14[%c10, %c16_102, %c0_103] : memref<12x34x128xbf16, #tpu.memory_space<vmem>>, vector<1x16x128xbf16>
      tpu.vector_store %arg14[%c10, %c16_102, %c0_103], %102 {strides = array<i32>} : memref<12x34x128xbf16, #tpu.memory_space<vmem>>, vector<1x16x128xbf16>,
      %c0_104 = arith.constant 0 : index
      %c0_105 = arith.constant 0 : index
      %c0_106 = arith.constant 0 : index
      %c0_107 = arith.constant 0 : index
      %104 = vector.load %arg6[%c0_104, %c0_105, %c0_106, %c0_107] : memref<1x1x16x128xbf16, #tpu.memory_space<vmem>>, vector<1x1x16x128xbf16>
      %105 = vector.shape_cast %104 : vector<1x1x16x128xbf16> to vector<1x16x128xbf16>
      %c11 = arith.constant 11 : index
      %c16_108 = arith.constant 16 : index
      %c0_109 = arith.constant 0 : index
      %106 = vector.load %arg14[%c11, %c16_108, %c0_109] : memref<12x34x128xbf16, #tpu.memory_space<vmem>>, vector<1x16x128xbf16>
      tpu.vector_store %arg14[%c11, %c16_108, %c0_109], %105 {strides = array<i32>} : memref<12x34x128xbf16, #tpu.memory_space<vmem>>, vector<1x16x128xbf16>,
    } else {
    }
    %c0_9 = arith.constant 0 : index
    %c15 = arith.constant 15 : index
    %c0_10 = arith.constant 0 : index
    %11 = vector.load %arg14[%c0_9, %c15, %c0_10] : memref<12x34x128xbf16, #tpu.memory_space<vmem>>, vector<12x16x128xbf16>
    %12 = vector.shape_cast %11 : vector<12x16x128xbf16> to vector<192x128xbf16>
    %c0_11 = arith.constant 0 : index
    %c0_12 = arith.constant 0 : index
    %13 = vector.load %arg16[%c0_11, %c0_12] : memref<192x384xbf16, #tpu.memory_space<vmem>>, vector<192x128xbf16>
    tpu.vector_store %arg16[%c0_11, %c0_12], %12 {strides = array<i32>} : memref<192x384xbf16, #tpu.memory_space<vmem>>, vector<192x128xbf16>,
    %c0_13 = arith.constant 0 : index
    %c16_14 = arith.constant 16 : index
    %c0_15 = arith.constant 0 : index
    %14 = vector.load %arg14[%c0_13, %c16_14, %c0_15] : memref<12x34x128xbf16, #tpu.memory_space<vmem>>, vector<12x16x128xbf16>
    %15 = vector.shape_cast %14 : vector<12x16x128xbf16> to vector<192x128xbf16>
    %c0_16 = arith.constant 0 : index
    %c128 = arith.constant 128 : index
    %16 = vector.load %arg16[%c0_16, %c128] : memref<192x384xbf16, #tpu.memory_space<vmem>>, vector<192x128xbf16>
    tpu.vector_store %arg16[%c0_16, %c128], %15 {strides = array<i32>} : memref<192x384xbf16, #tpu.memory_space<vmem>>, vector<192x128xbf16>,
    %c0_17 = arith.constant 0 : index
    %c17 = arith.constant 17 : index
    %c0_18 = arith.constant 0 : index
    %17 = vector.load %arg14[%c0_17, %c17, %c0_18] : memref<12x34x128xbf16, #tpu.memory_space<vmem>>, vector<12x16x128xbf16>
    %18 = vector.shape_cast %17 : vector<12x16x128xbf16> to vector<192x128xbf16>
    %c0_19 = arith.constant 0 : index
    %c256 = arith.constant 256 : index
    %19 = vector.load %arg16[%c0_19, %c256] : memref<192x384xbf16, #tpu.memory_space<vmem>>, vector<192x128xbf16>
    tpu.vector_store %arg16[%c0_19, %c256], %18 {strides = array<i32>} : memref<192x384xbf16, #tpu.memory_space<vmem>>, vector<192x128xbf16>,
    %c0_20 = arith.constant 0 : index
    %c0_21 = arith.constant 0 : index
    %20 = vector.load %arg16[%c0_20, %c0_21] : memref<192x384xbf16, #tpu.memory_space<vmem>>, vector<160x384xbf16>
    %c0_22 = arith.constant 0 : index
    %c0_23 = arith.constant 0 : index
    %c0_24 = arith.constant 0 : index
    %21 = vector.load %arg7[%c0_22, %c0_23, %c0_24] : memref<3x384x128xbf16, #tpu.memory_space<vmem>>, vector<1x384x128xbf16>
    %22 = vector.shape_cast %21 : vector<1x384x128xbf16> to vector<384x128xbf16>
    %cst_25 = arith.constant dense<0.000000e+00> : vector<160x128xf32>
    %23 = tpu.matmul %20, %22, %cst_25 {dimension_numbers = #tpu.dot_dimension_numbers<[1], [0], [0], [1], [0, 0, 1, 1], [], []>} : vector<160x384xbf16>, vector<384x128xbf16>, vector<160x128xf32> -> vector<160x128xf32>
    %c16_26 = arith.constant 16 : index
    %c0_27 = arith.constant 0 : index
    %24 = vector.load %arg16[%c16_26, %c0_27] : memref<192x384xbf16, #tpu.memory_space<vmem>>, vector<160x384xbf16>
    %c1 = arith.constant 1 : index
    %c0_28 = arith.constant 0 : index
    %c0_29 = arith.constant 0 : index
    %25 = vector.load %arg7[%c1, %c0_28, %c0_29] : memref<3x384x128xbf16, #tpu.memory_space<vmem>>, vector<1x384x128xbf16>
    %26 = vector.shape_cast %25 : vector<1x384x128xbf16> to vector<384x128xbf16>
    %cst_30 = arith.constant dense<0.000000e+00> : vector<160x128xf32>
    %27 = tpu.matmul %24, %26, %cst_30 {dimension_numbers = #tpu.dot_dimension_numbers<[1], [0], [0], [1], [0, 0, 1, 1], [], []>} : vector<160x384xbf16>, vector<384x128xbf16>, vector<160x128xf32> -> vector<160x128xf32>
    %28 = arith.addf %23, %27 : vector<160x128xf32>
    %c32 = arith.constant 32 : index
    %c0_31 = arith.constant 0 : index
    %29 = vector.load %arg16[%c32, %c0_31] : memref<192x384xbf16, #tpu.memory_space<vmem>>, vector<160x384xbf16>
    %c2_32 = arith.constant 2 : index
    %c0_33 = arith.constant 0 : index
    %c0_34 = arith.constant 0 : index
    %30 = vector.load %arg7[%c2_32, %c0_33, %c0_34] : memref<3x384x128xbf16, #tpu.memory_space<vmem>>, vector<1x384x128xbf16>
    %31 = vector.shape_cast %30 : vector<1x384x128xbf16> to vector<384x128xbf16>
    %cst_35 = arith.constant dense<0.000000e+00> : vector<160x128xf32>
    %32 = tpu.matmul %29, %31, %cst_35 {dimension_numbers = #tpu.dot_dimension_numbers<[1], [0], [0], [1], [0, 0, 1, 1], [], []>} : vector<160x384xbf16>, vector<384x128xbf16>, vector<160x128xf32> -> vector<160x128xf32>
    %33 = arith.addf %28, %32 : vector<160x128xf32>
    %c0_36 = arith.constant 0 : index
    %c0_37 = arith.constant 0 : index
    %34 = vector.load %arg8[%c0_36, %c0_37] : memref<1x128xf32, #tpu.memory_space<vmem>>, vector<1x128xf32>
    %35 = vector.shape_cast %34 : vector<1x128xf32> to vector<128xf32>
    %36 = vector.shape_cast %35 : vector<128xf32> to vector<1x128xf32>
    %37 = vector.broadcast %36 : vector<1x128xf32> to vector<160x128xf32>
    %38 = arith.mulf %33, %37 : vector<160x128xf32>
    %c0_38 = arith.constant 0 : index
    %c0_39 = arith.constant 0 : index
    %39 = vector.load %arg9[%c0_38, %c0_39] : memref<1x128xf32, #tpu.memory_space<vmem>>, vector<1x128xf32>
    %40 = vector.shape_cast %39 : vector<1x128xf32> to vector<128xf32>
    %41 = vector.shape_cast %40 : vector<128xf32> to vector<1x128xf32>
    %42 = vector.broadcast %41 : vector<1x128xf32> to vector<160x128xf32>
    %43 = arith.addf %38, %42 : vector<160x128xf32>
    %cst_40 = arith.constant 0.000000e+00 : f32
    %44 = vector.broadcast %cst_40 : f32 to vector<160x128xf32>
    %45 = arith.maximumf %43, %44 : vector<160x128xf32>
    %46 = arith.truncf %45 : vector<160x128xf32> to vector<160x128xbf16>
    %cst_41 = arith.constant 0.000000e+00 : bf16
    %47 = vector.broadcast %cst_41 : bf16 to vector<10x34x128xbf16>
    %c0_42 = arith.constant 0 : index
    %c0_43 = arith.constant 0 : index
    %c0_44 = arith.constant 0 : index
    %48 = vector.load %arg15[%c0_42, %c0_43, %c0_44] : memref<10x34x128xbf16, #tpu.memory_space<vmem>>, vector<10x34x128xbf16>
    tpu.vector_store %arg15[%c0_42, %c0_43, %c0_44], %47 {strides = array<i32>} : memref<10x34x128xbf16, #tpu.memory_space<vmem>>, vector<10x34x128xbf16>,
    %49 = vector.shape_cast %46 : vector<160x128xbf16> to vector<10x16x128xbf16>
    %c0_45 = arith.constant 0 : index
    %c16_46 = arith.constant 16 : index
    %c0_47 = arith.constant 0 : index
    %50 = vector.load %arg15[%c0_45, %c16_46, %c0_47] : memref<10x34x128xbf16, #tpu.memory_space<vmem>>, vector<10x16x128xbf16>
    tpu.vector_store %arg15[%c0_45, %c16_46, %c0_47], %49 {strides = array<i32>} : memref<10x34x128xbf16, #tpu.memory_space<vmem>>, vector<10x16x128xbf16>,
    %c0_i32_48 = arith.constant 0 : i32
    %51 = arith.cmpi eq, %arg1, %c0_i32_48 : i32
    %52 = arith.extui %51 : i1 to i32
    %c0_i32_49 = arith.constant 0 : i32
    %53 = arith.cmpi ne, %52, %c0_i32_49 : i32
    scf.if %53 {
      %cst_98 = arith.constant 0.000000e+00 : bf16
      %101 = vector.broadcast %cst_98 : bf16 to vector<1x16x128xbf16>
      %c0_99 = arith.constant 0 : index
      %c16_100 = arith.constant 16 : index
      %c0_101 = arith.constant 0 : index
      %102 = vector.load %arg15[%c0_99, %c16_100, %c0_101] : memref<10x34x128xbf16, #tpu.memory_space<vmem>>, vector<1x16x128xbf16>
      tpu.vector_store %arg15[%c0_99, %c16_100, %c0_101], %101 {strides = array<i32>} : memref<10x34x128xbf16, #tpu.memory_space<vmem>>, vector<1x16x128xbf16>,
    } else {
    }
    %c1_i32_50 = arith.constant 1 : i32
    %54 = arith.cmpi eq, %arg1, %c1_i32_50 : i32
    %55 = arith.extui %54 : i1 to i32
    %c0_i32_51 = arith.constant 0 : i32
    %56 = arith.cmpi ne, %55, %c0_i32_51 : i32
    scf.if %56 {
      %cst_98 = arith.constant 0.000000e+00 : bf16
      %101 = vector.broadcast %cst_98 : bf16 to vector<1x16x128xbf16>
      %c9 = arith.constant 9 : index
      %c16_99 = arith.constant 16 : index
      %c0_100 = arith.constant 0 : index
      %102 = vector.load %arg15[%c9, %c16_99, %c0_100] : memref<10x34x128xbf16, #tpu.memory_space<vmem>>, vector<1x16x128xbf16>
      tpu.vector_store %arg15[%c9, %c16_99, %c0_100], %101 {strides = array<i32>} : memref<10x34x128xbf16, #tpu.memory_space<vmem>>, vector<1x16x128xbf16>,
    } else {
    }
    %c0_52 = arith.constant 0 : index
    %c15_53 = arith.constant 15 : index
    %c0_54 = arith.constant 0 : index
    %57 = vector.load %arg15[%c0_52, %c15_53, %c0_54] : memref<10x34x128xbf16, #tpu.memory_space<vmem>>, vector<10x16x128xbf16>
    %58 = vector.shape_cast %57 : vector<10x16x128xbf16> to vector<160x128xbf16>
    %c0_55 = arith.constant 0 : index
    %c0_56 = arith.constant 0 : index
    %59 = vector.load %arg16[%c0_55, %c0_56] : memref<192x384xbf16, #tpu.memory_space<vmem>>, vector<160x128xbf16>
    tpu.vector_store %arg16[%c0_55, %c0_56], %58 {strides = array<i32>} : memref<192x384xbf16, #tpu.memory_space<vmem>>, vector<160x128xbf16>,
    %c0_57 = arith.constant 0 : index
    %c16_58 = arith.constant 16 : index
    %c0_59 = arith.constant 0 : index
    %60 = vector.load %arg15[%c0_57, %c16_58, %c0_59] : memref<10x34x128xbf16, #tpu.memory_space<vmem>>, vector<10x16x128xbf16>
    %61 = vector.shape_cast %60 : vector<10x16x128xbf16> to vector<160x128xbf16>
    %c0_60 = arith.constant 0 : index
    %c128_61 = arith.constant 128 : index
    %62 = vector.load %arg16[%c0_60, %c128_61] : memref<192x384xbf16, #tpu.memory_space<vmem>>, vector<160x128xbf16>
    tpu.vector_store %arg16[%c0_60, %c128_61], %61 {strides = array<i32>} : memref<192x384xbf16, #tpu.memory_space<vmem>>, vector<160x128xbf16>,
    %c0_62 = arith.constant 0 : index
    %c17_63 = arith.constant 17 : index
    %c0_64 = arith.constant 0 : index
    %63 = vector.load %arg15[%c0_62, %c17_63, %c0_64] : memref<10x34x128xbf16, #tpu.memory_space<vmem>>, vector<10x16x128xbf16>
    %64 = vector.shape_cast %63 : vector<10x16x128xbf16> to vector<160x128xbf16>
    %c0_65 = arith.constant 0 : index
    %c256_66 = arith.constant 256 : index
    %65 = vector.load %arg16[%c0_65, %c256_66] : memref<192x384xbf16, #tpu.memory_space<vmem>>, vector<160x128xbf16>
    tpu.vector_store %arg16[%c0_65, %c256_66], %64 {strides = array<i32>} : memref<192x384xbf16, #tpu.memory_space<vmem>>, vector<160x128xbf16>,
    %c0_67 = arith.constant 0 : index
    %c0_68 = arith.constant 0 : index
    %66 = vector.load %arg16[%c0_67, %c0_68] : memref<192x384xbf16, #tpu.memory_space<vmem>>, vector<128x384xbf16>
    %c0_69 = arith.constant 0 : index
    %c0_70 = arith.constant 0 : index
    %c0_71 = arith.constant 0 : index
    %67 = vector.load %arg10[%c0_69, %c0_70, %c0_71] : memref<3x384x128xbf16, #tpu.memory_space<vmem>>, vector<1x384x128xbf16>
    %68 = vector.shape_cast %67 : vector<1x384x128xbf16> to vector<384x128xbf16>
    %cst_72 = arith.constant dense<0.000000e+00> : vector<128x128xf32>
    %69 = tpu.matmul %66, %68, %cst_72 {dimension_numbers = #tpu.dot_dimension_numbers<[1], [0], [0], [1], [0, 0, 1, 1], [], []>} : vector<128x384xbf16>, vector<384x128xbf16>, vector<128x128xf32> -> vector<128x128xf32>
    %c16_73 = arith.constant 16 : index
    %c0_74 = arith.constant 0 : index
    %70 = vector.load %arg16[%c16_73, %c0_74] : memref<192x384xbf16, #tpu.memory_space<vmem>>, vector<128x384xbf16>
    %c1_75 = arith.constant 1 : index
    %c0_76 = arith.constant 0 : index
    %c0_77 = arith.constant 0 : index
    %71 = vector.load %arg10[%c1_75, %c0_76, %c0_77] : memref<3x384x128xbf16, #tpu.memory_space<vmem>>, vector<1x384x128xbf16>
    %72 = vector.shape_cast %71 : vector<1x384x128xbf16> to vector<384x128xbf16>
    %cst_78 = arith.constant dense<0.000000e+00> : vector<128x128xf32>
    %73 = tpu.matmul %70, %72, %cst_78 {dimension_numbers = #tpu.dot_dimension_numbers<[1], [0], [0], [1], [0, 0, 1, 1], [], []>} : vector<128x384xbf16>, vector<384x128xbf16>, vector<128x128xf32> -> vector<128x128xf32>
    %74 = arith.addf %69, %73 : vector<128x128xf32>
    %c32_79 = arith.constant 32 : index
    %c0_80 = arith.constant 0 : index
    %75 = vector.load %arg16[%c32_79, %c0_80] : memref<192x384xbf16, #tpu.memory_space<vmem>>, vector<128x384xbf16>
    %c2_81 = arith.constant 2 : index
    %c0_82 = arith.constant 0 : index
    %c0_83 = arith.constant 0 : index
    %76 = vector.load %arg10[%c2_81, %c0_82, %c0_83] : memref<3x384x128xbf16, #tpu.memory_space<vmem>>, vector<1x384x128xbf16>
    %77 = vector.shape_cast %76 : vector<1x384x128xbf16> to vector<384x128xbf16>
    %cst_84 = arith.constant dense<0.000000e+00> : vector<128x128xf32>
    %78 = tpu.matmul %75, %77, %cst_84 {dimension_numbers = #tpu.dot_dimension_numbers<[1], [0], [0], [1], [0, 0, 1, 1], [], []>} : vector<128x384xbf16>, vector<384x128xbf16>, vector<128x128xf32> -> vector<128x128xf32>
    %79 = arith.addf %74, %78 : vector<128x128xf32>
    %c0_85 = arith.constant 0 : index
    %c0_86 = arith.constant 0 : index
    %80 = vector.load %arg11[%c0_85, %c0_86] : memref<1x128xf32, #tpu.memory_space<vmem>>, vector<1x128xf32>
    %81 = vector.shape_cast %80 : vector<1x128xf32> to vector<128xf32>
    %82 = vector.shape_cast %81 : vector<128xf32> to vector<1x128xf32>
    %83 = vector.broadcast %82 : vector<1x128xf32> to vector<128x128xf32>
    %84 = arith.mulf %79, %83 : vector<128x128xf32>
    %c0_87 = arith.constant 0 : index
    %c0_88 = arith.constant 0 : index
    %85 = vector.load %arg12[%c0_87, %c0_88] : memref<1x128xf32, #tpu.memory_space<vmem>>, vector<1x128xf32>
    %86 = vector.shape_cast %85 : vector<1x128xf32> to vector<128xf32>
    %87 = vector.shape_cast %86 : vector<128xf32> to vector<1x128xf32>
    %88 = vector.broadcast %87 : vector<1x128xf32> to vector<128x128xf32>
    %89 = arith.addf %84, %88 : vector<128x128xf32>
    %90 = vector.shape_cast %89 : vector<128x128xf32> to vector<8x16x128xf32>
    %c0_89 = arith.constant 0 : index
    %c0_90 = arith.constant 0 : index
    %c0_91 = arith.constant 0 : index
    %c0_92 = arith.constant 0 : index
    %91 = vector.load %arg2[%c0_89, %c0_90, %c0_91, %c0_92] : memref<1x8x16x128xbf16, #tpu.memory_space<vmem>>, vector<1x8x16x128xbf16>
    %92 = vector.shape_cast %91 : vector<1x8x16x128xbf16> to vector<8x16x128xbf16>
    %93 = arith.extf %92 : vector<8x16x128xbf16> to vector<8x16x128xf32>
    %94 = arith.addf %90, %93 : vector<8x16x128xf32>
    %cst_93 = arith.constant 0.000000e+00 : f32
    %95 = vector.broadcast %cst_93 : f32 to vector<8x16x128xf32>
    %96 = arith.maximumf %94, %95 : vector<8x16x128xf32>
    %97 = arith.truncf %96 : vector<8x16x128xf32> to vector<8x16x128xbf16>
    %c0_94 = arith.constant 0 : index
    %c0_95 = arith.constant 0 : index
    %c0_96 = arith.constant 0 : index
    %c0_97 = arith.constant 0 : index
    %98 = vector.load %arg13[%c0_94, %c0_95, %c0_96, %c0_97] : memref<1x8x16x128xbf16, #tpu.memory_space<vmem>>, vector<1x8x16x128xbf16>
    %99 = vector.shape_cast %98 : vector<1x8x16x128xbf16> to vector<8x16x128xbf16>
    %100 = vector.shape_cast %97 : vector<8x16x128xbf16> to vector<1x8x16x128xbf16>
    tpu.vector_store %arg13[%c0_94, %c0_95, %c0_96, %c0_97], %100 {strides = array<i32>} : memref<1x8x16x128xbf16, #tpu.memory_space<vmem>>, vector<1x8x16x128xbf16>,
    return
  }
  func.func @transform_0(%arg0: i32, %arg1: i32) -> (i32, i32, i32, i32) {
    %c0_i32 = arith.constant 0 : i32
    %c0_i32_0 = arith.constant 0 : i32
    %c0_i32_1 = arith.constant 0 : i32
    return %arg0, %arg1, %c0_i32, %c0_i32_0 : i32, i32, i32, i32
  }
  func.func @transform_1(%arg0: i32, %arg1: i32) -> (i32, i32, i32, i32) {
    %c8_i32 = arith.constant 8 : i32
    %0 = arith.muli %arg1, %c8_i32 : i32
    %c2_i32 = arith.constant 2 : i32
    %1 = arith.subi %0, %c2_i32 : i32
    %c0_i32 = arith.constant 0 : i32
    %2 = arith.maxsi %1, %c0_i32 : i32
    %c0_i32_0 = arith.constant 0 : i32
    %c0_i32_1 = arith.constant 0 : i32
    %c0_i32_2 = arith.constant 0 : i32
    return %arg0, %2, %c0_i32_0, %c0_i32_1 : i32, i32, i32, i32
  }
  func.func @transform_2(%arg0: i32, %arg1: i32) -> (i32, i32, i32, i32) {
    %c8_i32 = arith.constant 8 : i32
    %0 = arith.muli %arg1, %c8_i32 : i32
    %c1_i32 = arith.constant 1 : i32
    %1 = arith.subi %0, %c1_i32 : i32
    %c0_i32 = arith.constant 0 : i32
    %2 = arith.maxsi %1, %c0_i32 : i32
    %c0_i32_0 = arith.constant 0 : i32
    %c0_i32_1 = arith.constant 0 : i32
    %c0_i32_2 = arith.constant 0 : i32
    return %arg0, %2, %c0_i32_0, %c0_i32_1 : i32, i32, i32, i32
  }
  func.func @transform_3(%arg0: i32, %arg1: i32) -> (i32, i32, i32, i32) {
    %c8_i32 = arith.constant 8 : i32
    %0 = arith.muli %arg1, %c8_i32 : i32
    %c8_i32_0 = arith.constant 8 : i32
    %1 = arith.addi %0, %c8_i32_0 : i32
    %c15_i32 = arith.constant 15 : i32
    %2 = arith.minsi %1, %c15_i32 : i32
    %c0_i32 = arith.constant 0 : i32
    %c0_i32_1 = arith.constant 0 : i32
    %c0_i32_2 = arith.constant 0 : i32
    return %arg0, %2, %c0_i32, %c0_i32_1 : i32, i32, i32, i32
  }
  func.func @transform_4(%arg0: i32, %arg1: i32) -> (i32, i32, i32, i32) {
    %c8_i32 = arith.constant 8 : i32
    %0 = arith.muli %arg1, %c8_i32 : i32
    %c8_i32_0 = arith.constant 8 : i32
    %1 = arith.addi %0, %c8_i32_0 : i32
    %c1_i32 = arith.constant 1 : i32
    %2 = arith.addi %1, %c1_i32 : i32
    %c15_i32 = arith.constant 15 : i32
    %3 = arith.minsi %2, %c15_i32 : i32
    %c0_i32 = arith.constant 0 : i32
    %c0_i32_1 = arith.constant 0 : i32
    %c0_i32_2 = arith.constant 0 : i32
    return %arg0, %3, %c0_i32, %c0_i32_1 : i32, i32, i32, i32
  }
  func.func @transform_5(%arg0: i32, %arg1: i32) -> (i32, i32, i32) {
    %c0_i32 = arith.constant 0 : i32
    %c0_i32_0 = arith.constant 0 : i32
    %c0_i32_1 = arith.constant 0 : i32
    %c0_i32_2 = arith.constant 0 : i32
    return %c0_i32, %c0_i32_0, %c0_i32_1 : i32, i32, i32
  }
  func.func @transform_6(%arg0: i32, %arg1: i32) -> (i32, i32) {
    %c0_i32 = arith.constant 0 : i32
    %c0_i32_0 = arith.constant 0 : i32
    %c0_i32_1 = arith.constant 0 : i32
    return %c0_i32, %c0_i32_0 : i32, i32
  }
  func.func @transform_7(%arg0: i32, %arg1: i32) -> (i32, i32) {
    %c0_i32 = arith.constant 0 : i32
    %c0_i32_0 = arith.constant 0 : i32
    %c0_i32_1 = arith.constant 0 : i32
    return %c0_i32, %c0_i32_0 : i32, i32
  }
  func.func @transform_8(%arg0: i32, %arg1: i32) -> (i32, i32, i32) {
    %c0_i32 = arith.constant 0 : i32
    %c0_i32_0 = arith.constant 0 : i32
    %c0_i32_1 = arith.constant 0 : i32
    %c0_i32_2 = arith.constant 0 : i32
    return %c0_i32, %c0_i32_0, %c0_i32_1 : i32, i32, i32
  }
  func.func @transform_9(%arg0: i32, %arg1: i32) -> (i32, i32) {
    %c0_i32 = arith.constant 0 : i32
    %c0_i32_0 = arith.constant 0 : i32
    %c0_i32_1 = arith.constant 0 : i32
    return %c0_i32, %c0_i32_0 : i32, i32
  }
  func.func @transform_10(%arg0: i32, %arg1: i32) -> (i32, i32) {
    %c0_i32 = arith.constant 0 : i32
    %c0_i32_0 = arith.constant 0 : i32
    %c0_i32_1 = arith.constant 0 : i32
    return %c0_i32, %c0_i32_0 : i32, i32
  }
  func.func @transform_11(%arg0: i32, %arg1: i32) -> (i32, i32, i32, i32) {
    %c0_i32 = arith.constant 0 : i32
    %c0_i32_0 = arith.constant 0 : i32
    %c0_i32_1 = arith.constant 0 : i32
    return %arg0, %arg1, %c0_i32, %c0_i32_0 : i32, i32, i32, i32
  }
}

</mosaic_0001>

<llo_original>
// kernel: basic_block_forward.1
$region0: #{basic_block_forward.1}
  #allocation0 [shape = 'u32[]', space=smem, size = 0x4, offset = 0x4, fixed_abs, tag = 'smem constant byte address 0x4 - core index']
  #allocation1 [shape = 'u32[72,128]{1,0:T(1,128)}', space=vmem, size = 0x9000, scoped, tag = 'internal scratch']
  #allocation2 [shape = 'bf16[12,34,128]{2,1,0:T(8,128)(2,1)}', space=vmem, size = 0x1e000, scoped, tag = 'scratch operand']
  #allocation3 [shape = 'bf16[10,34,128]{2,1,0:T(8,128)(2,1)}', space=vmem, size = 0x19000, scoped, tag = 'scratch operand']
  #allocation4 [shape = 'bf16[192,384]{1,0:T(8,128)(2,1)}', space=vmem, size = 0x24000, scoped, tag = 'scratch operand']
  %s0 = inlined_call_operand.vmem [shape: bf16[2,16,16,128], index: 0, kind: input, shape index: {}, may-alias: {0,1,2,3,4}]
  %s1 = inlined_call_operand.vmem [shape: bf16[2,16,16,128], index: 1, kind: input, shape index: {}, may-alias: {0,1,2,3,4}]
  %s2 = inlined_call_operand.vmem [shape: bf16[2,16,16,128], index: 2, kind: input, shape index: {}, may-alias: {0,1,2,3,4}]
  %s3 = inlined_call_operand.vmem [shape: bf16[2,16,16,128], index: 3, kind: input, shape index: {}, may-alias: {0,1,2,3,4}]
  %s4 = inlined_call_operand.vmem [shape: bf16[2,16,16,128], index: 4, kind: input, shape index: {}, may-alias: {0,1,2,3,4}]
  %s5 = inlined_call_operand.vmem [shape: bf16[3,384,128], index: 5, kind: input, shape index: {}]
  %s6 = inlined_call_operand.vmem [shape: f32[1,128], index: 6, kind: input, shape index: {}]
  %s7 = inlined_call_operand.vmem [shape: f32[1,128], index: 7, kind: input, shape index: {}]
  %s8 = inlined_call_operand.vmem [shape: bf16[3,384,128], index: 8, kind: input, shape index: {}]
  %s9 = inlined_call_operand.vmem [shape: f32[1,128], index: 9, kind: input, shape index: {}]
  %s10 = inlined_call_operand.vmem [shape: f32[1,128], index: 10, kind: input, shape index: {}]
  %s11 = inlined_call_operand.vmem [shape: bf16[2,16,16,128], index: 11, kind: output, shape index: {}]
  %s12 = sld [smem:[#allocation0]]
  $region93: #{basic_block_forward.1} parent=0
    _
  %s14 = ssub.s32 1, %s12
  %s15 = scalar_select 0, %s14, %s12
  loop: start=0, step=1, limit=6
  $region2: #{basic_block_forward.1} parent=0 // loop_pre_header
    _
  $region3: #{basic_block_forward.1} parent=0 // loop_header
    %s17 = sphi 0, %s21
    %p18 = scmp.ge.s32.totalorder %s17, 6
    %s24 = sphi 0, %s36
    %s25 = sphi 0, %s32
    %s26 = sphi 0, %s24
    %s27 = sphi 0, %s25
    %s28 = sphi 0, %s26
    %s29 = sphi 0, %s27
    %s41 = sphi 0, %s43
    %s44 = sphi 0, %s41
    %s45 = sphi 0, %s44
    %s61 = sphi 0, %s45
    %s77 = sphi 0, %s79
    %s80 = sphi 0, %s77
    %s81 = sphi 0, %s80
    %s97 = sphi 0, %s81
    %s113 = sphi 0, %s115
    %s116 = sphi 0, %s113
    %s117 = sphi 0, %s116
    %s133 = sphi 0, %s117
    %s149 = sphi 0, %s151
    %s152 = sphi 0, %s149
    %s153 = sphi 0, %s152
    %s169 = sphi 0, %s153
    %s185 = sphi 0, %s187
    %s188 = sphi 0, %s185
    %s189 = sphi 0, %s188
    %s205 = sphi 0, %s189
    %s209 = sphi 0, %s209
    %s211 = sphi 0, %s209
    %s212 = sphi 0, %s211
    %s226 = sphi 0, %s212
    %s230 = sphi 0, %s230
    %s232 = sphi 0, %s230
    %s233 = sphi 0, %s232
    %s247 = sphi 0, %s233
    %s251 = sphi 0, %s251
    %s253 = sphi 0, %s251
    %s254 = sphi 0, %s253
    %s268 = sphi 0, %s254
    %s272 = sphi 0, %s272
    %s274 = sphi 0, %s272
    %s275 = sphi 0, %s274
    %s289 = sphi 0, %s275
    %s293 = sphi 0, %s293
    %s295 = sphi 0, %s293
    %s296 = sphi 0, %s295
    %s310 = sphi 0, %s296
    %s314 = sphi 0, %s314
    %s316 = sphi 0, %s314
    %s317 = sphi 0, %s316
    %s331 = sphi 0, %s317
    %s339 = sphi 0, %s341
    %s342 = sphi 0, %s339
    %s343 = sphi 0, %s342
    %s359 = sphi 0, %s343
  $region4: #{basic_block_forward.1} parent=0 // loop_header_branch
    %20 = sbr.rel (%p18) target = $region8
  $region5: #{basic_block_forward.1} parent=0 // loop_body
    %s22 = ssub.s32 %s17, 1
    %s23 = ssub.s32 %s17, 2
    %s30 = sadd.s32 1, %s25
    %p31 = scmp.ge.s32.totalorder %s30, 2
    %s32 = scalar_select %p31, 0, %s30
    %s33 = sadd.s32 1, %s24
    %s34 = scalar_select %p31, %s33, %s24
    %p35 = scmp.ge.s32.totalorder %s34, 2
    %s36 = scalar_select %p35, 0, %s34
    %s37 = ssub.s32 %s24, %s36
    %s38 = ssub.s32 %s25, %s32
    %s39 = sor.u32 %s37, %s38
    %p40 = scmp.eq.s32.totalorder %s39, 0
    %s42 = sadd.s32 %s41, 1
    %s43 = scalar_select %p40, %s41, %s42
    %p46 = pneg %p40
    %p47 = scmp.eq.s32.totalorder %s17, 3
    %p48 = por %p46, %p47
    %p49 = scmp.ne.s32.totalorder %s41, %s44
    %p50 = scmp.eq.s32.totalorder %s17, 0
    %p51 = por %p49, %p50
    %p52 = scmp.ne.s32.totalorder %s41, %s44
    %p53 = scmp.eq.s32.totalorder %s22, 3
    %p54 = por %p52, %p53
    %p55 = scmp.ne.s32.totalorder %s44, %s45
    %p56 = scmp.eq.s32.totalorder %s22, 0
    %p57 = por %p55, %p56
    %p58 = scmp.ne.s32.totalorder %s44, %s45
    %p59 = scmp.eq.s32.totalorder %s23, 3
    %p60 = por %p58, %p59
    %p62 = scmp.ne.s32.totalorder %s45, %s61
    %p63 = scmp.eq.s32.totalorder %s23, 0
    %p64 = por %p62, %p63
    %s65 = smul.u32 %s25, 8
    %s66 = ssub.s32 %s65, 2
    %p67 = scmp.gt.s32.totalorder %s66, 0
    %s68 = scalar_select %p67, %s66, 0
    %s69 = smul.u32 %s32, 8
    %s70 = ssub.s32 %s69, 2
    %p71 = scmp.gt.s32.totalorder %s70, 0
    %s72 = scalar_select %p71, %s70, 0
    %s73 = ssub.s32 %s24, %s36
    %s74 = ssub.s32 %s68, %s72
    %s75 = sor.u32 %s73, %s74
    %p76 = scmp.eq.s32.totalorder %s75, 0
    %s78 = sadd.s32 %s77, 1
    %s79 = scalar_select %p76, %s77, %s78
    %p82 = pneg %p76
    %p83 = scmp.eq.s32.totalorder %s17, 3
    %p84 = por %p82, %p83
    %p85 = scmp.ne.s32.totalorder %s77, %s80
    %p86 = scmp.eq.s32.totalorder %s17, 0
    %p87 = por %p85, %p86
    %p88 = scmp.ne.s32.totalorder %s77, %s80
    %p89 = scmp.eq.s32.totalorder %s22, 3
    %p90 = por %p88, %p89
    %p91 = scmp.ne.s32.totalorder %s80, %s81
    %p92 = scmp.eq.s32.totalorder %s22, 0
    %p93 = por %p91, %p92
    %p94 = scmp.ne.s32.totalorder %s80, %s81
    %p95 = scmp.eq.s32.totalorder %s23, 3
    %p96 = por %p94, %p95
    %p98 = scmp.ne.s32.totalorder %s81, %s97
    %p99 = scmp.eq.s32.totalorder %s23, 0
    %p100 = por %p98, %p99
    %s101 = smul.u32 %s25, 8
    %s102 = ssub.s32 %s101, 1
    %p103 = scmp.gt.s32.totalorder %s102, 0
    %s104 = scalar_select %p103, %s102, 0
    %s105 = smul.u32 %s32, 8
    %s106 = ssub.s32 %s105, 1
    %p107 = scmp.gt.s32.totalorder %s106, 0
    %s108 = scalar_select %p107, %s106, 0
    %s109 = ssub.s32 %s24, %s36
    %s110 = ssub.s32 %s104, %s108
    %s111 = sor.u32 %s109, %s110
    %p112 = scmp.eq.s32.totalorder %s111, 0
    %s114 = sadd.s32 %s113, 1
    %s115 = scalar_select %p112, %s113, %s114
    %p118 = pneg %p112
    %p119 = scmp.eq.s32.totalorder %s17, 3
    %p120 = por %p118, %p119
    %p121 = scmp.ne.s32.totalorder %s113, %s116
    %p122 = scmp.eq.s32.totalorder %s17, 0
    %p123 = por %p121, %p122
    %p124 = scmp.ne.s32.totalorder %s113, %s116
    %p125 = scmp.eq.s32.totalorder %s22, 3
    %p126 = por %p124, %p125
    %p127 = scmp.ne.s32.totalorder %s116, %s117
    %p128 = scmp.eq.s32.totalorder %s22, 0
    %p129 = por %p127, %p128
    %p130 = scmp.ne.s32.totalorder %s116, %s117
    %p131 = scmp.eq.s32.totalorder %s23, 3
    %p132 = por %p130, %p131
    %p134 = scmp.ne.s32.totalorder %s117, %s133
    %p135 = scmp.eq.s32.totalorder %s23, 0
    %p136 = por %p134, %p135
    %s137 = smul.u32 %s25, 8
    %s138 = sadd.s32 %s137, 8
    %p139 = scmp.lt.s32.totalorder %s138, 15
    %s140 = scalar_select %p139, %s138, 15
    %s141 = smul.u32 %s32, 8
    %s142 = sadd.s32 %s141, 8
    %p143 = scmp.lt.s32.totalorder %s142, 15
    %s144 = scalar_select %p143, %s142, 15
    %s145 = ssub.s32 %s24, %s36
    %s146 = ssub.s32 %s140, %s144
    %s147 = sor.u32 %s145, %s146
    %p148 = scmp.eq.s32.totalorder %s147, 0
    %s150 = sadd.s32 %s149, 1
    %s151 = scalar_select %p148, %s149, %s150
    %p154 = pneg %p148
    %p155 = scmp.eq.s32.totalorder %s17, 3
    %p156 = por %p154, %p155
    %p157 = scmp.ne.s32.totalorder %s149, %s152
    %p158 = scmp.eq.s32.totalorder %s17, 0
    %p159 = por %p157, %p158
    %p160 = scmp.ne.s32.totalorder %s149, %s152
    %p161 = scmp.eq.s32.totalorder %s22, 3
    %p162 = por %p160, %p161
    %p163 = scmp.ne.s32.totalorder %s152, %s153
    %p164 = scmp.eq.s32.totalorder %s22, 0
    %p165 = por %p163, %p164
    %p166 = scmp.ne.s32.totalorder %s152, %s153
    %p167 = scmp.eq.s32.totalorder %s23, 3
    %p168 = por %p166, %p167
    %p170 = scmp.ne.s32.totalorder %s153, %s169
    %p171 = scmp.eq.s32.totalorder %s23, 0
    %p172 = por %p170, %p171
    %s173 = smul.u32 %s25, 8
    %s174 = sadd.s32 %s173, 9
    %p175 = scmp.lt.s32.totalorder %s174, 15
    %s176 = scalar_select %p175, %s174, 15
    %s177 = smul.u32 %s32, 8
    %s178 = sadd.s32 %s177, 9
    %p179 = scmp.lt.s32.totalorder %s178, 15
    %s180 = scalar_select %p179, %s178, 15
    %s181 = ssub.s32 %s24, %s36
    %s182 = ssub.s32 %s176, %s180
    %s183 = sor.u32 %s181, %s182
    %p184 = scmp.eq.s32.totalorder %s183, 0
    %s186 = sadd.s32 %s185, 1
    %s187 = scalar_select %p184, %s185, %s186
    %p190 = pneg %p184
    %p191 = scmp.eq.s32.totalorder %s17, 3
    %p192 = por %p190, %p191
    %p193 = scmp.ne.s32.totalorder %s185, %s188
    %p194 = scmp.eq.s32.totalorder %s17, 0
    %p195 = por %p193, %p194
    %p196 = scmp.ne.s32.totalorder %s185, %s188
    %p197 = scmp.eq.s32.totalorder %s22, 3
    %p198 = por %p196, %p197
    %p199 = scmp.ne.s32.totalorder %s188, %s189
    %p200 = scmp.eq.s32.totalorder %s22, 0
    %p201 = por %p199, %p200
    %p202 = scmp.ne.s32.totalorder %s188, %s189
    %p203 = scmp.eq.s32.totalorder %s23, 3
    %p204 = por %p202, %p203
    %p206 = scmp.ne.s32.totalorder %s189, %s205
    %p207 = scmp.eq.s32.totalorder %s23, 0
    %p208 = por %p206, %p207
    %s210 = sadd.s32 %s209, 1
    %p213 = scmp.eq.s32.totalorder %s17, 3
    %p214 = scmp.ne.s32.totalorder %s209, %s211
    %p215 = scmp.eq.s32.totalorder %s17, 0
    %p216 = por %p214, %p215
    %p217 = scmp.ne.s32.totalorder %s209, %s211
    %p218 = scmp.eq.s32.totalorder %s22, 3
    %p219 = por %p217, %p218
    %p220 = scmp.ne.s32.totalorder %s211, %s212
    %p221 = scmp.eq.s32.totalorder %s22, 0
    %p222 = por %p220, %p221
    %p223 = scmp.ne.s32.totalorder %s211, %s212
    %p224 = scmp.eq.s32.totalorder %s23, 3
    %p225 = por %p223, %p224
    %p227 = scmp.ne.s32.totalorder %s212, %s226
    %p228 = scmp.eq.s32.totalorder %s23, 0
    %p229 = por %p227, %p228
    %s231 = sadd.s32 %s230, 1
    %p234 = scmp.eq.s32.totalorder %s17, 3
    %p235 = scmp.ne.s32.totalorder %s230, %s232
    %p236 = scmp.eq.s32.totalorder %s17, 0
    %p237 = por %p235, %p236
    %p238 = scmp.ne.s32.totalorder %s230, %s232
    %p239 = scmp.eq.s32.totalorder %s22, 3
    %p240 = por %p238, %p239
    %p241 = scmp.ne.s32.totalorder %s232, %s233
    %p242 = scmp.eq.s32.totalorder %s22, 0
    %p243 = por %p241, %p242
    %p244 = scmp.ne.s32.totalorder %s232, %s233
    %p245 = scmp.eq.s32.totalorder %s23, 3
    %p246 = por %p244, %p245
    %p248 = scmp.ne.s32.totalorder %s233, %s247
    %p249 = scmp.eq.s32.totalorder %s23, 0
    %p250 = por %p248, %p249
    %s252 = sadd.s32 %s251, 1
    %p255 = scmp.eq.s32.totalorder %s17, 3
    %p256 = scmp.ne.s32.totalorder %s251, %s253
    %p257 = scmp.eq.s32.totalorder %s17, 0
    %p258 = por %p256, %p257
    %p259 = scmp.ne.s32.totalorder %s251, %s253
    %p260 = scmp.eq.s32.totalorder %s22, 3
    %p261 = por %p259, %p260
    %p262 = scmp.ne.s32.totalorder %s253, %s254
    %p263 = scmp.eq.s32.totalorder %s22, 0
    %p264 = por %p262, %p263
    %p265 = scmp.ne.s32.totalorder %s253, %s254
    %p266 = scmp.eq.s32.totalorder %s23, 3
    %p267 = por %p265, %p266
    %p269 = scmp.ne.s32.totalorder %s254, %s268
    %p270 = scmp.eq.s32.totalorder %s23, 0
    %p271 = por %p269, %p270
    %s273 = sadd.s32 %s272, 1
    %p276 = scmp.eq.s32.totalorder %s17, 3
    %p277 = scmp.ne.s32.totalorder %s272, %s274
    %p278 = scmp.eq.s32.totalorder %s17, 0
    %p279 = por %p277, %p278
    %p280 = scmp.ne.s32.totalorder %s272, %s274
    %p281 = scmp.eq.s32.totalorder %s22, 3
    %p282 = por %p280, %p281
    %p283 = scmp.ne.s32.totalorder %s274, %s275
    %p284 = scmp.eq.s32.totalorder %s22, 0
    %p285 = por %p283, %p284
    %p286 = scmp.ne.s32.totalorder %s274, %s275
    %p287 = scmp.eq.s32.totalorder %s23, 3
    %p288 = por %p286, %p287
    %p290 = scmp.ne.s32.totalorder %s275, %s289
    %p291 = scmp.eq.s32.totalorder %s23, 0
    %p292 = por %p290, %p291
    %s294 = sadd.s32 %s293, 1
    %p297 = scmp.eq.s32.totalorder %s17, 3
    %p298 = scmp.ne.s32.totalorder %s293, %s295
    %p299 = scmp.eq.s32.totalorder %s17, 0
    %p300 = por %p298, %p299
    %p301 = scmp.ne.s32.totalorder %s293, %s295
    %p302 = scmp.eq.s32.totalorder %s22, 3
    %p303 = por %p301, %p302
    %p304 = scmp.ne.s32.totalorder %s295, %s296
    %p305 = scmp.eq.s32.totalorder %s22, 0
    %p306 = por %p304, %p305
    %p307 = scmp.ne.s32.totalorder %s295, %s296
    %p308 = scmp.eq.s32.totalorder %s23, 3
    %p309 = por %p307, %p308
    %p311 = scmp.ne.s32.totalorder %s296, %s310
    %p312 = scmp.eq.s32.totalorder %s23, 0
    %p313 = por %p311, %p312
    %s315 = sadd.s32 %s314, 1
    %p318 = scmp.eq.s32.totalorder %s17, 3
    %p319 = scmp.ne.s32.totalorder %s314, %s316
    %p320 = scmp.eq.s32.totalorder %s17, 0
    %p321 = por %p319, %p320
    %p322 = scmp.ne.s32.totalorder %s314, %s316
    %p323 = scmp.eq.s32.totalorder %s22, 3
    %p324 = por %p322, %p323
    %p325 = scmp.ne.s32.totalorder %s316, %s317
    %p326 = scmp.eq.s32.totalorder %s22, 0
    %p327 = por %p325, %p326
    %p328 = scmp.ne.s32.totalorder %s316, %s317
    %p329 = scmp.eq.s32.totalorder %s23, 3
    %p330 = por %p328, %p329
    %p332 = scmp.ne.s32.totalorder %s317, %s331
    %p333 = scmp.eq.s32.totalorder %s23, 0
    %p334 = por %p332, %p333
    %s335 = ssub.s32 %s24, %s36
    %s336 = ssub.s32 %s25, %s32
    %s337 = sor.u32 %s335, %s336
    %p338 = scmp.eq.s32.totalorder %s337, 0
    %s340 = sadd.s32 %s339, 1
    %s341 = scalar_select %p338, %s339, %s340
    %p344 = pneg %p338
    %p345 = scmp.eq.s32.totalorder %s17, 3
    %p346 = por %p344, %p345
    %p347 = scmp.ne.s32.totalorder %s339, %s342
    %p348 = scmp.eq.s32.totalorder %s17, 0
    %p349 = por %p347, %p348
    %p350 = scmp.ne.s32.totalorder %s339, %s342
    %p351 = scmp.eq.s32.totalorder %s22, 3
    %p352 = por %p350, %p351
    %p353 = scmp.ne.s32.totalorder %s342, %s343
    %p354 = scmp.eq.s32.totalorder %s22, 0
    %p355 = por %p353, %p354
    %p356 = scmp.ne.s32.totalorder %s342, %s343
    %p357 = scmp.eq.s32.totalorder %s23, 3
    %p358 = por %p356, %p357
    %p360 = scmp.ne.s32.totalorder %s343, %s359
    %p361 = scmp.eq.s32.totalorder %s23, 0
    %p362 = por %p360, %p361
    %p363 = scmp.le.s32.totalorder 1, %s17
    %p364 = scmp.lt.s32.totalorder %s17, 5
    %p365 = pnand %p363, %p364
    %p366 = pneg %p365
    // Predicated region
    $region9: #{basic_block_forward.1} parent=5 // pred_check
      _
    $region10: #{basic_block_forward.1} parent=5 // pred_check_branch
      %368 = sbr.rel (%p365) target = $region12
    $region11: #{basic_block_forward.1} parent=5 // pred_region
      %s369 = ssub.s32 %s17, 1
      // Predicated region
      $region13: #{basic_block_forward.1} parent=11 // pred_check
        %p370 = pneg %p222
      $region14: #{basic_block_forward.1} parent=11 // pred_check_branch
        %372 = sbr.rel (%p370) target = $region16
      $region15: #{basic_block_forward.1} parent=11 // pred_region
        _
      $region16: #{basic_block_forward.1} parent=11 // pred_fallthru
        _
      // Predicated region
      $region17: #{basic_block_forward.1} parent=11 // pred_check
        %p373 = pneg %p243
      $region18: #{basic_block_forward.1} parent=11 // pred_check_branch
        %375 = sbr.rel (%p373) target = $region20
      $region19: #{basic_block_forward.1} parent=11 // pred_region
        _
      $region20: #{basic_block_forward.1} parent=11 // pred_fallthru
        _
      // Predicated region
      $region21: #{basic_block_forward.1} parent=11 // pred_check
        %p376 = pneg %p264
      $region22: #{basic_block_forward.1} parent=11 // pred_check_branch
        %378 = sbr.rel (%p376) target = $region24
      $region23: #{basic_block_forward.1} parent=11 // pred_region
        _
      $region24: #{basic_block_forward.1} parent=11 // pred_fallthru
        _
      // Predicated region
      $region25: #{basic_block_forward.1} parent=11 // pred_check
        %p379 = pneg %p285
      $region26: #{basic_block_forward.1} parent=11 // pred_check_branch
        %381 = sbr.rel (%p379) target = $region28
      $region27: #{basic_block_forward.1} parent=11 // pred_region
        _
      $region28: #{basic_block_forward.1} parent=11 // pred_fallthru
        _
      // Predicated region
      $region29: #{basic_block_forward.1} parent=11 // pred_check
        %p382 = pneg %p306
      $region30: #{basic_block_forward.1} parent=11 // pred_check_branch
        %384 = sbr.rel (%p382) target = $region32
      $region31: #{basic_block_forward.1} parent=11 // pred_region
        _
      $region32: #{basic_block_forward.1} parent=11 // pred_fallthru
        _
      // Predicated region
      $region33: #{basic_block_forward.1} parent=11 // pred_check
        %p385 = pneg %p327
      $region34: #{basic_block_forward.1} parent=11 // pred_check_branch
        %387 = sbr.rel (%p385) target = $region36
      $region35: #{basic_block_forward.1} parent=11 // pred_region
        _
      $region36: #{basic_block_forward.1} parent=11 // pred_fallthru
        _
    $region12: #{basic_block_forward.1} parent=5 // pred_fallthru
      _
    %p388 = scmp.lt.s32.totalorder %s17, 4
    // Predicated region
    $region37: #{basic_block_forward.1} parent=5 // pred_check
      %p389 = pneg %p388
    $region38: #{basic_block_forward.1} parent=5 // pred_check_branch
      %391 = sbr.rel (%p389) target = $region40
    $region39: #{basic_block_forward.1} parent=5 // pred_region
      // Predicated region
      $region41: #{basic_block_forward.1} parent=39 // pred_check
        %p392 = pneg %p51
      $region42: #{basic_block_forward.1} parent=39 // pred_check_branch
        %394 = sbr.rel (%p392) target = $region44
      $region43: #{basic_block_forward.1} parent=39 // pred_region
        %s395 = smul.u32 8, %s25
        %p396 = scmp.lt.s32.totalorder %s24, 1
        %s397 = scalar_select %p396, %s24, 1
        %p398 = scmp.lt.s32.totalorder %s395, 15
        %s399 = scalar_select %p398, %s395, 15
        %s400 = smul.addr %s399, 2
        %s401 = smul.addr %s397, 32
        %s402 = sadd.s32 %s400, %s401
        %s403 = smul.addr %s402, 4
        %s404 = scalar_lea.vmem %s0, %s403
        %s405 = smul.u32 8, %s25
      $region44: #{basic_block_forward.1} parent=39 // pred_fallthru
        _
      // Predicated region
      $region45: #{basic_block_forward.1} parent=39 // pred_check
        %p406 = pneg %p87
      $region46: #{basic_block_forward.1} parent=39 // pred_check_branch
        %408 = sbr.rel (%p406) target = $region48
      $region47: #{basic_block_forward.1} parent=39 // pred_region
        %s409 = smul.u32 %s25, 8
        %s410 = ssub.s32 %s409, 2
        %p411 = scmp.gt.s32.totalorder %s410, 0
        %s412 = scalar_select %p411, %s410, 0
        %p413 = scmp.lt.s32.totalorder %s24, 1
        %s414 = scalar_select %p413, %s24, 1
        %p415 = scmp.lt.s32.totalorder %s412, 15
        %s416 = scalar_select %p415, %s412, 15
        %s417 = smul.addr %s416, 2
        %s418 = smul.addr %s414, 32
        %s419 = sadd.s32 %s417, %s418
        %s420 = smul.addr %s419, 4
        %s421 = scalar_lea.vmem %s1, %s420
        %s422 = smul.u32 %s25, 8
        %s423 = ssub.s32 %s422, 2
        %p424 = scmp.gt.s32.totalorder %s423, 0
        %s425 = scalar_select %p424, %s423, 0
      $region48: #{basic_block_forward.1} parent=39 // pred_fallthru
        _
      // Predicated region
      $region49: #{basic_block_forward.1} parent=39 // pred_check
        %p426 = pneg %p123
      $region50: #{basic_block_forward.1} parent=39 // pred_check_branch
        %428 = sbr.rel (%p426) target = $region52
      $region51: #{basic_block_forward.1} parent=39 // pred_region
        %s429 = smul.u32 %s25, 8
        %s430 = ssub.s32 %s429, 1
        %p431 = scmp.gt.s32.totalorder %s430, 0
        %s432 = scalar_select %p431, %s430, 0
        %p433 = scmp.lt.s32.totalorder %s24, 1
        %s434 = scalar_select %p433, %s24, 1
        %p435 = scmp.lt.s32.totalorder %s432, 15
        %s436 = scalar_select %p435, %s432, 15
        %s437 = smul.addr %s436, 2
        %s438 = smul.addr %s434, 32
        %s439 = sadd.s32 %s437, %s438
        %s440 = smul.addr %s439, 4
        %s441 = scalar_lea.vmem %s2, %s440
        %s442 = smul.u32 %s25, 8
        %s443 = ssub.s32 %s442, 1
        %p444 = scmp.gt.s32.totalorder %s443, 0
        %s445 = scalar_select %p444, %s443, 0
      $region52: #{basic_block_forward.1} parent=39 // pred_fallthru
        _
      // Predicated region
      $region53: #{basic_block_forward.1} parent=39 // pred_check
        %p446 = pneg %p159
      $region54: #{basic_block_forward.1} parent=39 // pred_check_branch
        %448 = sbr.rel (%p446) target = $region56
      $region55: #{basic_block_forward.1} parent=39 // pred_region
        %s449 = smul.u32 %s25, 8
        %s450 = sadd.s32 %s449, 8
        %p451 = scmp.lt.s32.totalorder %s450, 15
        %s452 = scalar_select %p451, %s450, 15
        %p453 = scmp.lt.s32.totalorder %s24, 1
        %s454 = scalar_select %p453, %s24, 1
        %p455 = scmp.lt.s32.totalorder %s452, 15
        %s456 = scalar_select %p455, %s452, 15
        %s457 = smul.addr %s456, 2
        %s458 = smul.addr %s454, 32
        %s459 = sadd.s32 %s457, %s458
        %s460 = smul.addr %s459, 4
        %s461 = scalar_lea.vmem %s3, %s460
        %s462 = smul.u32 %s25, 8
        %s463 = sadd.s32 %s462, 8
        %p464 = scmp.lt.s32.totalorder %s463, 15
        %s465 = scalar_select %p464, %s463, 15
      $region56: #{basic_block_forward.1} parent=39 // pred_fallthru
        _
      // Predicated region
      $region57: #{basic_block_forward.1} parent=39 // pred_check
        %p466 = pneg %p195
      $region58: #{basic_block_forward.1} parent=39 // pred_check_branch
        %468 = sbr.rel (%p466) target = $region60
      $region59: #{basic_block_forward.1} parent=39 // pred_region
        %s469 = smul.u32 %s25, 8
        %s470 = sadd.s32 %s469, 9
        %p471 = scmp.lt.s32.totalorder %s470, 15
        %s472 = scalar_select %p471, %s470, 15
        %p473 = scmp.lt.s32.totalorder %s24, 1
        %s474 = scalar_select %p473, %s24, 1
        %p475 = scmp.lt.s32.totalorder %s472, 15
        %s476 = scalar_select %p475, %s472, 15
        %s477 = smul.addr %s476, 2
        %s478 = smul.addr %s474, 32
        %s479 = sadd.s32 %s477, %s478
        %s480 = smul.addr %s479, 4
        %s481 = scalar_lea.vmem %s4, %s480
        %s482 = smul.u32 %s25, 8
        %s483 = sadd.s32 %s482, 9
        %p484 = scmp.lt.s32.totalorder %s483, 15
        %s485 = scalar_select %p484, %s483, 15
      $region60: #{basic_block_forward.1} parent=39 // pred_fallthru
        _
    $region40: #{basic_block_forward.1} parent=5 // pred_fallthru
      _
    %p486 = scmp.le.s32.totalorder 1, %s17
    %p487 = scmp.lt.s32.totalorder %s17, 5
    %p488 = pnand %p486, %p487
    %p489 = pneg %p488
    // Predicated region
    $region61: #{basic_block_forward.1} parent=5 // pred_check
      _
    $region62: #{basic_block_forward.1} parent=5 // pred_check_branch
      %491 = sbr.rel (%p488) target = $region64
    $region63: #{basic_block_forward.1} parent=5 // pred_region
      %s492 = ssub.s32 %s17, 1
      %s493 = smul.u32 8, %s27
      %p494 = scmp.lt.s32.totalorder %s26, 1
      %s495 = scalar_select %p494, %s26, 1
      %p496 = scmp.lt.s32.totalorder %s493, 15
      %s497 = scalar_select %p496, %s493, 15
      %s498 = smul.addr %s497, 2
      %s499 = smul.addr %s495, 32
      %s500 = sadd.s32 %s498, %s499
      %s501 = smul.addr %s500, 4
      %s502 = scalar_lea.vmem %s0, %s501
      %p503 = pneg %p57
      %p504 = pneg %p54
      %s505 = smul.u32 %s27, 8
      %s506 = ssub.s32 %s505, 2
      %p507 = scmp.gt.s32.totalorder %s506, 0
      %s508 = scalar_select %p507, %s506, 0
      %p509 = scmp.lt.s32.totalorder %s26, 1
      %s510 = scalar_select %p509, %s26, 1
      %p511 = scmp.lt.s32.totalorder %s508, 15
      %s512 = scalar_select %p511, %s508, 15
      %s513 = smul.addr %s512, 2
      %s514 = smul.addr %s510, 32
      %s515 = sadd.s32 %s513, %s514
      %s516 = smul.addr %s515, 4
      %s517 = scalar_lea.vmem %s1, %s516
      %p518 = pneg %p93
      %p519 = pneg %p90
      %s520 = smul.u32 %s27, 8
      %s521 = ssub.s32 %s520, 1
      %p522 = scmp.gt.s32.totalorder %s521, 0
      %s523 = scalar_select %p522, %s521, 0
      %p524 = scmp.lt.s32.totalorder %s26, 1
      %s525 = scalar_select %p524, %s26, 1
      %p526 = scmp.lt.s32.totalorder %s523, 15
      %s527 = scalar_select %p526, %s523, 15
      %s528 = smul.addr %s527, 2
      %s529 = smul.addr %s525, 32
      %s530 = sadd.s32 %s528, %s529
      %s531 = smul.addr %s530, 4
      %s532 = scalar_lea.vmem %s2, %s531
      %p533 = pneg %p129
      %p534 = pneg %p126
      %s535 = smul.u32 %s27, 8
      %s536 = sadd.s32 %s535, 8
      %p537 = scmp.lt.s32.totalorder %s536, 15
      %s538 = scalar_select %p537, %s536, 15
      %p539 = scmp.lt.s32.totalorder %s26, 1
      %s540 = scalar_select %p539, %s26, 1
      %p541 = scmp.lt.s32.totalorder %s538, 15
      %s542 = scalar_select %p541, %s538, 15
      %s543 = smul.addr %s542, 2
      %s544 = smul.addr %s540, 32
      %s545 = sadd.s32 %s543, %s544
      %s546 = smul.addr %s545, 4
      %s547 = scalar_lea.vmem %s3, %s546
      %p548 = pneg %p165
      %p549 = pneg %p162
      %s550 = smul.u32 %s27, 8
      %s551 = sadd.s32 %s550, 9
      %p552 = scmp.lt.s32.totalorder %s551, 15
      %s553 = scalar_select %p552, %s551, 15
      %p554 = scmp.lt.s32.totalorder %s26, 1
      %s555 = scalar_select %p554, %s26, 1
      %p556 = scmp.lt.s32.totalorder %s553, 15
      %s557 = scalar_select %p556, %s553, 15
      %s558 = smul.addr %s557, 2
      %s559 = smul.addr %s555, 32
      %s560 = sadd.s32 %s558, %s559
      %s561 = smul.addr %s560, 4
      %s562 = scalar_lea.vmem %s4, %s561
      %p563 = pneg %p201
      %p564 = pneg %p198
      %p565 = pneg %p222
      %p566 = pneg %p219
      %p567 = pneg %p243
      %p568 = pneg %p240
      %p569 = pneg %p264
      %p570 = pneg %p261
      %p571 = pneg %p285
      %p572 = pneg %p282
      %p573 = pneg %p306
      %p574 = pneg %p303
      %p575 = pneg %p327
      %p576 = pneg %p324
      %p577 = pneg %p355
      %p578 = pneg %p352
      %s579 = smul.u32 8, %s27
      %p580 = scmp.lt.s32.totalorder %s26, 1
      %s581 = scalar_select %p580, %s26, 1
      %p582 = scmp.lt.s32.totalorder %s579, 15
      %s583 = scalar_select %p582, %s579, 15
      %s584 = smul.addr %s583, 2
      %s585 = smul.addr %s581, 32
      %s586 = sadd.s32 %s584, %s585
      %s587 = smul.addr %s586, 4
      %s588 = scalar_lea.vmem %s11, %s587
      %s589 = smul.u32 8, %s27
      %p590 = scmp.lt.s32.totalorder %s26, 1
      %s591 = scalar_select %p590, %s26, 1
      %p592 = scmp.lt.s32.totalorder %s589, 15
      %s593 = scalar_select %p592, %s589, 15
      %s594 = smul.addr %s593, 2
      %s595 = smul.addr %s591, 32
      %s596 = sadd.s32 %s594, %s595
      %s597 = smul.addr %s596, 4
      %s598 = scalar_lea.vmem %s0, %s597
      %s599 = smul.u32 8, %s27
      %s600 = smul.u32 %s27, 8
      %s601 = ssub.s32 %s600, 2
      %p602 = scmp.gt.s32.totalorder %s601, 0
      %s603 = scalar_select %p602, %s601, 0
      %p604 = scmp.lt.s32.totalorder %s26, 1
      %s605 = scalar_select %p604, %s26, 1
      %p606 = scmp.lt.s32.totalorder %s603, 15
      %s607 = scalar_select %p606, %s603, 15
      %s608 = smul.addr %s607, 2
      %s609 = smul.addr %s605, 32
      %s610 = sadd.s32 %s608, %s609
      %s611 = smul.addr %s610, 4
      %s612 = scalar_lea.vmem %s1, %s611
      %s613 = smul.u32 %s27, 8
      %s614 = ssub.s32 %s613, 2
      %p615 = scmp.gt.s32.totalorder %s614, 0
      %s616 = scalar_select %p615, %s614, 0
      %s617 = smul.u32 %s27, 8
      %s618 = ssub.s32 %s617, 1
      %p619 = scmp.gt.s32.totalorder %s618, 0
      %s620 = scalar_select %p619, %s618, 0
      %p621 = scmp.lt.s32.totalorder %s26, 1
      %s622 = scalar_select %p621, %s26, 1
      %p623 = scmp.lt.s32.totalorder %s620, 15
      %s624 = scalar_select %p623, %s620, 15
      %s625 = smul.addr %s624, 2
      %s626 = smul.addr %s622, 32
      %s627 = sadd.s32 %s625, %s626
      %s628 = smul.addr %s627, 4
      %s629 = scalar_lea.vmem %s2, %s628
      %s630 = smul.u32 %s27, 8
      %s631 = ssub.s32 %s630, 1
      %p632 = scmp.gt.s32.totalorder %s631, 0
      %s633 = scalar_select %p632, %s631, 0
      %s634 = smul.u32 %s27, 8
      %s635 = sadd.s32 %s634, 8
      %p636 = scmp.lt.s32.totalorder %s635, 15
      %s637 = scalar_select %p636, %s635, 15
      %p638 = scmp.lt.s32.totalorder %s26, 1
      %s639 = scalar_select %p638, %s26, 1
      %p640 = scmp.lt.s32.totalorder %s637, 15
      %s641 = scalar_select %p640, %s637, 15
      %s642 = smul.addr %s641, 2
      %s643 = smul.addr %s639, 32
      %s644 = sadd.s32 %s642, %s643
      %s645 = smul.addr %s644, 4
      %s646 = scalar_lea.vmem %s3, %s645
      %s647 = smul.u32 %s27, 8
      %s648 = sadd.s32 %s647, 8
      %p649 = scmp.lt.s32.totalorder %s648, 15
      %s650 = scalar_select %p649, %s648, 15
      %s651 = smul.u32 %s27, 8
      %s652 = sadd.s32 %s651, 9
      %p653 = scmp.lt.s32.totalorder %s652, 15
      %s654 = scalar_select %p653, %s652, 15
      %p655 = scmp.lt.s32.totalorder %s26, 1
      %s656 = scalar_select %p655, %s26, 1
      %p657 = scmp.lt.s32.totalorder %s654, 15
      %s658 = scalar_select %p657, %s654, 15
      %s659 = smul.addr %s658, 2
      %s660 = smul.addr %s656, 32
      %s661 = sadd.s32 %s659, %s660
      %s662 = smul.addr %s661, 4
      %s663 = scalar_lea.vmem %s4, %s662
      %s664 = smul.u32 %s27, 8
      %s665 = sadd.s32 %s664, 9
      %p666 = scmp.lt.s32.totalorder %s665, 15
      %s667 = scalar_select %p666, %s665, 15
      %s668 = smul.u32 8, %s27
      %p669 = scmp.lt.s32.totalorder %s26, 1
      %s670 = scalar_select %p669, %s26, 1
      %p671 = scmp.lt.s32.totalorder %s668, 15
      %s672 = scalar_select %p671, %s668, 15
      %s673 = smul.addr %s672, 2
      %s674 = smul.addr %s670, 32
      %s675 = sadd.s32 %s673, %s674
      %s676 = smul.addr %s675, 4
      %s677 = scalar_lea.vmem %s11, %s676
      %s678 = smul.u32 8, %s27
      %680 = vst [vmem:[#allocation2] sm:$0xf] 0
      %681 = vst [vmem:[#allocation2 + $0x4] sm:$0xf] 0
      %682 = vst [vmem:[#allocation2 + $0x8] sm:$0xf] 0
      %683 = vst [vmem:[#allocation2 + $0xc] sm:$0xf] 0
      %684 = vst [vmem:[#allocation2 + $0x10] sm:$0x1] 0
      %685 = vst [vmem:[#allocation2 + $0x14] sm:$0xf] 0
      %686 = vst [vmem:[#allocation2 + $0x18] sm:$0xf] 0
      %687 = vst [vmem:[#allocation2 + $0x1c] sm:$0xf] 0
      %688 = vst [vmem:[#allocation2 + $0x20] sm:$0xf] 0
      %689 = vst [vmem:[#allocation2 + $0x24] sm:$0x1] 0
      %690 = vst [vmem:[#allocation2 + $0x28] sm:$0xf] 0
      %691 = vst [vmem:[#allocation2 + $0x2c] sm:$0xf] 0
      %692 = vst [vmem:[#allocation2 + $0x30] sm:$0xf] 0
      %693 = vst [vmem:[#allocation2 + $0x34] sm:$0xf] 0
      %694 = vst [vmem:[#allocation2 + $0x38] sm:$0x1] 0
      %695 = vst [vmem:[#allocation2 + $0x3c] sm:$0xf] 0
      %696 = vst [vmem:[#allocation2 + $0x40] sm:$0xf] 0
      %697 = vst [vmem:[#allocation2 + $0x44] sm:$0xf] 0
      %698 = vst [vmem:[#allocation2 + $0x48] sm:$0xf] 0
      %699 = vst [vmem:[#allocation2 + $0x4c] sm:$0x1] 0
      %700 = vst [vmem:[#allocation2 + $0x50] sm:$0xf] 0
      %701 = vst [vmem:[#allocation2 + $0x54] sm:$0xf] 0
      %702 = vst [vmem:[#allocation2 + $0x58] sm:$0xf] 0
      %703 = vst [vmem:[#allocation2 + $0x5c] sm:$0xf] 0
      %704 = vst [vmem:[#allocation2 + $0x60] sm:$0x1] 0
      %705 = vst [vmem:[#allocation2 + $0x64] sm:$0xf] 0
      %706 = vst [vmem:[#allocation2 + $0x68] sm:$0xf] 0
      %707 = vst [vmem:[#allocation2 + $0x6c] sm:$0xf] 0
      %708 = vst [vmem:[#allocation2 + $0x70] sm:$0xf] 0
      %709 = vst [vmem:[#allocation2 + $0x74] sm:$0x1] 0
      %710 = vst [vmem:[#allocation2 + $0x78] sm:$0xf] 0
      %711 = vst [vmem:[#allocation2 + $0x7c] sm:$0xf] 0
      %712 = vst [vmem:[#allocation2 + $0x80] sm:$0xf] 0
      %713 = vst [vmem:[#allocation2 + $0x84] sm:$0xf] 0
      %714 = vst [vmem:[#allocation2 + $0x88] sm:$0x1] 0
      %715 = vst [vmem:[#allocation2 + $0x8c] sm:$0xf] 0
      %716 = vst [vmem:[#allocation2 + $0x90] sm:$0xf] 0
      %717 = vst [vmem:[#allocation2 + $0x94] sm:$0xf] 0
      %718 = vst [vmem:[#allocation2 + $0x98] sm:$0xf] 0
      %719 = vst [vmem:[#allocation2 + $0x9c] sm:$0x1] 0
      %720 = vst [vmem:[#allocation2 + $0xa0] sm:$0xf] 0
      %721 = vst [vmem:[#allocation2 + $0xa4] sm:$0xf] 0
      %722 = vst [vmem:[#allocation2 + $0xa8] sm:$0xf] 0
      %723 = vst [vmem:[#allocation2 + $0xac] sm:$0xf] 0
      %724 = vst [vmem:[#allocation2 + $0xb0] sm:$0x1] 0
      %725 = vst [vmem:[#allocation2 + $0xb4] sm:$0xf] 0
      %726 = vst [vmem:[#allocation2 + $0xb8] sm:$0xf] 0
      %727 = vst [vmem:[#allocation2 + $0xbc] sm:$0xf] 0
      %728 = vst [vmem:[#allocation2 + $0xc0] sm:$0xf] 0
      %729 = vst [vmem:[#allocation2 + $0xc4] sm:$0x1] 0
      %730 = vst [vmem:[#allocation2 + $0xc8] sm:$0xf] 0
      %731 = vst [vmem:[#allocation2 + $0xcc] sm:$0xf] 0
      %732 = vst [vmem:[#allocation2 + $0xd0] sm:$0xf] 0
      %733 = vst [vmem:[#allocation2 + $0xd4] sm:$0xf] 0
      %734 = vst [vmem:[#allocation2 + $0xd8] sm:$0x1] 0
      %735 = vst [vmem:[#allocation2 + $0xdc] sm:$0xf] 0
      %736 = vst [vmem:[#allocation2 + $0xe0] sm:$0xf] 0
      %737 = vst [vmem:[#allocation2 + $0xe4] sm:$0xf] 0
      %738 = vst [vmem:[#allocation2 + $0xe8] sm:$0xf] 0
      %739 = vst [vmem:[#allocation2 + $0xec] sm:$0x1] 0
      %v740 = vld [vmem:[%s598] sm:$0xf]
      %v741 = vld [vmem:[%s598 + $0x4] sm:$0xf]
      %v742 = vld [vmem:[%s598 + $0x8] sm:$0xf]
      %v743 = vld [vmem:[%s598 + $0xc] sm:$0xf]
      %v744 = vld [vmem:[%s598 + $0x10] sm:$0xf]
      %v745 = vld [vmem:[%s598 + $0x14] sm:$0xf]
      %v746 = vld [vmem:[%s598 + $0x18] sm:$0xf]
      %v747 = vld [vmem:[%s598 + $0x1c] sm:$0xf]
      %v748 = vld [vmem:[%s598 + $0x20] sm:$0xf]
      %v749 = vld [vmem:[%s598 + $0x24] sm:$0xf]
      %v750 = vld [vmem:[%s598 + $0x28] sm:$0xf]
      %v751 = vld [vmem:[%s598 + $0x2c] sm:$0xf]
      %v752 = vld [vmem:[%s598 + $0x30] sm:$0xf]
      %v753 = vld [vmem:[%s598 + $0x34] sm:$0xf]
      %v754 = vld [vmem:[%s598 + $0x38] sm:$0xf]
      %v755 = vld [vmem:[%s598 + $0x3c] sm:$0xf]
      %s756 = scalar_lea.vmem [#allocation2], 40
      %757 = vst [vmem:[%s756 + $0x8] sm:$0xf] %v740
      %758 = vst [vmem:[%s756 + $0xc] sm:$0xf] %v741
      %759 = vst [vmem:[%s756 + $0x1c] sm:$0xf] %v742
      %760 = vst [vmem:[%s756 + $0x20] sm:$0xf] %v743
      %761 = vst [vmem:[%s756 + $0x30] sm:$0xf] %v744
      %762 = vst [vmem:[%s756 + $0x34] sm:$0xf] %v745
      %763 = vst [vmem:[%s756 + $0x44] sm:$0xf] %v746
      %764 = vst [vmem:[%s756 + $0x48] sm:$0xf] %v747
      %765 = vst [vmem:[%s756 + $0x58] sm:$0xf] %v748
      %766 = vst [vmem:[%s756 + $0x5c] sm:$0xf] %v749
      %767 = vst [vmem:[%s756 + $0x6c] sm:$0xf] %v750
      %768 = vst [vmem:[%s756 + $0x70] sm:$0xf] %v751
      %769 = vst [vmem:[%s756 + $0x80] sm:$0xf] %v752
      %770 = vst [vmem:[%s756 + $0x84] sm:$0xf] %v753
      %771 = vst [vmem:[%s756 + $0x94] sm:$0xf] %v754
      %772 = vst [vmem:[%s756 + $0x98] sm:$0xf] %v755
      %p773 = scmp.gt.s32.totalorder %s27, 0
      // Predicated region
      $region65: #{basic_block_forward.1} parent=63 // pred_check
        %p774 = pneg %p773
      $region66: #{basic_block_forward.1} parent=63 // pred_check_branch
        %776 = sbr.rel (%p774) target = $region68
      $region67: #{basic_block_forward.1} parent=63 // pred_region
        %v777 = vld [vmem:[%s612] sm:$0xf]
        %v778 = vld [vmem:[%s612 + $0x4] sm:$0xf]
        %779 = vst [vmem:[#allocation2 + $0x8] sm:$0xf] %v777
        %780 = vst [vmem:[#allocation2 + $0xc] sm:$0xf] %v778
        %v781 = vld [vmem:[%s629] sm:$0xf]
        %v782 = vld [vmem:[%s629 + $0x4] sm:$0xf]
        %s783 = scalar_lea.vmem [#allocation2], 20
        %784 = vst [vmem:[%s783 + $0x8] sm:$0xf] %v781
        %785 = vst [vmem:[%s783 + $0xc] sm:$0xf] %v782
      $region68: #{basic_block_forward.1} parent=63 // pred_fallthru
        _
      %p786 = scmp.lt.s32.totalorder %s27, 1
      // Predicated region
      $region69: #{basic_block_forward.1} parent=63 // pred_check
        %p787 = pneg %p786
      $region70: #{basic_block_forward.1} parent=63 // pred_check_branch
        %789 = sbr.rel (%p787) target = $region72
      $region71: #{basic_block_forward.1} parent=63 // pred_region
        %v790 = vld [vmem:[%s646] sm:$0xf]
        %v791 = vld [vmem:[%s646 + $0x4] sm:$0xf]
        %s792 = scalar_lea.vmem [#allocation2], 200
        %793 = vst [vmem:[%s792 + $0x8] sm:$0xf] %v790
        %794 = vst [vmem:[%s792 + $0xc] sm:$0xf] %v791
        %v795 = vld [vmem:[%s663] sm:$0xf]
        %v796 = vld [vmem:[%s663 + $0x4] sm:$0xf]
        %s797 = scalar_lea.vmem [#allocation2], 220
        %798 = vst [vmem:[%s797 + $0x8] sm:$0xf] %v795
        %799 = vst [vmem:[%s797 + $0xc] sm:$0xf] %v796
      $region72: #{basic_block_forward.1} parent=63 // pred_fallthru
        _
      %v800 = vld [vmem:[#allocation2 + $0x4] sm:$0x8]
      %v801 = vld [vmem:[#allocation2 + $0x8] sm:$0xf]
      %v802 = vld [vmem:[#allocation2 + $0xc] sm:$0xf]
      %v803 = vld [vmem:[#allocation2 + $0x18] sm:$0x8]
      %v804 = vld [vmem:[#allocation2 + $0x1c] sm:$0xf]
      %v805 = vld [vmem:[#allocation2 + $0x20] sm:$0xf]
      %v806 = vld [vmem:[#allocation2 + $0x2c] sm:$0x8]
      %v807 = vld [vmem:[#allocation2 + $0x30] sm:$0xf]
      %v808 = vld [vmem:[#allocation2 + $0x34] sm:$0xf]
      %v809 = vld [vmem:[#allocation2 + $0x40] sm:$0x8]
      %v810 = vld [vmem:[#allocation2 + $0x44] sm:$0xf]
      %v811 = vld [vmem:[#allocation2 + $0x48] sm:$0xf]
      %v812 = vld [vmem:[#allocation2 + $0x54] sm:$0x8]
      %v813 = vld [vmem:[#allocation2 + $0x58] sm:$0xf]
      %v814 = vld [vmem:[#allocation2 + $0x5c] sm:$0xf]
      %v815 = vld [vmem:[#allocation2 + $0x68] sm:$0x8]
      %v816 = vld [vmem:[#allocation2 + $0x6c] sm:$0xf]
      %v817 = vld [vmem:[#allocation2 + $0x70] sm:$0xf]
      %v818 = vld [vmem:[#allocation2 + $0x7c] sm:$0x8]
      %v819 = vld [vmem:[#allocation2 + $0x80] sm:$0xf]
      %v820 = vld [vmem:[#allocation2 + $0x84] sm:$0xf]
      %v821 = vld [vmem:[#allocation2 + $0x90] sm:$0x8]
      %v822 = vld [vmem:[#allocation2 + $0x94] sm:$0xf]
      %v823 = vld [vmem:[#allocation2 + $0x98] sm:$0xf]
      %v824 = vld [vmem:[#allocation2 + $0xa4] sm:$0x8]
      %v825 = vld [vmem:[#allocation2 + $0xa8] sm:$0xf]
      %v826 = vld [vmem:[#allocation2 + $0xac] sm:$0xf]
      %v827 = vld [vmem:[#allocation2 + $0xb8] sm:$0x8]
      %v828 = vld [vmem:[#allocation2 + $0xbc] sm:$0xf]
      %v829 = vld [vmem:[#allocation2 + $0xc0] sm:$0xf]
      %v830 = vld [vmem:[#allocation2 + $0xcc] sm:$0x8]
      %v831 = vld [vmem:[#allocation2 + $0xd0] sm:$0xf]
      %v832 = vld [vmem:[#allocation2 + $0xd4] sm:$0xf]
      %v833 = vld [vmem:[#allocation2 + $0xe0] sm:$0x8]
      %v834 = vld [vmem:[#allocation2 + $0xe4] sm:$0xf]
      %v835 = vld [vmem:[#allocation2 + $0xe8] sm:$0xf]
      %vm836 = vsmask.f32 256
      %vm837 = vsmask.f32 4368
      %vm838 = vmor %vm836, %vm837
      %v840 = vshrl.u32 %v800, 16
      %v842 = vrot.slane %v840, 7
      %v843 = vrot.slane %v842, 4
      %v845 = vshrl.u32 %v801, 16
      %v847 = vrot.slane %v845, 7
      %v848 = vshll.u32 %v801, 16
      %v850 = vor.u32 %v847, %v848
      %v851 = vsel %vm838, %v843, %v850
      %v852 = vrot.slane %v847, 4
      %v854 = vshrl.u32 %v802, 16
      %v856 = vrot.slane %v854, 7
      %v857 = vshll.u32 %v802, 16
      %v859 = vor.u32 %v856, %v857
      %v860 = vsel %vm838, %v852, %v859
      %v862 = vshrl.u32 %v803, 16
      %v864 = vrot.slane %v862, 7
      %v865 = vrot.slane %v864, 4
      %v867 = vshrl.u32 %v804, 16
      %v869 = vrot.slane %v867, 7
      %v870 = vshll.u32 %v804, 16
      %v872 = vor.u32 %v869, %v870
      %v873 = vsel %vm838, %v865, %v872
      %v874 = vrot.slane %v869, 4
      %v876 = vshrl.u32 %v805, 16
      %v878 = vrot.slane %v876, 7
      %v879 = vshll.u32 %v805, 16
      %v881 = vor.u32 %v878, %v879
      %v882 = vsel %vm838, %v874, %v881
      %v884 = vshrl.u32 %v806, 16
      %v886 = vrot.slane %v884, 7
      %v887 = vrot.slane %v886, 4
      %v889 = vshrl.u32 %v807, 16
      %v891 = vrot.slane %v889, 7
      %v892 = vshll.u32 %v807, 16
      %v894 = vor.u32 %v891, %v892
      %v895 = vsel %vm838, %v887, %v894
      %v896 = vrot.slane %v891, 4
      %v898 = vshrl.u32 %v808, 16
      %v900 = vrot.slane %v898, 7
      %v901 = vshll.u32 %v808, 16
      %v903 = vor.u32 %v900, %v901
      %v904 = vsel %vm838, %v896, %v903
      %v906 = vshrl.u32 %v809, 16
      %v908 = vrot.slane %v906, 7
      %v909 = vrot.slane %v908, 4
      %v911 = vshrl.u32 %v810, 16
      %v913 = vrot.slane %v911, 7
      %v914 = vshll.u32 %v810, 16
      %v916 = vor.u32 %v913, %v914
      %v917 = vsel %vm838, %v909, %v916
      %v918 = vrot.slane %v913, 4
      %v920 = vshrl.u32 %v811, 16
      %v922 = vrot.slane %v920, 7
      %v923 = vshll.u32 %v811, 16
      %v925 = vor.u32 %v922, %v923
      %v926 = vsel %vm838, %v918, %v925
      %v928 = vshrl.u32 %v812, 16
      %v930 = vrot.slane %v928, 7
      %v931 = vrot.slane %v930, 4
      %v933 = vshrl.u32 %v813, 16
      %v935 = vrot.slane %v933, 7
      %v936 = vshll.u32 %v813, 16
      %v938 = vor.u32 %v935, %v936
      %v939 = vsel %vm838, %v931, %v938
      %v940 = vrot.slane %v935, 4
      %v942 = vshrl.u32 %v814, 16
      %v944 = vrot.slane %v942, 7
      %v945 = vshll.u32 %v814, 16
      %v947 = vor.u32 %v944, %v945
      %v948 = vsel %vm838, %v940, %v947
      %v950 = vshrl.u32 %v815, 16
      %v952 = vrot.slane %v950, 7
      %v953 = vrot.slane %v952, 4
      %v955 = vshrl.u32 %v816, 16
      %v957 = vrot.slane %v955, 7
      %v958 = vshll.u32 %v816, 16
      %v960 = vor.u32 %v957, %v958
      %v961 = vsel %vm838, %v953, %v960
      %v962 = vrot.slane %v957, 4
      %v964 = vshrl.u32 %v817, 16
      %v966 = vrot.slane %v964, 7
      %v967 = vshll.u32 %v817, 16
      %v969 = vor.u32 %v966, %v967
      %v970 = vsel %vm838, %v962, %v969
      %v972 = vshrl.u32 %v818, 16
      %v974 = vrot.slane %v972, 7
      %v975 = vrot.slane %v974, 4
      %v977 = vshrl.u32 %v819, 16
      %v979 = vrot.slane %v977, 7
      %v980 = vshll.u32 %v819, 16
      %v982 = vor.u32 %v979, %v980
      %v983 = vsel %vm838, %v975, %v982
      %v984 = vrot.slane %v979, 4
      %v986 = vshrl.u32 %v820, 16
      %v988 = vrot.slane %v986, 7
      %v989 = vshll.u32 %v820, 16
      %v991 = vor.u32 %v988, %v989
      %v992 = vsel %vm838, %v984, %v991
      %v994 = vshrl.u32 %v821, 16
      %v996 = vrot.slane %v994, 7
      %v997 = vrot.slane %v996, 4
      %v999 = vshrl.u32 %v822, 16
      %v1001 = vrot.slane %v999, 7
      %v1002 = vshll.u32 %v822, 16
      %v1004 = vor.u32 %v1001, %v1002
      %v1005 = vsel %vm838, %v997, %v1004
      %v1006 = vrot.slane %v1001, 4
      %v1008 = vshrl.u32 %v823, 16
      %v1010 = vrot.slane %v1008, 7
      %v1011 = vshll.u32 %v823, 16
      %v1013 = vor.u32 %v1010, %v1011
      %v1014 = vsel %vm838, %v1006, %v1013
      %v1016 = vshrl.u32 %v824, 16
      %v1018 = vrot.slane %v1016, 7
      %v1019 = vrot.slane %v1018, 4
      %v1021 = vshrl.u32 %v825, 16
      %v1023 = vrot.slane %v1021, 7
      %v1024 = vshll.u32 %v825, 16
      %v1026 = vor.u32 %v1023, %v1024
      %v1027 = vsel %vm838, %v1019, %v1026
      %v1028 = vrot.slane %v1023, 4
      %v1030 = vshrl.u32 %v826, 16
      %v1032 = vrot.slane %v1030, 7
      %v1033 = vshll.u32 %v826, 16
      %v1035 = vor.u32 %v1032, %v1033
      %v1036 = vsel %vm838, %v1028, %v1035
      %v1038 = vshrl.u32 %v827, 16
      %v1040 = vrot.slane %v1038, 7
      %v1041 = vrot.slane %v1040, 4
      %v1043 = vshrl.u32 %v828, 16
      %v1045 = vrot.slane %v1043, 7
      %v1046 = vshll.u32 %v828, 16
      %v1048 = vor.u32 %v1045, %v1046
      %v1049 = vsel %vm838, %v1041, %v1048
      %v1050 = vrot.slane %v1045, 4
      %v1052 = vshrl.u32 %v829, 16
      %v1054 = vrot.slane %v1052, 7
      %v1055 = vshll.u32 %v829, 16
      %v1057 = vor.u32 %v1054, %v1055
      %v1058 = vsel %vm838, %v1050, %v1057
      %v1060 = vshrl.u32 %v830, 16
      %v1062 = vrot.slane %v1060, 7
      %v1063 = vrot.slane %v1062, 4
      %v1065 = vshrl.u32 %v831, 16
      %v1067 = vrot.slane %v1065, 7
      %v1068 = vshll.u32 %v831, 16
      %v1070 = vor.u32 %v1067, %v1068
      %v1071 = vsel %vm838, %v1063, %v1070
      %v1072 = vrot.slane %v1067, 4
      %v1074 = vshrl.u32 %v832, 16
      %v1076 = vrot.slane %v1074, 7
      %v1077 = vshll.u32 %v832, 16
      %v1079 = vor.u32 %v1076, %v1077
      %v1080 = vsel %vm838, %v1072, %v1079
      %v1082 = vshrl.u32 %v833, 16
      %v1084 = vrot.slane %v1082, 7
      %v1085 = vrot.slane %v1084, 4
      %v1087 = vshrl.u32 %v834, 16
      %v1089 = vrot.slane %v1087, 7
      %v1090 = vshll.u32 %v834, 16
      %v1092 = vor.u32 %v1089, %v1090
      %v1093 = vsel %vm838, %v1085, %v1092
      %v1094 = vrot.slane %v1089, 4
      %v1096 = vshrl.u32 %v835, 16
      %v1098 = vrot.slane %v1096, 7
      %v1099 = vshll.u32 %v835, 16
      %v1101 = vor.u32 %v1098, %v1099
      %v1102 = vsel %vm838, %v1094, %v1101
      %1127 = vst [vmem:[#allocation4] sm:$0xf] %v851
      %1128 = vst [vmem:[#allocation4 + $0xc] sm:$0xf] %v860
      %1129 = vst [vmem:[#allocation4 + $0x18] sm:$0xf] %v873
      %1130 = vst [vmem:[#allocation4 + $0x24] sm:$0xf] %v882
      %1131 = vst [vmem:[#allocation4 + $0x30] sm:$0xf] %v895
      %1132 = vst [vmem:[#allocation4 + $0x3c] sm:$0xf] %v904
      %1133 = vst [vmem:[#allocation4 + $0x48] sm:$0xf] %v917
      %1134 = vst [vmem:[#allocation4 + $0x54] sm:$0xf] %v926
      %1135 = vst [vmem:[#allocation4 + $0x60] sm:$0xf] %v939
      %1136 = vst [vmem:[#allocation4 + $0x6c] sm:$0xf] %v948
      %1137 = vst [vmem:[#allocation4 + $0x78] sm:$0xf] %v961
      %1138 = vst [vmem:[#allocation4 + $0x84] sm:$0xf] %v970
      %1139 = vst [vmem:[#allocation4 + $0x90] sm:$0xf] %v983
      %1140 = vst [vmem:[#allocation4 + $0x9c] sm:$0xf] %v992
      %1141 = vst [vmem:[#allocation4 + $0xa8] sm:$0xf] %v1005
      %1142 = vst [vmem:[#allocation4 + $0xb4] sm:$0xf] %v1014
      %1143 = vst [vmem:[#allocation4 + $0xc0] sm:$0xf] %v1027
      %1144 = vst [vmem:[#allocation4 + $0xcc] sm:$0xf] %v1036
      %1145 = vst [vmem:[#allocation4 + $0xd8] sm:$0xf] %v1049
      %1146 = vst [vmem:[#allocation4 + $0xe4] sm:$0xf] %v1058
      %1147 = vst [vmem:[#allocation4 + $0xf0] sm:$0xf] %v1071
      %1148 = vst [vmem:[#allocation4 + $0xfc] sm:$0xf] %v1080
      %1149 = vst [vmem:[#allocation4 + $0x108] sm:$0xf] %v1093
      %1150 = vst [vmem:[#allocation4 + $0x114] sm:$0xf] %v1102
      %v1151 = vld [vmem:[#allocation2 + $0x8] sm:$0xf]
      %v1152 = vld [vmem:[#allocation2 + $0xc] sm:$0xf]
      %v1153 = vld [vmem:[#allocation2 + $0x1c] sm:$0xf]
      %v1154 = vld [vmem:[#allocation2 + $0x20] sm:$0xf]
      %v1155 = vld [vmem:[#allocation2 + $0x30] sm:$0xf]
      %v1156 = vld [vmem:[#allocation2 + $0x34] sm:$0xf]
      %v1157 = vld [vmem:[#allocation2 + $0x44] sm:$0xf]
      %v1158 = vld [vmem:[#allocation2 + $0x48] sm:$0xf]
      %v1159 = vld [vmem:[#allocation2 + $0x58] sm:$0xf]
      %v1160 = vld [vmem:[#allocation2 + $0x5c] sm:$0xf]
      %v1161 = vld [vmem:[#allocation2 + $0x6c] sm:$0xf]
      %v1162 = vld [vmem:[#allocation2 + $0x70] sm:$0xf]
      %v1163 = vld [vmem:[#allocation2 + $0x80] sm:$0xf]
      %v1164 = vld [vmem:[#allocation2 + $0x84] sm:$0xf]
      %v1165 = vld [vmem:[#allocation2 + $0x94] sm:$0xf]
      %v1166 = vld [vmem:[#allocation2 + $0x98] sm:$0xf]
      %v1167 = vld [vmem:[#allocation2 + $0xa8] sm:$0xf]
      %v1168 = vld [vmem:[#allocation2 + $0xac] sm:$0xf]
      %v1169 = vld [vmem:[#allocation2 + $0xbc] sm:$0xf]
      %v1170 = vld [vmem:[#allocation2 + $0xc0] sm:$0xf]
      %v1171 = vld [vmem:[#allocation2 + $0xd0] sm:$0xf]
      %v1172 = vld [vmem:[#allocation2 + $0xd4] sm:$0xf]
      %v1173 = vld [vmem:[#allocation2 + $0xe4] sm:$0xf]
      %v1174 = vld [vmem:[#allocation2 + $0xe8] sm:$0xf]
      %1175 = vst [vmem:[#allocation4 + $0x4] sm:$0xf] %v1151
      %1176 = vst [vmem:[#allocation4 + $0x10] sm:$0xf] %v1152
      %1177 = vst [vmem:[#allocation4 + $0x1c] sm:$0xf] %v1153
      %1178 = vst [vmem:[#allocation4 + $0x28] sm:$0xf] %v1154
      %1179 = vst [vmem:[#allocation4 + $0x34] sm:$0xf] %v1155
      %1180 = vst [vmem:[#allocation4 + $0x40] sm:$0xf] %v1156
      %1181 = vst [vmem:[#allocation4 + $0x4c] sm:$0xf] %v1157
      %1182 = vst [vmem:[#allocation4 + $0x58] sm:$0xf] %v1158
      %1183 = vst [vmem:[#allocation4 + $0x64] sm:$0xf] %v1159
      %1184 = vst [vmem:[#allocation4 + $0x70] sm:$0xf] %v1160
      %1185 = vst [vmem:[#allocation4 + $0x7c] sm:$0xf] %v1161
      %1186 = vst [vmem:[#allocation4 + $0x88] sm:$0xf] %v1162
      %1187 = vst [vmem:[#allocation4 + $0x94] sm:$0xf] %v1163
      %1188 = vst [vmem:[#allocation4 + $0xa0] sm:$0xf] %v1164
      %1189 = vst [vmem:[#allocation4 + $0xac] sm:$0xf] %v1165
      %1190 = vst [vmem:[#allocation4 + $0xb8] sm:$0xf] %v1166
      %1191 = vst [vmem:[#allocation4 + $0xc4] sm:$0xf] %v1167
      %1192 = vst [vmem:[#allocation4 + $0xd0] sm:$0xf] %v1168
      %1193 = vst [vmem:[#allocation4 + $0xdc] sm:$0xf] %v1169
      %1194 = vst [vmem:[#allocation4 + $0xe8] sm:$0xf] %v1170
      %1195 = vst [vmem:[#allocation4 + $0xf4] sm:$0xf] %v1171
      %1196 = vst [vmem:[#allocation4 + $0x100] sm:$0xf] %v1172
      %1197 = vst [vmem:[#allocation4 + $0x10c] sm:$0xf] %v1173
      %1198 = vst [vmem:[#allocation4 + $0x118] sm:$0xf] %v1174
      %v1199 = vld [vmem:[#allocation2 + $0x8] sm:$0xf]
      %v1200 = vld [vmem:[#allocation2 + $0xc] sm:$0xf]
      %v1201 = vld [vmem:[#allocation2 + $0x10] sm:$0x1]
      %v1202 = vld [vmem:[#allocation2 + $0x1c] sm:$0xf]
      %v1203 = vld [vmem:[#allocation2 + $0x20] sm:$0xf]
      %v1204 = vld [vmem:[#allocation2 + $0x24] sm:$0x1]
      %v1205 = vld [vmem:[#allocation2 + $0x30] sm:$0xf]
      %v1206 = vld [vmem:[#allocation2 + $0x34] sm:$0xf]
      %v1207 = vld [vmem:[#allocation2 + $0x38] sm:$0x1]
      %v1208 = vld [vmem:[#allocation2 + $0x44] sm:$0xf]
      %v1209 = vld [vmem:[#allocation2 + $0x48] sm:$0xf]
      %v1210 = vld [vmem:[#allocation2 + $0x4c] sm:$0x1]
      %v1211 = vld [vmem:[#allocation2 + $0x58] sm:$0xf]
      %v1212 = vld [vmem:[#allocation2 + $0x5c] sm:$0xf]
      %v1213 = vld [vmem:[#allocation2 + $0x60] sm:$0x1]
      %v1214 = vld [vmem:[#allocation2 + $0x6c] sm:$0xf]
      %v1215 = vld [vmem:[#allocation2 + $0x70] sm:$0xf]
      %v1216 = vld [vmem:[#allocation2 + $0x74] sm:$0x1]
      %v1217 = vld [vmem:[#allocation2 + $0x80] sm:$0xf]
      %v1218 = vld [vmem:[#allocation2 + $0x84] sm:$0xf]
      %v1219 = vld [vmem:[#allocation2 + $0x88] sm:$0x1]
      %v1220 = vld [vmem:[#allocation2 + $0x94] sm:$0xf]
      %v1221 = vld [vmem:[#allocation2 + $0x98] sm:$0xf]
      %v1222 = vld [vmem:[#allocation2 + $0x9c] sm:$0x1]
      %v1223 = vld [vmem:[#allocation2 + $0xa8] sm:$0xf]
      %v1224 = vld [vmem:[#allocation2 + $0xac] sm:$0xf]
      %v1225 = vld [vmem:[#allocation2 + $0xb0] sm:$0x1]
      %v1226 = vld [vmem:[#allocation2 + $0xbc] sm:$0xf]
      %v1227 = vld [vmem:[#allocation2 + $0xc0] sm:$0xf]
      %v1228 = vld [vmem:[#allocation2 + $0xc4] sm:$0x1]
      %v1229 = vld [vmem:[#allocation2 + $0xd0] sm:$0xf]
      %v1230 = vld [vmem:[#allocation2 + $0xd4] sm:$0xf]
      %v1231 = vld [vmem:[#allocation2 + $0xd8] sm:$0x1]
      %v1232 = vld [vmem:[#allocation2 + $0xe4] sm:$0xf]
      %v1233 = vld [vmem:[#allocation2 + $0xe8] sm:$0xf]
      %v1234 = vld [vmem:[#allocation2 + $0xec] sm:$0x1]
      %vm1235 = vsmask.f32 3328
      %vm1236 = vsmask.f32 7440
      %vm1237 = vmor %vm1235, %vm1236
      %v1239 = vshrl.u32 %v1199, 16
      %v1241 = vrot.slane %v1239, 4
      %v1242 = vshll.u32 %v1199, 16
      %v1244 = vrot.slane %v1242, 5
      %v1245 = vor.u32 %v1241, %v1244
      %v1246 = vrot.slane %v1245, 4
      %v1248 = vshll.u32 %v1200, 16
      %v1250 = vrot.slane %v1248, 5
      %v1251 = vsel %vm1237, %v1246, %v1250
      %v1252 = vshrl.u32 %v1200, 16
      %v1254 = vrot.slane %v1252, 4
      %v1255 = vor.u32 %v1254, %v1250
      %v1256 = vrot.slane %v1255, 4
      %v1258 = vshll.u32 %v1201, 16
      %v1260 = vrot.slane %v1258, 5
      %v1261 = vsel %vm1237, %v1256, %v1260
      %v1263 = vshrl.u32 %v1202, 16
      %v1265 = vrot.slane %v1263, 4
      %v1266 = vshll.u32 %v1202, 16
      %v1268 = vrot.slane %v1266, 5
      %v1269 = vor.u32 %v1265, %v1268
      %v1270 = vrot.slane %v1269, 4
      %v1272 = vshll.u32 %v1203, 16
      %v1274 = vrot.slane %v1272, 5
      %v1275 = vsel %vm1237, %v1270, %v1274
      %v1276 = vshrl.u32 %v1203, 16
      %v1278 = vrot.slane %v1276, 4
      %v1279 = vor.u32 %v1278, %v1274
      %v1280 = vrot.slane %v1279, 4
      %v1282 = vshll.u32 %v1204, 16
      %v1284 = vrot.slane %v1282, 5
      %v1285 = vsel %vm1237, %v1280, %v1284
      %v1287 = vshrl.u32 %v1205, 16
      %v1289 = vrot.slane %v1287, 4
      %v1290 = vshll.u32 %v1205, 16
      %v1292 = vrot.slane %v1290, 5
      %v1293 = vor.u32 %v1289, %v1292
      %v1294 = vrot.slane %v1293, 4
      %v1296 = vshll.u32 %v1206, 16
      %v1298 = vrot.slane %v1296, 5
      %v1299 = vsel %vm1237, %v1294, %v1298
      %v1300 = vshrl.u32 %v1206, 16
      %v1302 = vrot.slane %v1300, 4
      %v1303 = vor.u32 %v1302, %v1298
      %v1304 = vrot.slane %v1303, 4
      %v1306 = vshll.u32 %v1207, 16
      %v1308 = vrot.slane %v1306, 5
      %v1309 = vsel %vm1237, %v1304, %v1308
      %v1311 = vshrl.u32 %v1208, 16
      %v1313 = vrot.slane %v1311, 4
      %v1314 = vshll.u32 %v1208, 16
      %v1316 = vrot.slane %v1314, 5
      %v1317 = vor.u32 %v1313, %v1316
      %v1318 = vrot.slane %v1317, 4
      %v1320 = vshll.u32 %v1209, 16
      %v1322 = vrot.slane %v1320, 5
      %v1323 = vsel %vm1237, %v1318, %v1322
      %v1324 = vshrl.u32 %v1209, 16
      %v1326 = vrot.slane %v1324, 4
      %v1327 = vor.u32 %v1326, %v1322
      %v1328 = vrot.slane %v1327, 4
      %v1330 = vshll.u32 %v1210, 16
      %v1332 = vrot.slane %v1330, 5
      %v1333 = vsel %vm1237, %v1328, %v1332
      %v1335 = vshrl.u32 %v1211, 16
      %v1337 = vrot.slane %v1335, 4
      %v1338 = vshll.u32 %v1211, 16
      %v1340 = vrot.slane %v1338, 5
      %v1341 = vor.u32 %v1337, %v1340
      %v1342 = vrot.slane %v1341, 4
      %v1344 = vshll.u32 %v1212, 16
      %v1346 = vrot.slane %v1344, 5
      %v1347 = vsel %vm1237, %v1342, %v1346
      %v1348 = vshrl.u32 %v1212, 16
      %v1350 = vrot.slane %v1348, 4
      %v1351 = vor.u32 %v1350, %v1346
      %v1352 = vrot.slane %v1351, 4
      %v1354 = vshll.u32 %v1213, 16
      %v1356 = vrot.slane %v1354, 5
      %v1357 = vsel %vm1237, %v1352, %v1356
      %v1359 = vshrl.u32 %v1214, 16
      %v1361 = vrot.slane %v1359, 4
      %v1362 = vshll.u32 %v1214, 16
      %v1364 = vrot.slane %v1362, 5
      %v1365 = vor.u32 %v1361, %v1364
      %v1366 = vrot.slane %v1365, 4
      %v1368 = vshll.u32 %v1215, 16
      %v1370 = vrot.slane %v1368, 5
      %v1371 = vsel %vm1237, %v1366, %v1370
      %v1372 = vshrl.u32 %v1215, 16
      %v1374 = vrot.slane %v1372, 4
      %v1375 = vor.u32 %v1374, %v1370
      %v1376 = vrot.slane %v1375, 4
      %v1378 = vshll.u32 %v1216, 16
      %v1380 = vrot.slane %v1378, 5
      %v1381 = vsel %vm1237, %v1376, %v1380
      %v1383 = vshrl.u32 %v1217, 16
      %v1385 = vrot.slane %v1383, 4
      %v1386 = vshll.u32 %v1217, 16
      %v1388 = vrot.slane %v1386, 5
      %v1389 = vor.u32 %v1385, %v1388
      %v1390 = vrot.slane %v1389, 4
      %v1392 = vshll.u32 %v1218, 16
      %v1394 = vrot.slane %v1392, 5
      %v1395 = vsel %vm1237, %v1390, %v1394
      %v1396 = vshrl.u32 %v1218, 16
      %v1398 = vrot.slane %v1396, 4
      %v1399 = vor.u32 %v1398, %v1394
      %v1400 = vrot.slane %v1399, 4
      %v1402 = vshll.u32 %v1219, 16
      %v1404 = vrot.slane %v1402, 5
      %v1405 = vsel %vm1237, %v1400, %v1404
      %v1407 = vshrl.u32 %v1220, 16
      %v1409 = vrot.slane %v1407, 4
      %v1410 = vshll.u32 %v1220, 16
      %v1412 = vrot.slane %v1410, 5
      %v1413 = vor.u32 %v1409, %v1412
      %v1414 = vrot.slane %v1413, 4
      %v1416 = vshll.u32 %v1221, 16
      %v1418 = vrot.slane %v1416, 5
      %v1419 = vsel %vm1237, %v1414, %v1418
      %v1420 = vshrl.u32 %v1221, 16
      %v1422 = vrot.slane %v1420, 4
      %v1423 = vor.u32 %v1422, %v1418
      %v1424 = vrot.slane %v1423, 4
      %v1426 = vshll.u32 %v1222, 16
      %v1428 = vrot.slane %v1426, 5
      %v1429 = vsel %vm1237, %v1424, %v1428
      %v1431 = vshrl.u32 %v1223, 16
      %v1433 = vrot.slane %v1431, 4
      %v1434 = vshll.u32 %v1223, 16
      %v1436 = vrot.slane %v1434, 5
      %v1437 = vor.u32 %v1433, %v1436
      %v1438 = vrot.slane %v1437, 4
      %v1440 = vshll.u32 %v1224, 16
      %v1442 = vrot.slane %v1440, 5
      %v1443 = vsel %vm1237, %v1438, %v1442
      %v1444 = vshrl.u32 %v1224, 16
      %v1446 = vrot.slane %v1444, 4
      %v1447 = vor.u32 %v1446, %v1442
      %v1448 = vrot.slane %v1447, 4
      %v1450 = vshll.u32 %v1225, 16
      %v1452 = vrot.slane %v1450, 5
      %v1453 = vsel %vm1237, %v1448, %v1452
      %v1455 = vshrl.u32 %v1226, 16
      %v1457 = vrot.slane %v1455, 4
      %v1458 = vshll.u32 %v1226, 16
      %v1460 = vrot.slane %v1458, 5
      %v1461 = vor.u32 %v1457, %v1460
      %v1462 = vrot.slane %v1461, 4
      %v1464 = vshll.u32 %v1227, 16
      %v1466 = vrot.slane %v1464, 5
      %v1467 = vsel %vm1237, %v1462, %v1466
      %v1468 = vshrl.u32 %v1227, 16
      %v1470 = vrot.slane %v1468, 4
      %v1471 = vor.u32 %v1470, %v1466
      %v1472 = vrot.slane %v1471, 4
      %v1474 = vshll.u32 %v1228, 16
      %v1476 = vrot.slane %v1474, 5
      %v1477 = vsel %vm1237, %v1472, %v1476
      %v1479 = vshrl.u32 %v1229, 16
      %v1481 = vrot.slane %v1479, 4
      %v1482 = vshll.u32 %v1229, 16
      %v1484 = vrot.slane %v1482, 5
      %v1485 = vor.u32 %v1481, %v1484
      %v1486 = vrot.slane %v1485, 4
      %v1488 = vshll.u32 %v1230, 16
      %v1490 = vrot.slane %v1488, 5
      %v1491 = vsel %vm1237, %v1486, %v1490
      %v1492 = vshrl.u32 %v1230, 16
      %v1494 = vrot.slane %v1492, 4
      %v1495 = vor.u32 %v1494, %v1490
      %v1496 = vrot.slane %v1495, 4
      %v1498 = vshll.u32 %v1231, 16
      %v1500 = vrot.slane %v1498, 5
      %v1501 = vsel %vm1237, %v1496, %v1500
      %v1503 = vshrl.u32 %v1232, 16
      %v1505 = vrot.slane %v1503, 4
      %v1506 = vshll.u32 %v1232, 16
      %v1508 = vrot.slane %v1506, 5
      %v1509 = vor.u32 %v1505, %v1508
      %v1510 = vrot.slane %v1509, 4
      %v1512 = vshll.u32 %v1233, 16
      %v1514 = vrot.slane %v1512, 5
      %v1515 = vsel %vm1237, %v1510, %v1514
      %v1516 = vshrl.u32 %v1233, 16
      %v1518 = vrot.slane %v1516, 4
      %v1519 = vor.u32 %v1518, %v1514
      %v1520 = vrot.slane %v1519, 4
      %v1522 = vshll.u32 %v1234, 16
      %v1524 = vrot.slane %v1522, 5
      %v1525 = vsel %vm1237, %v1520, %v1524
      %1550 = vst [vmem:[#allocation4 + $0x8] sm:$0xf] %v1251
      %1551 = vst [vmem:[#allocation4 + $0x14] sm:$0xf] %v1261
      %1552 = vst [vmem:[#allocation4 + $0x20] sm:$0xf] %v1275
      %1553 = vst [vmem:[#allocation4 + $0x2c] sm:$0xf] %v1285
      %1554 = vst [vmem:[#allocation4 + $0x38] sm:$0xf] %v1299
      %1555 = vst [vmem:[#allocation4 + $0x44] sm:$0xf] %v1309
      %1556 = vst [vmem:[#allocation4 + $0x50] sm:$0xf] %v1323
      %1557 = vst [vmem:[#allocation4 + $0x5c] sm:$0xf] %v1333
      %1558 = vst [vmem:[#allocation4 + $0x68] sm:$0xf] %v1347
      %1559 = vst [vmem:[#allocation4 + $0x74] sm:$0xf] %v1357
      %1560 = vst [vmem:[#allocation4 + $0x80] sm:$0xf] %v1371
      %1561 = vst [vmem:[#allocation4 + $0x8c] sm:$0xf] %v1381
      %1562 = vst [vmem:[#allocation4 + $0x98] sm:$0xf] %v1395
      %1563 = vst [vmem:[#allocation4 + $0xa4] sm:$0xf] %v1405
      %1564 = vst [vmem:[#allocation4 + $0xb0] sm:$0xf] %v1419
      %1565 = vst [vmem:[#allocation4 + $0xbc] sm:$0xf] %v1429
      %1566 = vst [vmem:[#allocation4 + $0xc8] sm:$0xf] %v1443
      %1567 = vst [vmem:[#allocation4 + $0xd4] sm:$0xf] %v1453
      %1568 = vst [vmem:[#allocation4 + $0xe0] sm:$0xf] %v1467
      %1569 = vst [vmem:[#allocation4 + $0xec] sm:$0xf] %v1477
      %1570 = vst [vmem:[#allocation4 + $0xf8] sm:$0xf] %v1491
      %1571 = vst [vmem:[#allocation4 + $0x104] sm:$0xf] %v1501
      %1572 = vst [vmem:[#allocation4 + $0x110] sm:$0xf] %v1515
      %1573 = vst [vmem:[#allocation4 + $0x11c] sm:$0xf] %v1525
      %v1574 = vld [vmem:[#allocation4] sm:$0xff]
      %v1575 = vld [vmem:[#allocation4 + $0x8] sm:$0xf]
      %v1576 = vld [vmem:[#allocation4 + $0xc] sm:$0xff]
      %v1577 = vld [vmem:[#allocation4 + $0x14] sm:$0xf]
      %v1578 = vld [vmem:[#allocation4 + $0x18] sm:$0xff]
      %v1579 = vld [vmem:[#allocation4 + $0x20] sm:$0xf]
      %v1580 = vld [vmem:[#allocation4 + $0x24] sm:$0xff]
      %v1581 = vld [vmem:[#allocation4 + $0x2c] sm:$0xf]
      %v1582 = vld [vmem:[#allocation4 + $0x30] sm:$0xff]
      %v1583 = vld [vmem:[#allocation4 + $0x38] sm:$0xf]
      %v1584 = vld [vmem:[#allocation4 + $0x3c] sm:$0xff]
      %v1585 = vld [vmem:[#allocation4 + $0x44] sm:$0xf]
      %v1586 = vld [vmem:[#allocation4 + $0x48] sm:$0xff]
      %v1587 = vld [vmem:[#allocation4 + $0x50] sm:$0xf]
      %v1588 = vld [vmem:[#allocation4 + $0x54] sm:$0xff]
      %v1589 = vld [vmem:[#allocation4 + $0x5c] sm:$0xf]
      %v1590 = vld [vmem:[#allocation4 + $0x60] sm:$0xff]
      %v1591 = vld [vmem:[#allocation4 + $0x68] sm:$0xf]
      %v1592 = vld [vmem:[#allocation4 + $0x6c] sm:$0xff]
      %v1593 = vld [vmem:[#allocation4 + $0x74] sm:$0xf]
      %v1594 = vld [vmem:[#allocation4 + $0x78] sm:$0xff]
      %v1595 = vld [vmem:[#allocation4 + $0x80] sm:$0xf]
      %v1596 = vld [vmem:[#allocation4 + $0x84] sm:$0xff]
      %v1597 = vld [vmem:[#allocation4 + $0x8c] sm:$0xf]
      %v1598 = vld [vmem:[#allocation4 + $0x90] sm:$0xff]
      %v1599 = vld [vmem:[#allocation4 + $0x98] sm:$0xf]
      %v1600 = vld [vmem:[#allocation4 + $0x9c] sm:$0xff]
      %v1601 = vld [vmem:[#allocation4 + $0xa4] sm:$0xf]
      %v1602 = vld [vmem:[#allocation4 + $0xa8] sm:$0xff]
      %v1603 = vld [vmem:[#allocation4 + $0xb0] sm:$0xf]
      %v1604 = vld [vmem:[#allocation4 + $0xb4] sm:$0xff]
      %v1605 = vld [vmem:[#allocation4 + $0xbc] sm:$0xf]
      %v1606 = vld [vmem:[#allocation4 + $0xc0] sm:$0xff]
      %v1607 = vld [vmem:[#allocation4 + $0xc8] sm:$0xf]
      %v1608 = vld [vmem:[#allocation4 + $0xcc] sm:$0xff]
      %v1609 = vld [vmem:[#allocation4 + $0xd4] sm:$0xf]
      %v1610 = vld [vmem:[#allocation4 + $0xd8] sm:$0xff]
      %v1611 = vld [vmem:[#allocation4 + $0xe0] sm:$0xf]
      %v1612 = vld [vmem:[#allocation4 + $0xe4] sm:$0xff]
      %v1613 = vld [vmem:[#allocation4 + $0xec] sm:$0xf]
      %v1614 = vld [vmem:[%s5] sm:$0xf]
      %v1615 = vld [vmem:[%s5 + $0x4] sm:$0xf]
      %v1616 = vld [vmem:[%s5 + $0x8] sm:$0xf]
      %v1617 = vld [vmem:[%s5 + $0xc] sm:$0xf]
      %v1618 = vld [vmem:[%s5 + $0x10] sm:$0xf]
      %v1619 = vld [vmem:[%s5 + $0x14] sm:$0xf]
      %v1620 = vld [vmem:[%s5 + $0x18] sm:$0xf]
      %v1621 = vld [vmem:[%s5 + $0x1c] sm:$0xf]
      %v1622 = vld [vmem:[%s5 + $0x20] sm:$0xf]
      %v1623 = vld [vmem:[%s5 + $0x24] sm:$0xf]
      %v1624 = vld [vmem:[%s5 + $0x28] sm:$0xf]
      %v1625 = vld [vmem:[%s5 + $0x2c] sm:$0xf]
      %v1626 = vld [vmem:[%s5 + $0x30] sm:$0xf]
      %v1627 = vld [vmem:[%s5 + $0x34] sm:$0xf]
      %v1628 = vld [vmem:[%s5 + $0x38] sm:$0xf]
      %v1629 = vld [vmem:[%s5 + $0x3c] sm:$0xf]
      %v1630 = vld [vmem:[%s5 + $0x40] sm:$0xf]
      %v1631 = vld [vmem:[%s5 + $0x44] sm:$0xf]
      %v1632 = vld [vmem:[%s5 + $0x48] sm:$0xf]
      %v1633 = vld [vmem:[%s5 + $0x4c] sm:$0xf]
      %v1634 = vld [vmem:[%s5 + $0x50] sm:$0xf]
      %v1635 = vld [vmem:[%s5 + $0x54] sm:$0xf]
      %v1636 = vld [vmem:[%s5 + $0x58] sm:$0xf]
      %v1637 = vld [vmem:[%s5 + $0x5c] sm:$0xf]
      %v1638 = vld [vmem:[%s5 + $0x60] sm:$0xf]
      %v1639 = vld [vmem:[%s5 + $0x64] sm:$0xf]
      %v1640 = vld [vmem:[%s5 + $0x68] sm:$0xf]
      %v1641 = vld [vmem:[%s5 + $0x6c] sm:$0xf]
      %v1642 = vld [vmem:[%s5 + $0x70] sm:$0xf]
      %v1643 = vld [vmem:[%s5 + $0x74] sm:$0xf]
      %v1644 = vld [vmem:[%s5 + $0x78] sm:$0xf]
      %v1645 = vld [vmem:[%s5 + $0x7c] sm:$0xf]
      %v1646 = vld [vmem:[%s5 + $0x80] sm:$0xf]
      %v1647 = vld [vmem:[%s5 + $0x84] sm:$0xf]
      %v1648 = vld [vmem:[%s5 + $0x88] sm:$0xf]
      %v1649 = vld [vmem:[%s5 + $0x8c] sm:$0xf]
      %v1650 = vld [vmem:[%s5 + $0x90] sm:$0xf]
      %v1651 = vld [vmem:[%s5 + $0x94] sm:$0xf]
      %v1652 = vld [vmem:[%s5 + $0x98] sm:$0xf]
      %v1653 = vld [vmem:[%s5 + $0x9c] sm:$0xf]
      %v1654 = vld [vmem:[%s5 + $0xa0] sm:$0xf]
      %v1655 = vld [vmem:[%s5 + $0xa4] sm:$0xf]
      %v1656 = vld [vmem:[%s5 + $0xa8] sm:$0xf]
      %v1657 = vld [vmem:[%s5 + $0xac] sm:$0xf]
      %v1658 = vld [vmem:[%s5 + $0xb0] sm:$0xf]
      %v1659 = vld [vmem:[%s5 + $0xb4] sm:$0xf]
      %v1660 = vld [vmem:[%s5 + $0xb8] sm:$0xf]
      %v1661 = vld [vmem:[%s5 + $0xbc] sm:$0xf]
      %v1662 = vld [vmem:[#allocation4 + $0xf0] sm:$0xff]
      %v1663 = vld [vmem:[#allocation4 + $0xf8] sm:$0xf]
      %v1664 = vld [vmem:[#allocation4 + $0xfc] sm:$0xff]
      %v1665 = vld [vmem:[#allocation4 + $0x104] sm:$0xf]
      %s1666 = scalar_lea.vmem %s5, 192
      %v1667 = vld [vmem:[%s1666] sm:$0xf]
      %v1668 = vld [vmem:[%s1666 + $0x4] sm:$0xf]
      %v1669 = vld [vmem:[%s1666 + $0x8] sm:$0xf]
      %v1670 = vld [vmem:[%s1666 + $0xc] sm:$0xf]
      %v1671 = vld [vmem:[%s1666 + $0x10] sm:$0xf]
      %v1672 = vld [vmem:[%s1666 + $0x14] sm:$0xf]
      %v1673 = vld [vmem:[%s1666 + $0x18] sm:$0xf]
      %v1674 = vld [vmem:[%s1666 + $0x1c] sm:$0xf]
      %v1675 = vld [vmem:[%s1666 + $0x20] sm:$0xf]
      %v1676 = vld [vmem:[%s1666 + $0x24] sm:$0xf]
      %v1677 = vld [vmem:[%s1666 + $0x28] sm:$0xf]
      %v1678 = vld [vmem:[%s1666 + $0x2c] sm:$0xf]
      %v1679 = vld [vmem:[%s1666 + $0x30] sm:$0xf]
      %v1680 = vld [vmem:[%s1666 + $0x34] sm:$0xf]
      %v1681 = vld [vmem:[%s1666 + $0x38] sm:$0xf]
      %v1682 = vld [vmem:[%s1666 + $0x3c] sm:$0xf]
      %v1683 = vld [vmem:[%s1666 + $0x40] sm:$0xf]
      %v1684 = vld [vmem:[%s1666 + $0x44] sm:$0xf]
      %v1685 = vld [vmem:[%s1666 + $0x48] sm:$0xf]
      %v1686 = vld [vmem:[%s1666 + $0x4c] sm:$0xf]
      %v1687 = vld [vmem:[%s1666 + $0x50] sm:$0xf]
      %v1688 = vld [vmem:[%s1666 + $0x54] sm:$0xf]
      %v1689 = vld [vmem:[%s1666 + $0x58] sm:$0xf]
      %v1690 = vld [vmem:[%s1666 + $0x5c] sm:$0xf]
      %v1691 = vld [vmem:[%s1666 + $0x60] sm:$0xf]
      %v1692 = vld [vmem:[%s1666 + $0x64] sm:$0xf]
      %v1693 = vld [vmem:[%s1666 + $0x68] sm:$0xf]
      %v1694 = vld [vmem:[%s1666 + $0x6c] sm:$0xf]
      %v1695 = vld [vmem:[%s1666 + $0x70] sm:$0xf]
      %v1696 = vld [vmem:[%s1666 + $0x74] sm:$0xf]
      %v1697 = vld [vmem:[%s1666 + $0x78] sm:$0xf]
      %v1698 = vld [vmem:[%s1666 + $0x7c] sm:$0xf]
      %v1699 = vld [vmem:[%s1666 + $0x80] sm:$0xf]
      %v1700 = vld [vmem:[%s1666 + $0x84] sm:$0xf]
      %v1701 = vld [vmem:[%s1666 + $0x88] sm:$0xf]
      %v1702 = vld [vmem:[%s1666 + $0x8c] sm:$0xf]
      %v1703 = vld [vmem:[%s1666 + $0x90] sm:$0xf]
      %v1704 = vld [vmem:[%s1666 + $0x94] sm:$0xf]
      %v1705 = vld [vmem:[%s1666 + $0x98] sm:$0xf]
      %v1706 = vld [vmem:[%s1666 + $0x9c] sm:$0xf]
      %v1707 = vld [vmem:[%s1666 + $0xa0] sm:$0xf]
      %v1708 = vld [vmem:[%s1666 + $0xa4] sm:$0xf]
      %v1709 = vld [vmem:[%s1666 + $0xa8] sm:$0xf]
      %v1710 = vld [vmem:[%s1666 + $0xac] sm:$0xf]
      %v1711 = vld [vmem:[%s1666 + $0xb0] sm:$0xf]
      %v1712 = vld [vmem:[%s1666 + $0xb4] sm:$0xf]
      %v1713 = vld [vmem:[%s1666 + $0xb8] sm:$0xf]
      %v1714 = vld [vmem:[%s1666 + $0xbc] sm:$0xf]
      %v1755 = vunpack.c.l.b16 %v1578
      %v1756 = vunpack.c.h.b16 %v1578
      %v1757 = vunpack.c.l.b16 %v1579
      %v1758 = vunpack.c.l.b16 %v1580
      %v1759 = vunpack.c.h.b16 %v1580
      %v1760 = vunpack.c.l.b16 %v1581
      %v1761 = vunpack.c.l.b16 %v1582
      %v1762 = vunpack.c.h.b16 %v1582
      %v1763 = vunpack.c.l.b16 %v1583
      %v1764 = vunpack.c.l.b16 %v1584
      %v1765 = vunpack.c.h.b16 %v1584
      %v1766 = vunpack.c.l.b16 %v1585
      %v1767 = vunpack.c.l.b16 %v1586
      %v1768 = vunpack.c.h.b16 %v1586
      %v1769 = vunpack.c.l.b16 %v1587
      %v1770 = vunpack.c.l.b16 %v1588
      %v1771 = vunpack.c.h.b16 %v1588
      %v1772 = vunpack.c.l.b16 %v1589
      %v1773 = vunpack.c.l.b16 %v1590
      %v1774 = vunpack.c.h.b16 %v1590
      %v1775 = vunpack.c.l.b16 %v1591
      %v1776 = vunpack.c.l.b16 %v1592
      %v1777 = vunpack.c.h.b16 %v1592
      %v1778 = vunpack.c.l.b16 %v1593
      %v1779 = vunpack.c.l.b16 %v1594
      %v1780 = vunpack.c.h.b16 %v1594
      %v1781 = vunpack.c.l.b16 %v1595
      %v1782 = vunpack.c.l.b16 %v1596
      %v1783 = vunpack.c.h.b16 %v1596
      %v1784 = vunpack.c.l.b16 %v1597
      %v1785 = vunpack.c.l.b16 %v1598
      %v1786 = vunpack.c.h.b16 %v1598
      %v1787 = vunpack.c.l.b16 %v1599
      %v1788 = vunpack.c.l.b16 %v1600
      %v1789 = vunpack.c.h.b16 %v1600
      %v1790 = vunpack.c.l.b16 %v1601
      %v1791 = vunpack.c.l.b16 %v1602
      %v1792 = vunpack.c.h.b16 %v1602
      %v1793 = vunpack.c.l.b16 %v1603
      %v1794 = vunpack.c.l.b16 %v1604
      %v1795 = vunpack.c.h.b16 %v1604
      %v1796 = vunpack.c.l.b16 %v1605
      %v1797 = vunpack.c.l.b16 %v1606
      %v1798 = vunpack.c.h.b16 %v1606
      %v1799 = vunpack.c.l.b16 %v1607
      %v1800 = vunpack.c.l.b16 %v1608
      %v1801 = vunpack.c.h.b16 %v1608
      %v1802 = vunpack.c.l.b16 %v1609
      %v1803 = vunpack.c.l.b16 %v1610
      %v1804 = vunpack.c.h.b16 %v1610
      %v1805 = vunpack.c.l.b16 %v1611
      %v1806 = vunpack.c.l.b16 %v1612
      %v1807 = vunpack.c.h.b16 %v1612
      %v1808 = vunpack.c.l.b16 %v1613
      %v1809 = vunpack.c.l.b16 %v1662
      %v1810 = vunpack.c.h.b16 %v1662
      %v1811 = vunpack.c.l.b16 %v1663
      %v1812 = vunpack.c.l.b16 %v1664
      %v1813 = vunpack.c.h.b16 %v1664
      %v1814 = vunpack.c.l.b16 %v1665
      %v1815 = vpack.c.b16 %v1758, %v1755
      %v1816 = vpack.c.b16 %v1759, %v1756
      %v1817 = vpack.c.b16 %v1760, %v1757
      %v1818 = vpack.c.b16 %v1764, %v1761
      %v1819 = vpack.c.b16 %v1765, %v1762
      %v1820 = vpack.c.b16 %v1766, %v1763
      %v1821 = vpack.c.b16 %v1770, %v1767
      %v1822 = vpack.c.b16 %v1771, %v1768
      %v1823 = vpack.c.b16 %v1772, %v1769
      %v1824 = vpack.c.b16 %v1776, %v1773
      %v1825 = vpack.c.b16 %v1777, %v1774
      %v1826 = vpack.c.b16 %v1778, %v1775
      %v1827 = vpack.c.b16 %v1782, %v1779
      %v1828 = vpack.c.b16 %v1783, %v1780
      %v1829 = vpack.c.b16 %v1784, %v1781
      %v1830 = vpack.c.b16 %v1788, %v1785
      %v1831 = vpack.c.b16 %v1789, %v1786
      %v1832 = vpack.c.b16 %v1790, %v1787
      %v1833 = vpack.c.b16 %v1794, %v1791
      %v1834 = vpack.c.b16 %v1795, %v1792
      %v1835 = vpack.c.b16 %v1796, %v1793
      %v1836 = vpack.c.b16 %v1800, %v1797
      %v1837 = vpack.c.b16 %v1801, %v1798
      %v1838 = vpack.c.b16 %v1802, %v1799
      %v1839 = vpack.c.b16 %v1806, %v1803
      %v1840 = vpack.c.b16 %v1807, %v1804
      %v1841 = vpack.c.b16 %v1808, %v1805
      %v1842 = vpack.c.b16 %v1812, %v1809
      %v1843 = vpack.c.b16 %v1813, %v1810
      %v1844 = vpack.c.b16 %v1814, %v1811
      %v1923 = vunpack.c.l.b16 %v1667
      %v1924 = vunpack.c.l.b16 %v1668
      %v1925 = vunpack.c.l.b16 %v1669
      %v1926 = vunpack.c.l.b16 %v1670
      %v1927 = vunpack.c.l.b16 %v1671
      %v1928 = vunpack.c.l.b16 %v1672
      %v1929 = vunpack.c.l.b16 %v1673
      %v1930 = vunpack.c.l.b16 %v1674
      %v1931 = vunpack.c.l.b16 %v1675
      %v1932 = vunpack.c.l.b16 %v1676
      %v1933 = vunpack.c.l.b16 %v1677
      %v1934 = vunpack.c.l.b16 %v1678
      %v1935 = vunpack.c.l.b16 %v1679
      %v1936 = vunpack.c.l.b16 %v1680
      %v1937 = vunpack.c.l.b16 %v1681
      %v1938 = vunpack.c.l.b16 %v1682
      %v1939 = vunpack.c.l.b16 %v1683
      %v1940 = vunpack.c.l.b16 %v1684
      %v1941 = vunpack.c.l.b16 %v1685
      %v1942 = vunpack.c.l.b16 %v1686
      %v1943 = vunpack.c.l.b16 %v1687
      %v1944 = vunpack.c.l.b16 %v1688
      %v1945 = vunpack.c.l.b16 %v1689
      %v1946 = vunpack.c.l.b16 %v1690
      %v1947 = vunpack.c.l.b16 %v1691
      %v1948 = vunpack.c.l.b16 %v1692
      %v1949 = vunpack.c.l.b16 %v1693
      %v1950 = vunpack.c.l.b16 %v1694
      %v1951 = vunpack.c.l.b16 %v1695
      %v1952 = vunpack.c.l.b16 %v1696
      %v1953 = vunpack.c.l.b16 %v1697
      %v1954 = vunpack.c.l.b16 %v1698
      %v1955 = vunpack.c.l.b16 %v1699
      %v1956 = vunpack.c.l.b16 %v1700
      %v1957 = vunpack.c.l.b16 %v1701
      %v1958 = vunpack.c.l.b16 %v1702
      %v1959 = vunpack.c.l.b16 %v1703
      %v1960 = vunpack.c.l.b16 %v1704
      %v1961 = vunpack.c.l.b16 %v1705
      %v1962 = vunpack.c.l.b16 %v1706
      %v1963 = vunpack.c.l.b16 %v1707
      %v1964 = vunpack.c.l.b16 %v1708
      %v1965 = vunpack.c.l.b16 %v1709
      %v1966 = vunpack.c.l.b16 %v1710
      %v1967 = vunpack.c.l.b16 %v1711
      %v1968 = vunpack.c.l.b16 %v1712
      %v1969 = vunpack.c.l.b16 %v1713
      %v1970 = vunpack.c.l.b16 %v1714
      %v1971 = vpack.c.b16 %v1924, %v1923
      %v1972 = vpack.c.b16 %v1926, %v1925
      %v1973 = vpack.c.b16 %v1928, %v1927
      %v1974 = vpack.c.b16 %v1930, %v1929
      %v1975 = vpack.c.b16 %v1932, %v1931
      %v1976 = vpack.c.b16 %v1934, %v1933
      %v1977 = vpack.c.b16 %v1936, %v1935
      %v1978 = vpack.c.b16 %v1938, %v1937
      %v1979 = vpack.c.b16 %v1940, %v1939
      %v1980 = vpack.c.b16 %v1942, %v1941
      %v1981 = vpack.c.b16 %v1944, %v1943
      %v1982 = vpack.c.b16 %v1946, %v1945
      %v1983 = vpack.c.b16 %v1948, %v1947
      %v1984 = vpack.c.b16 %v1950, %v1949
      %v1985 = vpack.c.b16 %v1952, %v1951
      %v1986 = vpack.c.b16 %v1954, %v1953
      %v1987 = vpack.c.b16 %v1956, %v1955
      %v1988 = vpack.c.b16 %v1958, %v1957
      %v1989 = vpack.c.b16 %v1960, %v1959
      %v1990 = vpack.c.b16 %v1962, %v1961
      %v1991 = vpack.c.b16 %v1964, %v1963
      %v1992 = vpack.c.b16 %v1966, %v1965
      %v1993 = vpack.c.b16 %v1968, %v1967
      %v1994 = vpack.c.b16 %v1970, %v1969
      %2019 = vmatpush.bf16.msra.mxu0 %v1978
      %2020 = vmatpush.bf16.msra.mxu0 %v1977
      %2021 = vmatpush.bf16.msra.mxu0 %v1976
      %2022 = vmatpush.bf16.msra.mxu0 %v1975
      %2023 = vmatpush.bf16.msra.mxu0 %v1974
      %2024 = vmatpush.bf16.msra.mxu0 %v1973
      %2025 = vmatpush.bf16.msra.mxu0 %v1972
      %2026 = vmatpush.bf16.msra.mxu0 %v1971
      %2027 = vmatmul.bf16.gmra.mxu0 %v1815
      %v2028 = vpop.f32.mrf.mxu0
      %v2029 = vadd.f32 0.0, %v2028
      %v2030 = vpop.f32.mrf.mxu0
      %v2031 = vadd.f32 0.0, %v2030
      %2032 = vmatmul.bf16.gmra.mxu0 %v1818
      %v2033 = vpop.f32.mrf.mxu0
      %v2034 = vadd.f32 0.0, %v2033
      %v2035 = vpop.f32.mrf.mxu0
      %v2036 = vadd.f32 0.0, %v2035
      %2037 = vmatmul.bf16.gmra.mxu0 %v1821
      %v2038 = vpop.f32.mrf.mxu0
      %v2039 = vadd.f32 0.0, %v2038
      %v2040 = vpop.f32.mrf.mxu0
      %v2041 = vadd.f32 0.0, %v2040
      %2042 = vmatmul.bf16.gmra.mxu0 %v1824
      %v2043 = vpop.f32.mrf.mxu0
      %v2044 = vadd.f32 0.0, %v2043
      %v2045 = vpop.f32.mrf.mxu0
      %v2046 = vadd.f32 0.0, %v2045
      %2047 = vmatmul.bf16.gmra.mxu0 %v1827
      %v2048 = vpop.f32.mrf.mxu0
      %v2049 = vadd.f32 0.0, %v2048
      %v2050 = vpop.f32.mrf.mxu0
      %v2051 = vadd.f32 0.0, %v2050
      %2052 = vmatmul.bf16.gmra.mxu0 %v1830
      %v2053 = vpop.f32.mrf.mxu0
      %v2054 = vadd.f32 0.0, %v2053
      %v2055 = vpop.f32.mrf.mxu0
      %v2056 = vadd.f32 0.0, %v2055
      %2057 = vmatmul.bf16.gmra.mxu0 %v1833
      %v2058 = vpop.f32.mrf.mxu0
      %v2059 = vadd.f32 0.0, %v2058
      %v2060 = vpop.f32.mrf.mxu0
      %v2061 = vadd.f32 0.0, %v2060
      %2062 = vmatmul.bf16.gmra.mxu0 %v1836
      %v2063 = vpop.f32.mrf.mxu0
      %v2064 = vadd.f32 0.0, %v2063
      %v2065 = vpop.f32.mrf.mxu0
      %v2066 = vadd.f32 0.0, %v2065
      %2067 = vmatmul.bf16.gmra.mxu0 %v1839
      %v2068 = vpop.f32.mrf.mxu0
      %v2069 = vadd.f32 0.0, %v2068
      %v2070 = vpop.f32.mrf.mxu0
      %v2071 = vadd.f32 0.0, %v2070
      %2072 = vmatmul.bf16.gmra.mxu0 %v1842
      %v2073 = vpop.f32.mrf.mxu0
      %v2074 = vadd.f32 0.0, %v2073
      %v2075 = vpop.f32.mrf.mxu0
      %v2076 = vadd.f32 0.0, %v2075
      %2077 = vdwg.mxu0
      %2078 = vmatpush.bf16.msra.mxu0 %v1986
      %2079 = vmatpush.bf16.msra.mxu0 %v1985
      %2080 = vmatpush.bf16.msra.mxu0 %v1984
      %2081 = vmatpush.bf16.msra.mxu0 %v1983
      %2082 = vmatpush.bf16.msra.mxu0 %v1982
      %2083 = vmatpush.bf16.msra.mxu0 %v1981
      %2084 = vmatpush.bf16.msra.mxu0 %v1980
      %2085 = vmatpush.bf16.msra.mxu0 %v1979
      %2086 = vmatmul.bf16.gmra.mxu0 %v1816
      %v2087 = vpop.f32.mrf.mxu0
      %v2088 = vadd.f32 %v2029, %v2087
      %v2089 = vpop.f32.mrf.mxu0
      %v2090 = vadd.f32 %v2031, %v2089
      %2091 = vmatmul.bf16.gmra.mxu0 %v1819
      %v2092 = vpop.f32.mrf.mxu0
      %v2093 = vadd.f32 %v2034, %v2092
      %v2094 = vpop.f32.mrf.mxu0
      %v2095 = vadd.f32 %v2036, %v2094
      %2096 = vmatmul.bf16.gmra.mxu0 %v1822
      %v2097 = vpop.f32.mrf.mxu0
      %v2098 = vadd.f32 %v2039, %v2097
      %v2099 = vpop.f32.mrf.mxu0
      %v2100 = vadd.f32 %v2041, %v2099
      %2101 = vmatmul.bf16.gmra.mxu0 %v1825
      %v2102 = vpop.f32.mrf.mxu0
      %v2103 = vadd.f32 %v2044, %v2102
      %v2104 = vpop.f32.mrf.mxu0
      %v2105 = vadd.f32 %v2046, %v2104
      %2106 = vmatmul.bf16.gmra.mxu0 %v1828
      %v2107 = vpop.f32.mrf.mxu0
      %v2108 = vadd.f32 %v2049, %v2107
      %v2109 = vpop.f32.mrf.mxu0
      %v2110 = vadd.f32 %v2051, %v2109
      %2111 = vmatmul.bf16.gmra.mxu0 %v1831
      %v2112 = vpop.f32.mrf.mxu0
      %v2113 = vadd.f32 %v2054, %v2112
      %v2114 = vpop.f32.mrf.mxu0
      %v2115 = vadd.f32 %v2056, %v2114
      %2116 = vmatmul.bf16.gmra.mxu0 %v1834
      %v2117 = vpop.f32.mrf.mxu0
      %v2118 = vadd.f32 %v2059, %v2117
      %v2119 = vpop.f32.mrf.mxu0
      %v2120 = vadd.f32 %v2061, %v2119
      %2121 = vmatmul.bf16.gmra.mxu0 %v1837
      %v2122 = vpop.f32.mrf.mxu0
      %v2123 = vadd.f32 %v2064, %v2122
      %v2124 = vpop.f32.mrf.mxu0
      %v2125 = vadd.f32 %v2066, %v2124
      %2126 = vmatmul.bf16.gmra.mxu0 %v1840
      %v2127 = vpop.f32.mrf.mxu0
      %v2128 = vadd.f32 %v2069, %v2127
      %v2129 = vpop.f32.mrf.mxu0
      %v2130 = vadd.f32 %v2071, %v2129
      %2131 = vmatmul.bf16.gmra.mxu0 %v1843
      %v2132 = vpop.f32.mrf.mxu0
      %v2133 = vadd.f32 %v2074, %v2132
      %v2134 = vpop.f32.mrf.mxu0
      %v2135 = vadd.f32 %v2076, %v2134
      %2136 = vdwg.mxu0
      %2137 = vmatpush.bf16.msra.mxu0 %v1994
      %2138 = vmatpush.bf16.msra.mxu0 %v1993
      %2139 = vmatpush.bf16.msra.mxu0 %v1992
      %2140 = vmatpush.bf16.msra.mxu0 %v1991
      %2141 = vmatpush.bf16.msra.mxu0 %v1990
      %2142 = vmatpush.bf16.msra.mxu0 %v1989
      %2143 = vmatpush.bf16.msra.mxu0 %v1988
      %2144 = vmatpush.bf16.msra.mxu0 %v1987
      %2145 = vmatmul.bf16.gmra.mxu0 %v1817
      %v2146 = vpop.f32.mrf.mxu0
      %v2147 = vadd.f32 %v2088, %v2146
      %v2148 = vpop.f32.mrf.mxu0
      %v2149 = vadd.f32 %v2090, %v2148
      %2150 = vmatmul.bf16.gmra.mxu0 %v1820
      %v2151 = vpop.f32.mrf.mxu0
      %v2152 = vadd.f32 %v2093, %v2151
      %v2153 = vpop.f32.mrf.mxu0
      %v2154 = vadd.f32 %v2095, %v2153
      %2155 = vmatmul.bf16.gmra.mxu0 %v1823
      %v2156 = vpop.f32.mrf.mxu0
      %v2157 = vadd.f32 %v2098, %v2156
      %v2158 = vpop.f32.mrf.mxu0
      %v2159 = vadd.f32 %v2100, %v2158
      %2160 = vmatmul.bf16.gmra.mxu0 %v1826
      %v2161 = vpop.f32.mrf.mxu0
      %v2162 = vadd.f32 %v2103, %v2161
      %v2163 = vpop.f32.mrf.mxu0
      %v2164 = vadd.f32 %v2105, %v2163
      %2165 = vmatmul.bf16.gmra.mxu0 %v1829
      %v2166 = vpop.f32.mrf.mxu0
      %v2167 = vadd.f32 %v2108, %v2166
      %v2168 = vpop.f32.mrf.mxu0
      %v2169 = vadd.f32 %v2110, %v2168
      %2170 = vmatmul.bf16.gmra.mxu0 %v1832
      %v2171 = vpop.f32.mrf.mxu0
      %v2172 = vadd.f32 %v2113, %v2171
      %v2173 = vpop.f32.mrf.mxu0
      %v2174 = vadd.f32 %v2115, %v2173
      %2175 = vmatmul.bf16.gmra.mxu0 %v1835
      %v2176 = vpop.f32.mrf.mxu0
      %v2177 = vadd.f32 %v2118, %v2176
      %v2178 = vpop.f32.mrf.mxu0
      %v2179 = vadd.f32 %v2120, %v2178
      %2180 = vmatmul.bf16.gmra.mxu0 %v1838
      %v2181 = vpop.f32.mrf.mxu0
      %v2182 = vadd.f32 %v2123, %v2181
      %v2183 = vpop.f32.mrf.mxu0
      %v2184 = vadd.f32 %v2125, %v2183
      %2185 = vmatmul.bf16.gmra.mxu0 %v1841
      %v2186 = vpop.f32.mrf.mxu0
      %v2187 = vadd.f32 %v2128, %v2186
      %v2188 = vpop.f32.mrf.mxu0
      %v2189 = vadd.f32 %v2130, %v2188
      %2190 = vmatmul.bf16.gmra.mxu0 %v1844
      %v2191 = vpop.f32.mrf.mxu0
      %v2192 = vadd.f32 %v2133, %v2191
      %v2193 = vpop.f32.mrf.mxu0
      %v2194 = vadd.f32 %v2135, %v2193
      %2195 = vdwg.mxu0
      %v2200 = vunpack.c.l.b16 %v1574
      %v2201 = vunpack.c.h.b16 %v1574
      %v2202 = vunpack.c.l.b16 %v1575
      %v2203 = vunpack.c.l.b16 %v1576
      %v2204 = vunpack.c.h.b16 %v1576
      %v2205 = vunpack.c.l.b16 %v1577
      %v2206 = vpack.c.b16 %v2203, %v2200
      %v2207 = vpack.c.b16 %v2204, %v2201
      %v2208 = vpack.c.b16 %v2205, %v2202
      %v2260 = vunpack.c.l.b16 %v1614
      %v2261 = vunpack.c.l.b16 %v1615
      %v2262 = vunpack.c.l.b16 %v1616
      %v2263 = vunpack.c.l.b16 %v1617
      %v2264 = vunpack.c.l.b16 %v1618
      %v2265 = vunpack.c.l.b16 %v1619
      %v2266 = vunpack.c.l.b16 %v1620
      %v2267 = vunpack.c.l.b16 %v1621
      %v2268 = vunpack.c.l.b16 %v1622
      %v2269 = vunpack.c.l.b16 %v1623
      %v2270 = vunpack.c.l.b16 %v1624
      %v2271 = vunpack.c.l.b16 %v1625
      %v2272 = vunpack.c.l.b16 %v1626
      %v2273 = vunpack.c.l.b16 %v1627
      %v2274 = vunpack.c.l.b16 %v1628
      %v2275 = vunpack.c.l.b16 %v1629
      %v2276 = vunpack.c.l.b16 %v1630
      %v2277 = vunpack.c.l.b16 %v1631
      %v2278 = vunpack.c.l.b16 %v1632
      %v2279 = vunpack.c.l.b16 %v1633
      %v2280 = vunpack.c.l.b16 %v1634
      %v2281 = vunpack.c.l.b16 %v1635
      %v2282 = vunpack.c.l.b16 %v1636
      %v2283 = vunpack.c.l.b16 %v1637
      %v2284 = vunpack.c.l.b16 %v1638
      %v2285 = vunpack.c.l.b16 %v1639
      %v2286 = vunpack.c.l.b16 %v1640
      %v2287 = vunpack.c.l.b16 %v1641
      %v2288 = vunpack.c.l.b16 %v1642
      %v2289 = vunpack.c.l.b16 %v1643
      %v2290 = vunpack.c.l.b16 %v1644
      %v2291 = vunpack.c.l.b16 %v1645
      %v2292 = vunpack.c.l.b16 %v1646
      %v2293 = vunpack.c.l.b16 %v1647
      %v2294 = vunpack.c.l.b16 %v1648
      %v2295 = vunpack.c.l.b16 %v1649
      %v2296 = vunpack.c.l.b16 %v1650
      %v2297 = vunpack.c.l.b16 %v1651
      %v2298 = vunpack.c.l.b16 %v1652
      %v2299 = vunpack.c.l.b16 %v1653
      %v2300 = vunpack.c.l.b16 %v1654
      %v2301 = vunpack.c.l.b16 %v1655
      %v2302 = vunpack.c.l.b16 %v1656
      %v2303 = vunpack.c.l.b16 %v1657
      %v2304 = vunpack.c.l.b16 %v1658
      %v2305 = vunpack.c.l.b16 %v1659
      %v2306 = vunpack.c.l.b16 %v1660
      %v2307 = vunpack.c.l.b16 %v1661
      %v2308 = vpack.c.b16 %v2261, %v2260
      %v2309 = vpack.c.b16 %v2263, %v2262
      %v2310 = vpack.c.b16 %v2265, %v2264
      %v2311 = vpack.c.b16 %v2267, %v2266
      %v2312 = vpack.c.b16 %v2269, %v2268
      %v2313 = vpack.c.b16 %v2271, %v2270
      %v2314 = vpack.c.b16 %v2273, %v2272
      %v2315 = vpack.c.b16 %v2275, %v2274
      %v2316 = vpack.c.b16 %v2277, %v2276
      %v2317 = vpack.c.b16 %v2279, %v2278
      %v2318 = vpack.c.b16 %v2281, %v2280
      %v2319 = vpack.c.b16 %v2283, %v2282
      %v2320 = vpack.c.b16 %v2285, %v2284
      %v2321 = vpack.c.b16 %v2287, %v2286
      %v2322 = vpack.c.b16 %v2289, %v2288
      %v2323 = vpack.c.b16 %v2291, %v2290
      %v2324 = vpack.c.b16 %v2293, %v2292
      %v2325 = vpack.c.b16 %v2295, %v2294
      %v2326 = vpack.c.b16 %v2297, %v2296
      %v2327 = vpack.c.b16 %v2299, %v2298
      %v2328 = vpack.c.b16 %v2301, %v2300
      %v2329 = vpack.c.b16 %v2303, %v2302
      %v2330 = vpack.c.b16 %v2305, %v2304
      %v2331 = vpack.c.b16 %v2307, %v2306
      %2356 = vmatpush.bf16.msra.mxu0 %v2315
      %2357 = vmatpush.bf16.msra.mxu0 %v2314
      %2358 = vmatpush.bf16.msra.mxu0 %v2313
      %2359 = vmatpush.bf16.msra.mxu0 %v2312
      %2360 = vmatpush.bf16.msra.mxu0 %v2311
      %2361 = vmatpush.bf16.msra.mxu0 %v2310
      %2362 = vmatpush.bf16.msra.mxu0 %v2309
      %2363 = vmatpush.bf16.msra.mxu0 %v2308
      %2364 = vmatmul.bf16.gmra.mxu0 %v2206
      %v2365 = vpop.f32.mrf.mxu0
      %v2366 = vadd.f32 %v2147, %v2365
      %v2367 = vpop.f32.mrf.mxu0
      %v2368 = vadd.f32 %v2149, %v2367
      %2369 = vmatmul.bf16.gmra.mxu0 %v1815
      %v2370 = vpop.f32.mrf.mxu0
      %v2371 = vadd.f32 %v2152, %v2370
      %v2372 = vpop.f32.mrf.mxu0
      %v2373 = vadd.f32 %v2154, %v2372
      %2374 = vmatmul.bf16.gmra.mxu0 %v1818
      %v2375 = vpop.f32.mrf.mxu0
      %v2376 = vadd.f32 %v2157, %v2375
      %v2377 = vpop.f32.mrf.mxu0
      %v2378 = vadd.f32 %v2159, %v2377
      %2379 = vmatmul.bf16.gmra.mxu0 %v1821
      %v2380 = vpop.f32.mrf.mxu0
      %v2381 = vadd.f32 %v2162, %v2380
      %v2382 = vpop.f32.mrf.mxu0
      %v2383 = vadd.f32 %v2164, %v2382
      %2384 = vmatmul.bf16.gmra.mxu0 %v1824
      %v2385 = vpop.f32.mrf.mxu0
      %v2386 = vadd.f32 %v2167, %v2385
      %v2387 = vpop.f32.mrf.mxu0
      %v2388 = vadd.f32 %v2169, %v2387
      %2389 = vmatmul.bf16.gmra.mxu0 %v1827
      %v2390 = vpop.f32.mrf.mxu0
      %v2391 = vadd.f32 %v2172, %v2390
      %v2392 = vpop.f32.mrf.mxu0
      %v2393 = vadd.f32 %v2174, %v2392
      %2394 = vmatmul.bf16.gmra.mxu0 %v1830
      %v2395 = vpop.f32.mrf.mxu0
      %v2396 = vadd.f32 %v2177, %v2395
      %v2397 = vpop.f32.mrf.mxu0
      %v2398 = vadd.f32 %v2179, %v2397
      %2399 = vmatmul.bf16.gmra.mxu0 %v1833
      %v2400 = vpop.f32.mrf.mxu0
      %v2401 = vadd.f32 %v2182, %v2400
      %v2402 = vpop.f32.mrf.mxu0
      %v2403 = vadd.f32 %v2184, %v2402
      %2404 = vmatmul.bf16.gmra.mxu0 %v1836
      %v2405 = vpop.f32.mrf.mxu0
      %v2406 = vadd.f32 %v2187, %v2405
      %v2407 = vpop.f32.mrf.mxu0
      %v2408 = vadd.f32 %v2189, %v2407
      %2409 = vmatmul.bf16.gmra.mxu0 %v1839
      %v2410 = vpop.f32.mrf.mxu0
      %v2411 = vadd.f32 %v2192, %v2410
      %v2412 = vpop.f32.mrf.mxu0
      %v2413 = vadd.f32 %v2194, %v2412
      %2414 = vdwg.mxu0
      %2415 = vmatpush.bf16.msra.mxu0 %v2323
      %2416 = vmatpush.bf16.msra.mxu0 %v2322
      %2417 = vmatpush.bf16.msra.mxu0 %v2321
      %2418 = vmatpush.bf16.msra.mxu0 %v2320
      %2419 = vmatpush.bf16.msra.mxu0 %v2319
      %2420 = vmatpush.bf16.msra.mxu0 %v2318
      %2421 = vmatpush.bf16.msra.mxu0 %v2317
      %2422 = vmatpush.bf16.msra.mxu0 %v2316
      %2423 = vmatmul.bf16.gmra.mxu0 %v2207
      %v2424 = vpop.f32.mrf.mxu0
      %v2425 = vadd.f32 %v2366, %v2424
      %v2426 = vpop.f32.mrf.mxu0
      %v2427 = vadd.f32 %v2368, %v2426
      %2428 = vmatmul.bf16.gmra.mxu0 %v1816
      %v2429 = vpop.f32.mrf.mxu0
      %v2430 = vadd.f32 %v2371, %v2429
      %v2431 = vpop.f32.mrf.mxu0
      %v2432 = vadd.f32 %v2373, %v2431
      %2433 = vmatmul.bf16.gmra.mxu0 %v1819
      %v2434 = vpop.f32.mrf.mxu0
      %v2435 = vadd.f32 %v2376, %v2434
      %v2436 = vpop.f32.mrf.mxu0
      %v2437 = vadd.f32 %v2378, %v2436
      %2438 = vmatmul.bf16.gmra.mxu0 %v1822
      %v2439 = vpop.f32.mrf.mxu0
      %v2440 = vadd.f32 %v2381, %v2439
      %v2441 = vpop.f32.mrf.mxu0
      %v2442 = vadd.f32 %v2383, %v2441
      %2443 = vmatmul.bf16.gmra.mxu0 %v1825
      %v2444 = vpop.f32.mrf.mxu0
      %v2445 = vadd.f32 %v2386, %v2444
      %v2446 = vpop.f32.mrf.mxu0
      %v2447 = vadd.f32 %v2388, %v2446
      %2448 = vmatmul.bf16.gmra.mxu0 %v1828
      %v2449 = vpop.f32.mrf.mxu0
      %v2450 = vadd.f32 %v2391, %v2449
      %v2451 = vpop.f32.mrf.mxu0
      %v2452 = vadd.f32 %v2393, %v2451
      %2453 = vmatmul.bf16.gmra.mxu0 %v1831
      %v2454 = vpop.f32.mrf.mxu0
      %v2455 = vadd.f32 %v2396, %v2454
      %v2456 = vpop.f32.mrf.mxu0
      %v2457 = vadd.f32 %v2398, %v2456
      %2458 = vmatmul.bf16.gmra.mxu0 %v1834
      %v2459 = vpop.f32.mrf.mxu0
      %v2460 = vadd.f32 %v2401, %v2459
      %v2461 = vpop.f32.mrf.mxu0
      %v2462 = vadd.f32 %v2403, %v2461
      %2463 = vmatmul.bf16.gmra.mxu0 %v1837
      %v2464 = vpop.f32.mrf.mxu0
      %v2465 = vadd.f32 %v2406, %v2464
      %v2466 = vpop.f32.mrf.mxu0
      %v2467 = vadd.f32 %v2408, %v2466
      %2468 = vmatmul.bf16.gmra.mxu0 %v1840
      %v2469 = vpop.f32.mrf.mxu0
      %v2470 = vadd.f32 %v2411, %v2469
      %v2471 = vpop.f32.mrf.mxu0
      %v2472 = vadd.f32 %v2413, %v2471
      %2473 = vdwg.mxu0
      %2474 = vmatpush.bf16.msra.mxu0 %v2331
      %2475 = vmatpush.bf16.msra.mxu0 %v2330
      %2476 = vmatpush.bf16.msra.mxu0 %v2329
      %2477 = vmatpush.bf16.msra.mxu0 %v2328
      %2478 = vmatpush.bf16.msra.mxu0 %v2327
      %2479 = vmatpush.bf16.msra.mxu0 %v2326
      %2480 = vmatpush.bf16.msra.mxu0 %v2325
      %2481 = vmatpush.bf16.msra.mxu0 %v2324
      %2482 = vmatmul.bf16.gmra.mxu0 %v2208
      %v2483 = vpop.f32.mrf.mxu0
      %v2484 = vadd.f32 %v2425, %v2483
      %v2485 = vpop.f32.mrf.mxu0
      %v2486 = vadd.f32 %v2427, %v2485
      %2487 = vmatmul.bf16.gmra.mxu0 %v1817
      %v2488 = vpop.f32.mrf.mxu0
      %v2489 = vadd.f32 %v2430, %v2488
      %v2490 = vpop.f32.mrf.mxu0
      %v2491 = vadd.f32 %v2432, %v2490
      %2492 = vmatmul.bf16.gmra.mxu0 %v1820
      %v2493 = vpop.f32.mrf.mxu0
      %v2494 = vadd.f32 %v2435, %v2493
      %v2495 = vpop.f32.mrf.mxu0
      %v2496 = vadd.f32 %v2437, %v2495
      %2497 = vmatmul.bf16.gmra.mxu0 %v1823
      %v2498 = vpop.f32.mrf.mxu0
      %v2499 = vadd.f32 %v2440, %v2498
      %v2500 = vpop.f32.mrf.mxu0
      %v2501 = vadd.f32 %v2442, %v2500
      %2502 = vmatmul.bf16.gmra.mxu0 %v1826
      %v2503 = vpop.f32.mrf.mxu0
      %v2504 = vadd.f32 %v2445, %v2503
      %v2505 = vpop.f32.mrf.mxu0
      %v2506 = vadd.f32 %v2447, %v2505
      %2507 = vmatmul.bf16.gmra.mxu0 %v1829
      %v2508 = vpop.f32.mrf.mxu0
      %v2509 = vadd.f32 %v2450, %v2508
      %v2510 = vpop.f32.mrf.mxu0
      %v2511 = vadd.f32 %v2452, %v2510
      %2512 = vmatmul.bf16.gmra.mxu0 %v1832
      %v2513 = vpop.f32.mrf.mxu0
      %v2514 = vadd.f32 %v2455, %v2513
      %v2515 = vpop.f32.mrf.mxu0
      %v2516 = vadd.f32 %v2457, %v2515
      %2517 = vmatmul.bf16.gmra.mxu0 %v1835
      %v2518 = vpop.f32.mrf.mxu0
      %v2519 = vadd.f32 %v2460, %v2518
      %v2520 = vpop.f32.mrf.mxu0
      %v2521 = vadd.f32 %v2462, %v2520
      %2522 = vmatmul.bf16.gmra.mxu0 %v1838
      %v2523 = vpop.f32.mrf.mxu0
      %v2524 = vadd.f32 %v2465, %v2523
      %v2525 = vpop.f32.mrf.mxu0
      %v2526 = vadd.f32 %v2467, %v2525
      %2527 = vmatmul.bf16.gmra.mxu0 %v1841
      %v2528 = vpop.f32.mrf.mxu0
      %v2529 = vadd.f32 %v2470, %v2528
      %v2530 = vpop.f32.mrf.mxu0
      %v2531 = vadd.f32 %v2472, %v2530
      %2532 = vdwg.mxu0
      %v2533 = vld [vmem:[#allocation4 + $0x30] sm:$0xff]
      %v2534 = vld [vmem:[#allocation4 + $0x38] sm:$0xf]
      %v2535 = vld [vmem:[#allocation4 + $0x3c] sm:$0xff]
      %v2536 = vld [vmem:[#allocation4 + $0x44] sm:$0xf]
      %v2537 = vld [vmem:[#allocation4 + $0x48] sm:$0xff]
      %v2538 = vld [vmem:[#allocation4 + $0x50] sm:$0xf]
      %v2539 = vld [vmem:[#allocation4 + $0x54] sm:$0xff]
      %v2540 = vld [vmem:[#allocation4 + $0x5c] sm:$0xf]
      %v2541 = vld [vmem:[#allocation4 + $0x60] sm:$0xff]
      %v2542 = vld [vmem:[#allocation4 + $0x68] sm:$0xf]
      %v2543 = vld [vmem:[#allocation4 + $0x6c] sm:$0xff]
      %v2544 = vld [vmem:[#allocation4 + $0x74] sm:$0xf]
      %v2545 = vld [vmem:[#allocation4 + $0x78] sm:$0xff]
      %v2546 = vld [vmem:[#allocation4 + $0x80] sm:$0xf]
      %v2547 = vld [vmem:[#allocation4 + $0x84] sm:$0xff]
      %v2548 = vld [vmem:[#allocation4 + $0x8c] sm:$0xf]
      %v2549 = vld [vmem:[#allocation4 + $0x90] sm:$0xff]
      %v2550 = vld [vmem:[#allocation4 + $0x98] sm:$0xf]
      %v2551 = vld [vmem:[#allocation4 + $0x9c] sm:$0xff]
      %v2552 = vld [vmem:[#allocation4 + $0xa4] sm:$0xf]
      %v2553 = vld [vmem:[#allocation4 + $0xa8] sm:$0xff]
      %v2554 = vld [vmem:[#allocation4 + $0xb0] sm:$0xf]
      %v2555 = vld [vmem:[#allocation4 + $0xb4] sm:$0xff]
      %v2556 = vld [vmem:[#allocation4 + $0xbc] sm:$0xf]
      %v2557 = vld [vmem:[#allocation4 + $0xc0] sm:$0xff]
      %v2558 = vld [vmem:[#allocation4 + $0xc8] sm:$0xf]
      %v2559 = vld [vmem:[#allocation4 + $0xcc] sm:$0xff]
      %v2560 = vld [vmem:[#allocation4 + $0xd4] sm:$0xf]
      %v2561 = vld [vmem:[#allocation4 + $0xd8] sm:$0xff]
      %v2562 = vld [vmem:[#allocation4 + $0xe0] sm:$0xf]
      %v2563 = vld [vmem:[#allocation4 + $0xe4] sm:$0xff]
      %v2564 = vld [vmem:[#allocation4 + $0xec] sm:$0xf]
      %v2565 = vld [vmem:[#allocation4 + $0xf0] sm:$0xff]
      %v2566 = vld [vmem:[#allocation4 + $0xf8] sm:$0xf]
      %v2567 = vld [vmem:[#allocation4 + $0xfc] sm:$0xff]
      %v2568 = vld [vmem:[#allocation4 + $0x104] sm:$0xf]
      %v2569 = vld [vmem:[#allocation4 + $0x108] sm:$0xff]
      %v2570 = vld [vmem:[#allocation4 + $0x110] sm:$0xf]
      %v2571 = vld [vmem:[#allocation4 + $0x114] sm:$0xff]
      %v2572 = vld [vmem:[#allocation4 + $0x11c] sm:$0xf]
      %s2573 = scalar_lea.vmem %s5, 384
      %v2574 = vld [vmem:[%s2573] sm:$0xf]
      %v2575 = vld [vmem:[%s2573 + $0x4] sm:$0xf]
      %v2576 = vld [vmem:[%s2573 + $0x8] sm:$0xf]
      %v2577 = vld [vmem:[%s2573 + $0xc] sm:$0xf]
      %v2578 = vld [vmem:[%s2573 + $0x10] sm:$0xf]
      %v2579 = vld [vmem:[%s2573 + $0x14] sm:$0xf]
      %v2580 = vld [vmem:[%s2573 + $0x18] sm:$0xf]
      %v2581 = vld [vmem:[%s2573 + $0x1c] sm:$0xf]
      %v2582 = vld [vmem:[%s2573 + $0x20] sm:$0xf]
      %v2583 = vld [vmem:[%s2573 + $0x24] sm:$0xf]
      %v2584 = vld [vmem:[%s2573 + $0x28] sm:$0xf]
      %v2585 = vld [vmem:[%s2573 + $0x2c] sm:$0xf]
      %v2586 = vld [vmem:[%s2573 + $0x30] sm:$0xf]
      %v2587 = vld [vmem:[%s2573 + $0x34] sm:$0xf]
      %v2588 = vld [vmem:[%s2573 + $0x38] sm:$0xf]
      %v2589 = vld [vmem:[%s2573 + $0x3c] sm:$0xf]
      %v2590 = vld [vmem:[%s2573 + $0x40] sm:$0xf]
      %v2591 = vld [vmem:[%s2573 + $0x44] sm:$0xf]
      %v2592 = vld [vmem:[%s2573 + $0x48] sm:$0xf]
      %v2593 = vld [vmem:[%s2573 + $0x4c] sm:$0xf]
      %v2594 = vld [vmem:[%s2573 + $0x50] sm:$0xf]
      %v2595 = vld [vmem:[%s2573 + $0x54] sm:$0xf]
      %v2596 = vld [vmem:[%s2573 + $0x58] sm:$0xf]
      %v2597 = vld [vmem:[%s2573 + $0x5c] sm:$0xf]
      %v2598 = vld [vmem:[%s2573 + $0x60] sm:$0xf]
      %v2599 = vld [vmem:[%s2573 + $0x64] sm:$0xf]
      %v2600 = vld [vmem:[%s2573 + $0x68] sm:$0xf]
      %v2601 = vld [vmem:[%s2573 + $0x6c] sm:$0xf]
      %v2602 = vld [vmem:[%s2573 + $0x70] sm:$0xf]
      %v2603 = vld [vmem:[%s2573 + $0x74] sm:$0xf]
      %v2604 = vld [vmem:[%s2573 + $0x78] sm:$0xf]
      %v2605 = vld [vmem:[%s2573 + $0x7c] sm:$0xf]
      %v2606 = vld [vmem:[%s2573 + $0x80] sm:$0xf]
      %v2607 = vld [vmem:[%s2573 + $0x84] sm:$0xf]
      %v2608 = vld [vmem:[%s2573 + $0x88] sm:$0xf]
      %v2609 = vld [vmem:[%s2573 + $0x8c] sm:$0xf]
      %v2610 = vld [vmem:[%s2573 + $0x90] sm:$0xf]
      %v2611 = vld [vmem:[%s2573 + $0x94] sm:$0xf]
      %v2612 = vld [vmem:[%s2573 + $0x98] sm:$0xf]
      %v2613 = vld [vmem:[%s2573 + $0x9c] sm:$0xf]
      %v2614 = vld [vmem:[%s2573 + $0xa0] sm:$0xf]
      %v2615 = vld [vmem:[%s2573 + $0xa4] sm:$0xf]
      %v2616 = vld [vmem:[%s2573 + $0xa8] sm:$0xf]
      %v2617 = vld [vmem:[%s2573 + $0xac] sm:$0xf]
      %v2618 = vld [vmem:[%s2573 + $0xb0] sm:$0xf]
      %v2619 = vld [vmem:[%s2573 + $0xb4] sm:$0xf]
      %v2620 = vld [vmem:[%s2573 + $0xb8] sm:$0xf]
      %v2621 = vld [vmem:[%s2573 + $0xbc] sm:$0xf]
      %v2662 = vunpack.c.l.b16 %v2533
      %v2663 = vunpack.c.h.b16 %v2533
      %v2664 = vunpack.c.l.b16 %v2534
      %v2665 = vunpack.c.l.b16 %v2535
      %v2666 = vunpack.c.h.b16 %v2535
      %v2667 = vunpack.c.l.b16 %v2536
      %v2668 = vunpack.c.l.b16 %v2537
      %v2669 = vunpack.c.h.b16 %v2537
      %v2670 = vunpack.c.l.b16 %v2538
      %v2671 = vunpack.c.l.b16 %v2539
      %v2672 = vunpack.c.h.b16 %v2539
      %v2673 = vunpack.c.l.b16 %v2540
      %v2674 = vunpack.c.l.b16 %v2541
      %v2675 = vunpack.c.h.b16 %v2541
      %v2676 = vunpack.c.l.b16 %v2542
      %v2677 = vunpack.c.l.b16 %v2543
      %v2678 = vunpack.c.h.b16 %v2543
      %v2679 = vunpack.c.l.b16 %v2544
      %v2680 = vunpack.c.l.b16 %v2545
      %v2681 = vunpack.c.h.b16 %v2545
      %v2682 = vunpack.c.l.b16 %v2546
      %v2683 = vunpack.c.l.b16 %v2547
      %v2684 = vunpack.c.h.b16 %v2547
      %v2685 = vunpack.c.l.b16 %v2548
      %v2686 = vunpack.c.l.b16 %v2549
      %v2687 = vunpack.c.h.b16 %v2549
      %v2688 = vunpack.c.l.b16 %v2550
      %v2689 = vunpack.c.l.b16 %v2551
      %v2690 = vunpack.c.h.b16 %v2551
      %v2691 = vunpack.c.l.b16 %v2552
      %v2692 = vunpack.c.l.b16 %v2553
      %v2693 = vunpack.c.h.b16 %v2553
      %v2694 = vunpack.c.l.b16 %v2554
      %v2695 = vunpack.c.l.b16 %v2555
      %v2696 = vunpack.c.h.b16 %v2555
      %v2697 = vunpack.c.l.b16 %v2556
      %v2698 = vunpack.c.l.b16 %v2557
      %v2699 = vunpack.c.h.b16 %v2557
      %v2700 = vunpack.c.l.b16 %v2558
      %v2701 = vunpack.c.l.b16 %v2559
      %v2702 = vunpack.c.h.b16 %v2559
      %v2703 = vunpack.c.l.b16 %v2560
      %v2704 = vunpack.c.l.b16 %v2561
      %v2705 = vunpack.c.h.b16 %v2561
      %v2706 = vunpack.c.l.b16 %v2562
      %v2707 = vunpack.c.l.b16 %v2563
      %v2708 = vunpack.c.h.b16 %v2563
      %v2709 = vunpack.c.l.b16 %v2564
      %v2710 = vunpack.c.l.b16 %v2565
      %v2711 = vunpack.c.h.b16 %v2565
      %v2712 = vunpack.c.l.b16 %v2566
      %v2713 = vunpack.c.l.b16 %v2567
      %v2714 = vunpack.c.h.b16 %v2567
      %v2715 = vunpack.c.l.b16 %v2568
      %v2716 = vunpack.c.l.b16 %v2569
      %v2717 = vunpack.c.h.b16 %v2569
      %v2718 = vunpack.c.l.b16 %v2570
      %v2719 = vunpack.c.l.b16 %v2571
      %v2720 = vunpack.c.h.b16 %v2571
      %v2721 = vunpack.c.l.b16 %v2572
      %v2722 = vpack.c.b16 %v2665, %v2662
      %v2723 = vpack.c.b16 %v2666, %v2663
      %v2724 = vpack.c.b16 %v2667, %v2664
      %v2725 = vpack.c.b16 %v2671, %v2668
      %v2726 = vpack.c.b16 %v2672, %v2669
      %v2727 = vpack.c.b16 %v2673, %v2670
      %v2728 = vpack.c.b16 %v2677, %v2674
      %v2729 = vpack.c.b16 %v2678, %v2675
      %v2730 = vpack.c.b16 %v2679, %v2676
      %v2731 = vpack.c.b16 %v2683, %v2680
      %v2732 = vpack.c.b16 %v2684, %v2681
      %v2733 = vpack.c.b16 %v2685, %v2682
      %v2734 = vpack.c.b16 %v2689, %v2686
      %v2735 = vpack.c.b16 %v2690, %v2687
      %v2736 = vpack.c.b16 %v2691, %v2688
      %v2737 = vpack.c.b16 %v2695, %v2692
      %v2738 = vpack.c.b16 %v2696, %v2693
      %v2739 = vpack.c.b16 %v2697, %v2694
      %v2740 = vpack.c.b16 %v2701, %v2698
      %v2741 = vpack.c.b16 %v2702, %v2699
      %v2742 = vpack.c.b16 %v2703, %v2700
      %v2743 = vpack.c.b16 %v2707, %v2704
      %v2744 = vpack.c.b16 %v2708, %v2705
      %v2745 = vpack.c.b16 %v2709, %v2706
      %v2746 = vpack.c.b16 %v2713, %v2710
      %v2747 = vpack.c.b16 %v2714, %v2711
      %v2748 = vpack.c.b16 %v2715, %v2712
      %v2749 = vpack.c.b16 %v2719, %v2716
      %v2750 = vpack.c.b16 %v2720, %v2717
      %v2751 = vpack.c.b16 %v2721, %v2718
      %v2830 = vunpack.c.l.b16 %v2574
      %v2831 = vunpack.c.l.b16 %v2575
      %v2832 = vunpack.c.l.b16 %v2576
      %v2833 = vunpack.c.l.b16 %v2577
      %v2834 = vunpack.c.l.b16 %v2578
      %v2835 = vunpack.c.l.b16 %v2579
      %v2836 = vunpack.c.l.b16 %v2580
      %v2837 = vunpack.c.l.b16 %v2581
      %v2838 = vunpack.c.l.b16 %v2582
      %v2839 = vunpack.c.l.b16 %v2583
      %v2840 = vunpack.c.l.b16 %v2584
      %v2841 = vunpack.c.l.b16 %v2585
      %v2842 = vunpack.c.l.b16 %v2586
      %v2843 = vunpack.c.l.b16 %v2587
      %v2844 = vunpack.c.l.b16 %v2588
      %v2845 = vunpack.c.l.b16 %v2589
      %v2846 = vunpack.c.l.b16 %v2590
      %v2847 = vunpack.c.l.b16 %v2591
      %v2848 = vunpack.c.l.b16 %v2592
      %v2849 = vunpack.c.l.b16 %v2593
      %v2850 = vunpack.c.l.b16 %v2594
      %v2851 = vunpack.c.l.b16 %v2595
      %v2852 = vunpack.c.l.b16 %v2596
      %v2853 = vunpack.c.l.b16 %v2597
      %v2854 = vunpack.c.l.b16 %v2598
      %v2855 = vunpack.c.l.b16 %v2599
      %v2856 = vunpack.c.l.b16 %v2600
      %v2857 = vunpack.c.l.b16 %v2601
      %v2858 = vunpack.c.l.b16 %v2602
      %v2859 = vunpack.c.l.b16 %v2603
      %v2860 = vunpack.c.l.b16 %v2604
      %v2861 = vunpack.c.l.b16 %v2605
      %v2862 = vunpack.c.l.b16 %v2606
      %v2863 = vunpack.c.l.b16 %v2607
      %v2864 = vunpack.c.l.b16 %v2608
      %v2865 = vunpack.c.l.b16 %v2609
      %v2866 = vunpack.c.l.b16 %v2610
      %v2867 = vunpack.c.l.b16 %v2611
      %v2868 = vunpack.c.l.b16 %v2612
      %v2869 = vunpack.c.l.b16 %v2613
      %v2870 = vunpack.c.l.b16 %v2614
      %v2871 = vunpack.c.l.b16 %v2615
      %v2872 = vunpack.c.l.b16 %v2616
      %v2873 = vunpack.c.l.b16 %v2617
      %v2874 = vunpack.c.l.b16 %v2618
      %v2875 = vunpack.c.l.b16 %v2619
      %v2876 = vunpack.c.l.b16 %v2620
      %v2877 = vunpack.c.l.b16 %v2621
      %v2878 = vpack.c.b16 %v2831, %v2830
      %v2879 = vpack.c.b16 %v2833, %v2832
      %v2880 = vpack.c.b16 %v2835, %v2834
      %v2881 = vpack.c.b16 %v2837, %v2836
      %v2882 = vpack.c.b16 %v2839, %v2838
      %v2883 = vpack.c.b16 %v2841, %v2840
      %v2884 = vpack.c.b16 %v2843, %v2842
      %v2885 = vpack.c.b16 %v2845, %v2844
      %v2886 = vpack.c.b16 %v2847, %v2846
      %v2887 = vpack.c.b16 %v2849, %v2848
      %v2888 = vpack.c.b16 %v2851, %v2850
      %v2889 = vpack.c.b16 %v2853, %v2852
      %v2890 = vpack.c.b16 %v2855, %v2854
      %v2891 = vpack.c.b16 %v2857, %v2856
      %v2892 = vpack.c.b16 %v2859, %v2858
      %v2893 = vpack.c.b16 %v2861, %v2860
      %v2894 = vpack.c.b16 %v2863, %v2862
      %v2895 = vpack.c.b16 %v2865, %v2864
      %v2896 = vpack.c.b16 %v2867, %v2866
      %v2897 = vpack.c.b16 %v2869, %v2868
      %v2898 = vpack.c.b16 %v2871, %v2870
      %v2899 = vpack.c.b16 %v2873, %v2872
      %v2900 = vpack.c.b16 %v2875, %v2874
      %v2901 = vpack.c.b16 %v2877, %v2876
      %2926 = vmatpush.bf16.msra.mxu0 %v2885
      %2927 = vmatpush.bf16.msra.mxu0 %v2884
      %2928 = vmatpush.bf16.msra.mxu0 %v2883
      %2929 = vmatpush.bf16.msra.mxu0 %v2882
      %2930 = vmatpush.bf16.msra.mxu0 %v2881
      %2931 = vmatpush.bf16.msra.mxu0 %v2880
      %2932 = vmatpush.bf16.msra.mxu0 %v2879
      %2933 = vmatpush.bf16.msra.mxu0 %v2878
      %2934 = vmatmul.bf16.gmra.mxu0 %v2722
      %v2935 = vpop.f32.mrf.mxu0
      %v2936 = vadd.f32 0.0, %v2935
      %v2937 = vpop.f32.mrf.mxu0
      %v2938 = vadd.f32 0.0, %v2937
      %2939 = vmatmul.bf16.gmra.mxu0 %v2725
      %v2940 = vpop.f32.mrf.mxu0
      %v2941 = vadd.f32 0.0, %v2940
      %v2942 = vpop.f32.mrf.mxu0
      %v2943 = vadd.f32 0.0, %v2942
      %2944 = vmatmul.bf16.gmra.mxu0 %v2728
      %v2945 = vpop.f32.mrf.mxu0
      %v2946 = vadd.f32 0.0, %v2945
      %v2947 = vpop.f32.mrf.mxu0
      %v2948 = vadd.f32 0.0, %v2947
      %2949 = vmatmul.bf16.gmra.mxu0 %v2731
      %v2950 = vpop.f32.mrf.mxu0
      %v2951 = vadd.f32 0.0, %v2950
      %v2952 = vpop.f32.mrf.mxu0
      %v2953 = vadd.f32 0.0, %v2952
      %2954 = vmatmul.bf16.gmra.mxu0 %v2734
      %v2955 = vpop.f32.mrf.mxu0
      %v2956 = vadd.f32 0.0, %v2955
      %v2957 = vpop.f32.mrf.mxu0
      %v2958 = vadd.f32 0.0, %v2957
      %2959 = vmatmul.bf16.gmra.mxu0 %v2737
      %v2960 = vpop.f32.mrf.mxu0
      %v2961 = vadd.f32 0.0, %v2960
      %v2962 = vpop.f32.mrf.mxu0
      %v2963 = vadd.f32 0.0, %v2962
      %2964 = vmatmul.bf16.gmra.mxu0 %v2740
      %v2965 = vpop.f32.mrf.mxu0
      %v2966 = vadd.f32 0.0, %v2965
      %v2967 = vpop.f32.mrf.mxu0
      %v2968 = vadd.f32 0.0, %v2967
      %2969 = vmatmul.bf16.gmra.mxu0 %v2743
      %v2970 = vpop.f32.mrf.mxu0
      %v2971 = vadd.f32 0.0, %v2970
      %v2972 = vpop.f32.mrf.mxu0
      %v2973 = vadd.f32 0.0, %v2972
      %2974 = vmatmul.bf16.gmra.mxu0 %v2746
      %v2975 = vpop.f32.mrf.mxu0
      %v2976 = vadd.f32 0.0, %v2975
      %v2977 = vpop.f32.mrf.mxu0
      %v2978 = vadd.f32 0.0, %v2977
      %2979 = vmatmul.bf16.gmra.mxu0 %v2749
      %v2980 = vpop.f32.mrf.mxu0
      %v2981 = vadd.f32 0.0, %v2980
      %v2982 = vpop.f32.mrf.mxu0
      %v2983 = vadd.f32 0.0, %v2982
      %2984 = vdwg.mxu0
      %2985 = vmatpush.bf16.msra.mxu0 %v2893
      %2986 = vmatpush.bf16.msra.mxu0 %v2892
      %2987 = vmatpush.bf16.msra.mxu0 %v2891
      %2988 = vmatpush.bf16.msra.mxu0 %v2890
      %2989 = vmatpush.bf16.msra.mxu0 %v2889
      %2990 = vmatpush.bf16.msra.mxu0 %v2888
      %2991 = vmatpush.bf16.msra.mxu0 %v2887
      %2992 = vmatpush.bf16.msra.mxu0 %v2886
      %2993 = vmatmul.bf16.gmra.mxu0 %v2723
      %v2994 = vpop.f32.mrf.mxu0
      %v2995 = vadd.f32 %v2936, %v2994
      %v2996 = vpop.f32.mrf.mxu0
      %v2997 = vadd.f32 %v2938, %v2996
      %2998 = vmatmul.bf16.gmra.mxu0 %v2726
      %v2999 = vpop.f32.mrf.mxu0
      %v3000 = vadd.f32 %v2941, %v2999
      %v3001 = vpop.f32.mrf.mxu0
      %v3002 = vadd.f32 %v2943, %v3001
      %3003 = vmatmul.bf16.gmra.mxu0 %v2729
      %v3004 = vpop.f32.mrf.mxu0
      %v3005 = vadd.f32 %v2946, %v3004
      %v3006 = vpop.f32.mrf.mxu0
      %v3007 = vadd.f32 %v2948, %v3006
      %3008 = vmatmul.bf16.gmra.mxu0 %v2732
      %v3009 = vpop.f32.mrf.mxu0
      %v3010 = vadd.f32 %v2951, %v3009
      %v3011 = vpop.f32.mrf.mxu0
      %v3012 = vadd.f32 %v2953, %v3011
      %3013 = vmatmul.bf16.gmra.mxu0 %v2735
      %v3014 = vpop.f32.mrf.mxu0
      %v3015 = vadd.f32 %v2956, %v3014
      %v3016 = vpop.f32.mrf.mxu0
      %v3017 = vadd.f32 %v2958, %v3016
      %3018 = vmatmul.bf16.gmra.mxu0 %v2738
      %v3019 = vpop.f32.mrf.mxu0
      %v3020 = vadd.f32 %v2961, %v3019
      %v3021 = vpop.f32.mrf.mxu0
      %v3022 = vadd.f32 %v2963, %v3021
      %3023 = vmatmul.bf16.gmra.mxu0 %v2741
      %v3024 = vpop.f32.mrf.mxu0
      %v3025 = vadd.f32 %v2966, %v3024
      %v3026 = vpop.f32.mrf.mxu0
      %v3027 = vadd.f32 %v2968, %v3026
      %3028 = vmatmul.bf16.gmra.mxu0 %v2744
      %v3029 = vpop.f32.mrf.mxu0
      %v3030 = vadd.f32 %v2971, %v3029
      %v3031 = vpop.f32.mrf.mxu0
      %v3032 = vadd.f32 %v2973, %v3031
      %3033 = vmatmul.bf16.gmra.mxu0 %v2747
      %v3034 = vpop.f32.mrf.mxu0
      %v3035 = vadd.f32 %v2976, %v3034
      %v3036 = vpop.f32.mrf.mxu0
      %v3037 = vadd.f32 %v2978, %v3036
      %3038 = vmatmul.bf16.gmra.mxu0 %v2750
      %v3039 = vpop.f32.mrf.mxu0
      %v3040 = vadd.f32 %v2981, %v3039
      %v3041 = vpop.f32.mrf.mxu0
      %v3042 = vadd.f32 %v2983, %v3041
      %3043 = vdwg.mxu0
      %3044 = vmatpush.bf16.msra.mxu0 %v2901
      %3045 = vmatpush.bf16.msra.mxu0 %v2900
      %3046 = vmatpush.bf16.msra.mxu0 %v2899
      %3047 = vmatpush.bf16.msra.mxu0 %v2898
      %3048 = vmatpush.bf16.msra.mxu0 %v2897
      %3049 = vmatpush.bf16.msra.mxu0 %v2896
      %3050 = vmatpush.bf16.msra.mxu0 %v2895
      %3051 = vmatpush.bf16.msra.mxu0 %v2894
      %3052 = vmatmul.bf16.gmra.mxu0 %v2724
      %v3053 = vpop.f32.mrf.mxu0
      %v3054 = vadd.f32 %v2995, %v3053
      %v3055 = vpop.f32.mrf.mxu0
      %v3056 = vadd.f32 %v2997, %v3055
      %3057 = vmatmul.bf16.gmra.mxu0 %v2727
      %v3058 = vpop.f32.mrf.mxu0
      %v3059 = vadd.f32 %v3000, %v3058
      %v3060 = vpop.f32.mrf.mxu0
      %v3061 = vadd.f32 %v3002, %v3060
      %3062 = vmatmul.bf16.gmra.mxu0 %v2730
      %v3063 = vpop.f32.mrf.mxu0
      %v3064 = vadd.f32 %v3005, %v3063
      %v3065 = vpop.f32.mrf.mxu0
      %v3066 = vadd.f32 %v3007, %v3065
      %3067 = vmatmul.bf16.gmra.mxu0 %v2733
      %v3068 = vpop.f32.mrf.mxu0
      %v3069 = vadd.f32 %v3010, %v3068
      %v3070 = vpop.f32.mrf.mxu0
      %v3071 = vadd.f32 %v3012, %v3070
      %3072 = vmatmul.bf16.gmra.mxu0 %v2736
      %v3073 = vpop.f32.mrf.mxu0
      %v3074 = vadd.f32 %v3015, %v3073
      %v3075 = vpop.f32.mrf.mxu0
      %v3076 = vadd.f32 %v3017, %v3075
      %3077 = vmatmul.bf16.gmra.mxu0 %v2739
      %v3078 = vpop.f32.mrf.mxu0
      %v3079 = vadd.f32 %v3020, %v3078
      %v3080 = vpop.f32.mrf.mxu0
      %v3081 = vadd.f32 %v3022, %v3080
      %3082 = vmatmul.bf16.gmra.mxu0 %v2742
      %v3083 = vpop.f32.mrf.mxu0
      %v3084 = vadd.f32 %v3025, %v3083
      %v3085 = vpop.f32.mrf.mxu0
      %v3086 = vadd.f32 %v3027, %v3085
      %3087 = vmatmul.bf16.gmra.mxu0 %v2745
      %v3088 = vpop.f32.mrf.mxu0
      %v3089 = vadd.f32 %v3030, %v3088
      %v3090 = vpop.f32.mrf.mxu0
      %v3091 = vadd.f32 %v3032, %v3090
      %3092 = vmatmul.bf16.gmra.mxu0 %v2748
      %v3093 = vpop.f32.mrf.mxu0
      %v3094 = vadd.f32 %v3035, %v3093
      %v3095 = vpop.f32.mrf.mxu0
      %v3096 = vadd.f32 %v3037, %v3095
      %3097 = vmatmul.bf16.gmra.mxu0 %v2751
      %v3098 = vpop.f32.mrf.mxu0
      %v3099 = vadd.f32 %v3040, %v3098
      %v3100 = vpop.f32.mrf.mxu0
      %v3101 = vadd.f32 %v3042, %v3100
      %3102 = vdwg.mxu0
      %v3103 = vadd.f32 %v2484, %v3054
      %v3104 = vadd.f32 %v2486, %v3056
      %v3105 = vadd.f32 %v2489, %v3059
      %v3106 = vadd.f32 %v2491, %v3061
      %v3107 = vadd.f32 %v2494, %v3064
      %v3108 = vadd.f32 %v2496, %v3066
      %v3109 = vadd.f32 %v2499, %v3069
      %v3110 = vadd.f32 %v2501, %v3071
      %v3111 = vadd.f32 %v2504, %v3074
      %v3112 = vadd.f32 %v2506, %v3076
      %v3113 = vadd.f32 %v2509, %v3079
      %v3114 = vadd.f32 %v2511, %v3081
      %v3115 = vadd.f32 %v2514, %v3084
      %v3116 = vadd.f32 %v2516, %v3086
      %v3117 = vadd.f32 %v2519, %v3089
      %v3118 = vadd.f32 %v2521, %v3091
      %v3119 = vadd.f32 %v2524, %v3094
      %v3120 = vadd.f32 %v2526, %v3096
      %v3121 = vadd.f32 %v2529, %v3099
      %v3122 = vadd.f32 %v2531, %v3101
      %v3123 = vld [vmem:[%s6] sm:$0x1]
      %v3125 = vperm.slane %v3123, 0
      %v3127 = vmul.f32 %v3103, %v3125
      %v3128 = vmul.f32 %v3104, %v3125
      %v3129 = vmul.f32 %v3105, %v3125
      %v3130 = vmul.f32 %v3106, %v3125
      %v3131 = vmul.f32 %v3107, %v3125
      %v3132 = vmul.f32 %v3108, %v3125
      %v3133 = vmul.f32 %v3109, %v3125
      %v3134 = vmul.f32 %v3110, %v3125
      %v3135 = vmul.f32 %v3111, %v3125
      %v3136 = vmul.f32 %v3112, %v3125
      %v3137 = vmul.f32 %v3113, %v3125
      %v3138 = vmul.f32 %v3114, %v3125
      %v3139 = vmul.f32 %v3115, %v3125
      %v3140 = vmul.f32 %v3116, %v3125
      %v3141 = vmul.f32 %v3117, %v3125
      %v3142 = vmul.f32 %v3118, %v3125
      %v3143 = vmul.f32 %v3119, %v3125
      %v3144 = vmul.f32 %v3120, %v3125
      %v3145 = vmul.f32 %v3121, %v3125
      %v3146 = vmul.f32 %v3122, %v3125
      %v3147 = vld [vmem:[%s7] sm:$0x1]
      %v3149 = vperm.slane %v3147, 0
      %v3151 = vadd.f32 %v3127, %v3149
      %v3152 = vadd.f32 %v3128, %v3149
      %v3153 = vadd.f32 %v3129, %v3149
      %v3154 = vadd.f32 %v3130, %v3149
      %v3155 = vadd.f32 %v3131, %v3149
      %v3156 = vadd.f32 %v3132, %v3149
      %v3157 = vadd.f32 %v3133, %v3149
      %v3158 = vadd.f32 %v3134, %v3149
      %v3159 = vadd.f32 %v3135, %v3149
      %v3160 = vadd.f32 %v3136, %v3149
      %v3161 = vadd.f32 %v3137, %v3149
      %v3162 = vadd.f32 %v3138, %v3149
      %v3163 = vadd.f32 %v3139, %v3149
      %v3164 = vadd.f32 %v3140, %v3149
      %v3165 = vadd.f32 %v3141, %v3149
      %v3166 = vadd.f32 %v3142, %v3149
      %v3167 = vadd.f32 %v3143, %v3149
      %v3168 = vadd.f32 %v3144, %v3149
      %v3169 = vadd.f32 %v3145, %v3149
      %v3170 = vadd.f32 %v3146, %v3149
      %v3171 = vmax.f32 %v3151, 0.0
      %v3172 = vmax.f32 %v3152, 0.0
      %v3173 = vmax.f32 %v3153, 0.0
      %v3174 = vmax.f32 %v3154, 0.0
      %v3175 = vmax.f32 %v3155, 0.0
      %v3176 = vmax.f32 %v3156, 0.0
      %v3177 = vmax.f32 %v3157, 0.0
      %v3178 = vmax.f32 %v3158, 0.0
      %v3179 = vmax.f32 %v3159, 0.0
      %v3180 = vmax.f32 %v3160, 0.0
      %v3181 = vmax.f32 %v3161, 0.0
      %v3182 = vmax.f32 %v3162, 0.0
      %v3183 = vmax.f32 %v3163, 0.0
      %v3184 = vmax.f32 %v3164, 0.0
      %v3185 = vmax.f32 %v3165, 0.0
      %v3186 = vmax.f32 %v3166, 0.0
      %v3187 = vmax.f32 %v3167, 0.0
      %v3188 = vmax.f32 %v3168, 0.0
      %v3189 = vmax.f32 %v3169, 0.0
      %v3190 = vmax.f32 %v3170, 0.0
      %v3191 = vpack.c.bf16 %v3171, %v3171
      %v3192 = vpack.c.bf16 %v3172, %v3172
      %v3193 = vpack.c.bf16 %v3173, %v3173
      %v3194 = vpack.c.bf16 %v3174, %v3174
      %v3195 = vpack.c.bf16 %v3175, %v3175
      %v3196 = vpack.c.bf16 %v3176, %v3176
      %v3197 = vpack.c.bf16 %v3177, %v3177
      %v3198 = vpack.c.bf16 %v3178, %v3178
      %v3199 = vpack.c.bf16 %v3179, %v3179
      %v3200 = vpack.c.bf16 %v3180, %v3180
      %v3201 = vpack.c.bf16 %v3181, %v3181
      %v3202 = vpack.c.bf16 %v3182, %v3182
      %v3203 = vpack.c.bf16 %v3183, %v3183
      %v3204 = vpack.c.bf16 %v3184, %v3184
      %v3205 = vpack.c.bf16 %v3185, %v3185
      %v3206 = vpack.c.bf16 %v3186, %v3186
      %v3207 = vpack.c.bf16 %v3187, %v3187
      %v3208 = vpack.c.bf16 %v3188, %v3188
      %v3209 = vpack.c.bf16 %v3189, %v3189
      %v3210 = vpack.c.bf16 %v3190, %v3190
      %3211 = vst [vmem:[#allocation3] sm:$0xf] 0
      %3212 = vst [vmem:[#allocation3 + $0x4] sm:$0xf] 0
      %3213 = vst [vmem:[#allocation3 + $0x8] sm:$0xf] 0
      %3214 = vst [vmem:[#allocation3 + $0xc] sm:$0xf] 0
      %3215 = vst [vmem:[#allocation3 + $0x10] sm:$0x1] 0
      %3216 = vst [vmem:[#allocation3 + $0x14] sm:$0xf] 0
      %3217 = vst [vmem:[#allocation3 + $0x18] sm:$0xf] 0
      %3218 = vst [vmem:[#allocation3 + $0x1c] sm:$0xf] 0
      %3219 = vst [vmem:[#allocation3 + $0x20] sm:$0xf] 0
      %3220 = vst [vmem:[#allocation3 + $0x24] sm:$0x1] 0
      %3221 = vst [vmem:[#allocation3 + $0x28] sm:$0xf] 0
      %3222 = vst [vmem:[#allocation3 + $0x2c] sm:$0xf] 0
      %3223 = vst [vmem:[#allocation3 + $0x30] sm:$0xf] 0
      %3224 = vst [vmem:[#allocation3 + $0x34] sm:$0xf] 0
      %3225 = vst [vmem:[#allocation3 + $0x38] sm:$0x1] 0
      %3226 = vst [vmem:[#allocation3 + $0x3c] sm:$0xf] 0
      %3227 = vst [vmem:[#allocation3 + $0x40] sm:$0xf] 0
      %3228 = vst [vmem:[#allocation3 + $0x44] sm:$0xf] 0
      %3229 = vst [vmem:[#allocation3 + $0x48] sm:$0xf] 0
      %3230 = vst [vmem:[#allocation3 + $0x4c] sm:$0x1] 0
      %3231 = vst [vmem:[#allocation3 + $0x50] sm:$0xf] 0
      %3232 = vst [vmem:[#allocation3 + $0x54] sm:$0xf] 0
      %3233 = vst [vmem:[#allocation3 + $0x58] sm:$0xf] 0
      %3234 = vst [vmem:[#allocation3 + $0x5c] sm:$0xf] 0
      %3235 = vst [vmem:[#allocation3 + $0x60] sm:$0x1] 0
      %3236 = vst [vmem:[#allocation3 + $0x64] sm:$0xf] 0
      %3237 = vst [vmem:[#allocation3 + $0x68] sm:$0xf] 0
      %3238 = vst [vmem:[#allocation3 + $0x6c] sm:$0xf] 0
      %3239 = vst [vmem:[#allocation3 + $0x70] sm:$0xf] 0
      %3240 = vst [vmem:[#allocation3 + $0x74] sm:$0x1] 0
      %3241 = vst [vmem:[#allocation3 + $0x78] sm:$0xf] 0
      %3242 = vst [vmem:[#allocation3 + $0x7c] sm:$0xf] 0
      %3243 = vst [vmem:[#allocation3 + $0x80] sm:$0xf] 0
      %3244 = vst [vmem:[#allocation3 + $0x84] sm:$0xf] 0
      %3245 = vst [vmem:[#allocation3 + $0x88] sm:$0x1] 0
      %3246 = vst [vmem:[#allocation3 + $0x8c] sm:$0xf] 0
      %3247 = vst [vmem:[#allocation3 + $0x90] sm:$0xf] 0
      %3248 = vst [vmem:[#allocation3 + $0x94] sm:$0xf] 0
      %3249 = vst [vmem:[#allocation3 + $0x98] sm:$0xf] 0
      %3250 = vst [vmem:[#allocation3 + $0x9c] sm:$0x1] 0
      %3251 = vst [vmem:[#allocation3 + $0xa0] sm:$0xf] 0
      %3252 = vst [vmem:[#allocation3 + $0xa4] sm:$0xf] 0
      %3253 = vst [vmem:[#allocation3 + $0xa8] sm:$0xf] 0
      %3254 = vst [vmem:[#allocation3 + $0xac] sm:$0xf] 0
      %3255 = vst [vmem:[#allocation3 + $0xb0] sm:$0x1] 0
      %3256 = vst [vmem:[#allocation3 + $0xb4] sm:$0xf] 0
      %3257 = vst [vmem:[#allocation3 + $0xb8] sm:$0xf] 0
      %3258 = vst [vmem:[#allocation3 + $0xbc] sm:$0xf] 0
      %3259 = vst [vmem:[#allocation3 + $0xc0] sm:$0xf] 0
      %3260 = vst [vmem:[#allocation3 + $0xc4] sm:$0x1] 0
      %3261 = vst [vmem:[#allocation3 + $0x8] sm:$0xf] %v3191
      %3262 = vst [vmem:[#allocation3 + $0xc] sm:$0xf] %v3192
      %3263 = vst [vmem:[#allocation3 + $0x1c] sm:$0xf] %v3193
      %3264 = vst [vmem:[#allocation3 + $0x20] sm:$0xf] %v3194
      %3265 = vst [vmem:[#allocation3 + $0x30] sm:$0xf] %v3195
      %3266 = vst [vmem:[#allocation3 + $0x34] sm:$0xf] %v3196
      %3267 = vst [vmem:[#allocation3 + $0x44] sm:$0xf] %v3197
      %3268 = vst [vmem:[#allocation3 + $0x48] sm:$0xf] %v3198
      %3269 = vst [vmem:[#allocation3 + $0x58] sm:$0xf] %v3199
      %3270 = vst [vmem:[#allocation3 + $0x5c] sm:$0xf] %v3200
      %3271 = vst [vmem:[#allocation3 + $0x6c] sm:$0xf] %v3201
      %3272 = vst [vmem:[#allocation3 + $0x70] sm:$0xf] %v3202
      %3273 = vst [vmem:[#allocation3 + $0x80] sm:$0xf] %v3203
      %3274 = vst [vmem:[#allocation3 + $0x84] sm:$0xf] %v3204
      %3275 = vst [vmem:[#allocation3 + $0x94] sm:$0xf] %v3205
      %3276 = vst [vmem:[#allocation3 + $0x98] sm:$0xf] %v3206
      %3277 = vst [vmem:[#allocation3 + $0xa8] sm:$0xf] %v3207
      %3278 = vst [vmem:[#allocation3 + $0xac] sm:$0xf] %v3208
      %3279 = vst [vmem:[#allocation3 + $0xbc] sm:$0xf] %v3209
      %3280 = vst [vmem:[#allocation3 + $0xc0] sm:$0xf] %v3210
      %p3281 = scmp.eq.s32.totalorder %s27, 0
      // Predicated region
      $region73: #{basic_block_forward.1} parent=63 // pred_check
        %p3282 = pneg %p3281
      $region74: #{basic_block_forward.1} parent=63 // pred_check_branch
        %3284 = sbr.rel (%p3282) target = $region76
      $region75: #{basic_block_forward.1} parent=63 // pred_region
        %3285 = vst [vmem:[#allocation3 + $0x8] sm:$0xf] 0
        %3286 = vst [vmem:[#allocation3 + $0xc] sm:$0xf] 0
      $region76: #{basic_block_forward.1} parent=63 // pred_fallthru
        _
      %p3287 = scmp.eq.s32.totalorder %s27, 1
      // Predicated region
      $region77: #{basic_block_forward.1} parent=63 // pred_check
        %p3288 = pneg %p3287
      $region78: #{basic_block_forward.1} parent=63 // pred_check_branch
        %3290 = sbr.rel (%p3288) target = $region80
      $region79: #{basic_block_forward.1} parent=63 // pred_region
        %s3291 = scalar_lea.vmem [#allocation3], 180
        %3292 = vst [vmem:[%s3291 + $0x8] sm:$0xf] 0
        %3293 = vst [vmem:[%s3291 + $0xc] sm:$0xf] 0
      $region80: #{basic_block_forward.1} parent=63 // pred_fallthru
        _
      %v3294 = vld [vmem:[#allocation3 + $0x4] sm:$0x8]
      %v3295 = vld [vmem:[#allocation3 + $0x8] sm:$0xf]
      %v3296 = vld [vmem:[#allocation3 + $0xc] sm:$0xf]
      %v3297 = vld [vmem:[#allocation3 + $0x18] sm:$0x8]
      %v3298 = vld [vmem:[#allocation3 + $0x1c] sm:$0xf]
      %v3299 = vld [vmem:[#allocation3 + $0x20] sm:$0xf]
      %v3300 = vld [vmem:[#allocation3 + $0x2c] sm:$0x8]
      %v3301 = vld [vmem:[#allocation3 + $0x30] sm:$0xf]
      %v3302 = vld [vmem:[#allocation3 + $0x34] sm:$0xf]
      %v3303 = vld [vmem:[#allocation3 + $0x40] sm:$0x8]
      %v3304 = vld [vmem:[#allocation3 + $0x44] sm:$0xf]
      %v3305 = vld [vmem:[#allocation3 + $0x48] sm:$0xf]
      %v3306 = vld [vmem:[#allocation3 + $0x54] sm:$0x8]
      %v3307 = vld [vmem:[#allocation3 + $0x58] sm:$0xf]
      %v3308 = vld [vmem:[#allocation3 + $0x5c] sm:$0xf]
      %v3309 = vld [vmem:[#allocation3 + $0x68] sm:$0x8]
      %v3310 = vld [vmem:[#allocation3 + $0x6c] sm:$0xf]
      %v3311 = vld [vmem:[#allocation3 + $0x70] sm:$0xf]
      %v3312 = vld [vmem:[#allocation3 + $0x7c] sm:$0x8]
      %v3313 = vld [vmem:[#allocation3 + $0x80] sm:$0xf]
      %v3314 = vld [vmem:[#allocation3 + $0x84] sm:$0xf]
      %v3315 = vld [vmem:[#allocation3 + $0x90] sm:$0x8]
      %v3316 = vld [vmem:[#allocation3 + $0x94] sm:$0xf]
      %v3317 = vld [vmem:[#allocation3 + $0x98] sm:$0xf]
      %v3318 = vld [vmem:[#allocation3 + $0xa4] sm:$0x8]
      %v3319 = vld [vmem:[#allocation3 + $0xa8] sm:$0xf]
      %v3320 = vld [vmem:[#allocation3 + $0xac] sm:$0xf]
      %v3321 = vld [vmem:[#allocation3 + $0xb8] sm:$0x8]
      %v3322 = vld [vmem:[#allocation3 + $0xbc] sm:$0xf]
      %v3323 = vld [vmem:[#allocation3 + $0xc0] sm:$0xf]
      %v3325 = vshrl.u32 %v3294, 16
      %v3327 = vrot.slane %v3325, 7
      %v3328 = vrot.slane %v3327, 4
      %v3330 = vshrl.u32 %v3295, 16
      %v3332 = vrot.slane %v3330, 7
      %v3333 = vshll.u32 %v3295, 16
      %v3335 = vor.u32 %v3332, %v3333
      %v3336 = vsel %vm838, %v3328, %v3335
      %v3337 = vrot.slane %v3332, 4
      %v3339 = vshrl.u32 %v3296, 16
      %v3341 = vrot.slane %v3339, 7
      %v3342 = vshll.u32 %v3296, 16
      %v3344 = vor.u32 %v3341, %v3342
      %v3345 = vsel %vm838, %v3337, %v3344
      %v3347 = vshrl.u32 %v3297, 16
      %v3349 = vrot.slane %v3347, 7
      %v3350 = vrot.slane %v3349, 4
      %v3352 = vshrl.u32 %v3298, 16
      %v3354 = vrot.slane %v3352, 7
      %v3355 = vshll.u32 %v3298, 16
      %v3357 = vor.u32 %v3354, %v3355
      %v3358 = vsel %vm838, %v3350, %v3357
      %v3359 = vrot.slane %v3354, 4
      %v3361 = vshrl.u32 %v3299, 16
      %v3363 = vrot.slane %v3361, 7
      %v3364 = vshll.u32 %v3299, 16
      %v3366 = vor.u32 %v3363, %v3364
      %v3367 = vsel %vm838, %v3359, %v3366
      %v3369 = vshrl.u32 %v3300, 16
      %v3371 = vrot.slane %v3369, 7
      %v3372 = vrot.slane %v3371, 4
      %v3374 = vshrl.u32 %v3301, 16
      %v3376 = vrot.slane %v3374, 7
      %v3377 = vshll.u32 %v3301, 16
      %v3379 = vor.u32 %v3376, %v3377
      %v3380 = vsel %vm838, %v3372, %v3379
      %v3381 = vrot.slane %v3376, 4
      %v3383 = vshrl.u32 %v3302, 16
      %v3385 = vrot.slane %v3383, 7
      %v3386 = vshll.u32 %v3302, 16
      %v3388 = vor.u32 %v3385, %v3386
      %v3389 = vsel %vm838, %v3381, %v3388
      %v3391 = vshrl.u32 %v3303, 16
      %v3393 = vrot.slane %v3391, 7
      %v3394 = vrot.slane %v3393, 4
      %v3396 = vshrl.u32 %v3304, 16
      %v3398 = vrot.slane %v3396, 7
      %v3399 = vshll.u32 %v3304, 16
      %v3401 = vor.u32 %v3398, %v3399
      %v3402 = vsel %vm838, %v3394, %v3401
      %v3403 = vrot.slane %v3398, 4
      %v3405 = vshrl.u32 %v3305, 16
      %v3407 = vrot.slane %v3405, 7
      %v3408 = vshll.u32 %v3305, 16
      %v3410 = vor.u32 %v3407, %v3408
      %v3411 = vsel %vm838, %v3403, %v3410
      %v3413 = vshrl.u32 %v3306, 16
      %v3415 = vrot.slane %v3413, 7
      %v3416 = vrot.slane %v3415, 4
      %v3418 = vshrl.u32 %v3307, 16
      %v3420 = vrot.slane %v3418, 7
      %v3421 = vshll.u32 %v3307, 16
      %v3423 = vor.u32 %v3420, %v3421
      %v3424 = vsel %vm838, %v3416, %v3423
      %v3425 = vrot.slane %v3420, 4
      %v3427 = vshrl.u32 %v3308, 16
      %v3429 = vrot.slane %v3427, 7
      %v3430 = vshll.u32 %v3308, 16
      %v3432 = vor.u32 %v3429, %v3430
      %v3433 = vsel %vm838, %v3425, %v3432
      %v3435 = vshrl.u32 %v3309, 16
      %v3437 = vrot.slane %v3435, 7
      %v3438 = vrot.slane %v3437, 4
      %v3440 = vshrl.u32 %v3310, 16
      %v3442 = vrot.slane %v3440, 7
      %v3443 = vshll.u32 %v3310, 16
      %v3445 = vor.u32 %v3442, %v3443
      %v3446 = vsel %vm838, %v3438, %v3445
      %v3447 = vrot.slane %v3442, 4
      %v3449 = vshrl.u32 %v3311, 16
      %v3451 = vrot.slane %v3449, 7
      %v3452 = vshll.u32 %v3311, 16
      %v3454 = vor.u32 %v3451, %v3452
      %v3455 = vsel %vm838, %v3447, %v3454
      %v3457 = vshrl.u32 %v3312, 16
      %v3459 = vrot.slane %v3457, 7
      %v3460 = vrot.slane %v3459, 4
      %v3462 = vshrl.u32 %v3313, 16
      %v3464 = vrot.slane %v3462, 7
      %v3465 = vshll.u32 %v3313, 16
      %v3467 = vor.u32 %v3464, %v3465
      %v3468 = vsel %vm838, %v3460, %v3467
      %v3469 = vrot.slane %v3464, 4
      %v3471 = vshrl.u32 %v3314, 16
      %v3473 = vrot.slane %v3471, 7
      %v3474 = vshll.u32 %v3314, 16
      %v3476 = vor.u32 %v3473, %v3474
      %v3477 = vsel %vm838, %v3469, %v3476
      %v3479 = vshrl.u32 %v3315, 16
      %v3481 = vrot.slane %v3479, 7
      %v3482 = vrot.slane %v3481, 4
      %v3484 = vshrl.u32 %v3316, 16
      %v3486 = vrot.slane %v3484, 7
      %v3487 = vshll.u32 %v3316, 16
      %v3489 = vor.u32 %v3486, %v3487
      %v3490 = vsel %vm838, %v3482, %v3489
      %v3491 = vrot.slane %v3486, 4
      %v3493 = vshrl.u32 %v3317, 16
      %v3495 = vrot.slane %v3493, 7
      %v3496 = vshll.u32 %v3317, 16
      %v3498 = vor.u32 %v3495, %v3496
      %v3499 = vsel %vm838, %v3491, %v3498
      %v3501 = vshrl.u32 %v3318, 16
      %v3503 = vrot.slane %v3501, 7
      %v3504 = vrot.slane %v3503, 4
      %v3506 = vshrl.u32 %v3319, 16
      %v3508 = vrot.slane %v3506, 7
      %v3509 = vshll.u32 %v3319, 16
      %v3511 = vor.u32 %v3508, %v3509
      %v3512 = vsel %vm838, %v3504, %v3511
      %v3513 = vrot.slane %v3508, 4
      %v3515 = vshrl.u32 %v3320, 16
      %v3517 = vrot.slane %v3515, 7
      %v3518 = vshll.u32 %v3320, 16
      %v3520 = vor.u32 %v3517, %v3518
      %v3521 = vsel %vm838, %v3513, %v3520
      %v3523 = vshrl.u32 %v3321, 16
      %v3525 = vrot.slane %v3523, 7
      %v3526 = vrot.slane %v3525, 4
      %v3528 = vshrl.u32 %v3322, 16
      %v3530 = vrot.slane %v3528, 7
      %v3531 = vshll.u32 %v3322, 16
      %v3533 = vor.u32 %v3530, %v3531
      %v3534 = vsel %vm838, %v3526, %v3533
      %v3535 = vrot.slane %v3530, 4
      %v3537 = vshrl.u32 %v3323, 16
      %v3539 = vrot.slane %v3537, 7
      %v3540 = vshll.u32 %v3323, 16
      %v3542 = vor.u32 %v3539, %v3540
      %v3543 = vsel %vm838, %v3535, %v3542
      %3564 = vst [vmem:[#allocation4] sm:$0xf] %v3336
      %3565 = vst [vmem:[#allocation4 + $0xc] sm:$0xf] %v3345
      %3566 = vst [vmem:[#allocation4 + $0x18] sm:$0xf] %v3358
      %3567 = vst [vmem:[#allocation4 + $0x24] sm:$0xf] %v3367
      %3568 = vst [vmem:[#allocation4 + $0x30] sm:$0xf] %v3380
      %3569 = vst [vmem:[#allocation4 + $0x3c] sm:$0xf] %v3389
      %3570 = vst [vmem:[#allocation4 + $0x48] sm:$0xf] %v3402
      %3571 = vst [vmem:[#allocation4 + $0x54] sm:$0xf] %v3411
      %3572 = vst [vmem:[#allocation4 + $0x60] sm:$0xf] %v3424
      %3573 = vst [vmem:[#allocation4 + $0x6c] sm:$0xf] %v3433
      %3574 = vst [vmem:[#allocation4 + $0x78] sm:$0xf] %v3446
      %3575 = vst [vmem:[#allocation4 + $0x84] sm:$0xf] %v3455
      %3576 = vst [vmem:[#allocation4 + $0x90] sm:$0xf] %v3468
      %3577 = vst [vmem:[#allocation4 + $0x9c] sm:$0xf] %v3477
      %3578 = vst [vmem:[#allocation4 + $0xa8] sm:$0xf] %v3490
      %3579 = vst [vmem:[#allocation4 + $0xb4] sm:$0xf] %v3499
      %3580 = vst [vmem:[#allocation4 + $0xc0] sm:$0xf] %v3512
      %3581 = vst [vmem:[#allocation4 + $0xcc] sm:$0xf] %v3521
      %3582 = vst [vmem:[#allocation4 + $0xd8] sm:$0xf] %v3534
      %3583 = vst [vmem:[#allocation4 + $0xe4] sm:$0xf] %v3543
      %v3584 = vld [vmem:[#allocation3 + $0x8] sm:$0xf]
      %v3585 = vld [vmem:[#allocation3 + $0xc] sm:$0xf]
      %v3586 = vld [vmem:[#allocation3 + $0x1c] sm:$0xf]
      %v3587 = vld [vmem:[#allocation3 + $0x20] sm:$0xf]
      %v3588 = vld [vmem:[#allocation3 + $0x30] sm:$0xf]
      %v3589 = vld [vmem:[#allocation3 + $0x34] sm:$0xf]
      %v3590 = vld [vmem:[#allocation3 + $0x44] sm:$0xf]
      %v3591 = vld [vmem:[#allocation3 + $0x48] sm:$0xf]
      %v3592 = vld [vmem:[#allocation3 + $0x58] sm:$0xf]
      %v3593 = vld [vmem:[#allocation3 + $0x5c] sm:$0xf]
      %v3594 = vld [vmem:[#allocation3 + $0x6c] sm:$0xf]
      %v3595 = vld [vmem:[#allocation3 + $0x70] sm:$0xf]
      %v3596 = vld [vmem:[#allocation3 + $0x80] sm:$0xf]
      %v3597 = vld [vmem:[#allocation3 + $0x84] sm:$0xf]
      %v3598 = vld [vmem:[#allocation3 + $0x94] sm:$0xf]
      %v3599 = vld [vmem:[#allocation3 + $0x98] sm:$0xf]
      %v3600 = vld [vmem:[#allocation3 + $0xa8] sm:$0xf]
      %v3601 = vld [vmem:[#allocation3 + $0xac] sm:$0xf]
      %v3602 = vld [vmem:[#allocation3 + $0xbc] sm:$0xf]
      %v3603 = vld [vmem:[#allocation3 + $0xc0] sm:$0xf]
      %3604 = vst [vmem:[#allocation4 + $0x4] sm:$0xf] %v3584
      %3605 = vst [vmem:[#allocation4 + $0x10] sm:$0xf] %v3585
      %3606 = vst [vmem:[#allocation4 + $0x1c] sm:$0xf] %v3586
      %3607 = vst [vmem:[#allocation4 + $0x28] sm:$0xf] %v3587
      %3608 = vst [vmem:[#allocation4 + $0x34] sm:$0xf] %v3588
      %3609 = vst [vmem:[#allocation4 + $0x40] sm:$0xf] %v3589
      %3610 = vst [vmem:[#allocation4 + $0x4c] sm:$0xf] %v3590
      %3611 = vst [vmem:[#allocation4 + $0x58] sm:$0xf] %v3591
      %3612 = vst [vmem:[#allocation4 + $0x64] sm:$0xf] %v3592
      %3613 = vst [vmem:[#allocation4 + $0x70] sm:$0xf] %v3593
      %3614 = vst [vmem:[#allocation4 + $0x7c] sm:$0xf] %v3594
      %3615 = vst [vmem:[#allocation4 + $0x88] sm:$0xf] %v3595
      %3616 = vst [vmem:[#allocation4 + $0x94] sm:$0xf] %v3596
      %3617 = vst [vmem:[#allocation4 + $0xa0] sm:$0xf] %v3597
      %3618 = vst [vmem:[#allocation4 + $0xac] sm:$0xf] %v3598
      %3619 = vst [vmem:[#allocation4 + $0xb8] sm:$0xf] %v3599
      %3620 = vst [vmem:[#allocation4 + $0xc4] sm:$0xf] %v3600
      %3621 = vst [vmem:[#allocation4 + $0xd0] sm:$0xf] %v3601
      %3622 = vst [vmem:[#allocation4 + $0xdc] sm:$0xf] %v3602
      %3623 = vst [vmem:[#allocation4 + $0xe8] sm:$0xf] %v3603
      %v3624 = vld [vmem:[#allocation3 + $0x8] sm:$0xf]
      %v3625 = vld [vmem:[#allocation3 + $0xc] sm:$0xf]
      %v3626 = vld [vmem:[#allocation3 + $0x10] sm:$0x1]
      %v3627 = vld [vmem:[#allocation3 + $0x1c] sm:$0xf]
      %v3628 = vld [vmem:[#allocation3 + $0x20] sm:$0xf]
      %v3629 = vld [vmem:[#allocation3 + $0x24] sm:$0x1]
      %v3630 = vld [vmem:[#allocation3 + $0x30] sm:$0xf]
      %v3631 = vld [vmem:[#allocation3 + $0x34] sm:$0xf]
      %v3632 = vld [vmem:[#allocation3 + $0x38] sm:$0x1]
      %v3633 = vld [vmem:[#allocation3 + $0x44] sm:$0xf]
      %v3634 = vld [vmem:[#allocation3 + $0x48] sm:$0xf]
      %v3635 = vld [vmem:[#allocation3 + $0x4c] sm:$0x1]
      %v3636 = vld [vmem:[#allocation3 + $0x58] sm:$0xf]
      %v3637 = vld [vmem:[#allocation3 + $0x5c] sm:$0xf]
      %v3638 = vld [vmem:[#allocation3 + $0x60] sm:$0x1]
      %v3639 = vld [vmem:[#allocation3 + $0x6c] sm:$0xf]
      %v3640 = vld [vmem:[#allocation3 + $0x70] sm:$0xf]
      %v3641 = vld [vmem:[#allocation3 + $0x74] sm:$0x1]
      %v3642 = vld [vmem:[#allocation3 + $0x80] sm:$0xf]
      %v3643 = vld [vmem:[#allocation3 + $0x84] sm:$0xf]
      %v3644 = vld [vmem:[#allocation3 + $0x88] sm:$0x1]
      %v3645 = vld [vmem:[#allocation3 + $0x94] sm:$0xf]
      %v3646 = vld [vmem:[#allocation3 + $0x98] sm:$0xf]
      %v3647 = vld [vmem:[#allocation3 + $0x9c] sm:$0x1]
      %v3648 = vld [vmem:[#allocation3 + $0xa8] sm:$0xf]
      %v3649 = vld [vmem:[#allocation3 + $0xac] sm:$0xf]
      %v3650 = vld [vmem:[#allocation3 + $0xb0] sm:$0x1]
      %v3651 = vld [vmem:[#allocation3 + $0xbc] sm:$0xf]
      %v3652 = vld [vmem:[#allocation3 + $0xc0] sm:$0xf]
      %v3653 = vld [vmem:[#allocation3 + $0xc4] sm:$0x1]
      %v3655 = vshrl.u32 %v3624, 16
      %v3657 = vrot.slane %v3655, 4
      %v3658 = vshll.u32 %v3624, 16
      %v3660 = vrot.slane %v3658, 5
      %v3661 = vor.u32 %v3657, %v3660
      %v3662 = vrot.slane %v3661, 4
      %v3664 = vshll.u32 %v3625, 16
      %v3666 = vrot.slane %v3664, 5
      %v3667 = vsel %vm1237, %v3662, %v3666
      %v3668 = vshrl.u32 %v3625, 16
      %v3670 = vrot.slane %v3668, 4
      %v3671 = vor.u32 %v3670, %v3666
      %v3672 = vrot.slane %v3671, 4
      %v3674 = vshll.u32 %v3626, 16
      %v3676 = vrot.slane %v3674, 5
      %v3677 = vsel %vm1237, %v3672, %v3676
      %v3679 = vshrl.u32 %v3627, 16
      %v3681 = vrot.slane %v3679, 4
      %v3682 = vshll.u32 %v3627, 16
      %v3684 = vrot.slane %v3682, 5
      %v3685 = vor.u32 %v3681, %v3684
      %v3686 = vrot.slane %v3685, 4
      %v3688 = vshll.u32 %v3628, 16
      %v3690 = vrot.slane %v3688, 5
      %v3691 = vsel %vm1237, %v3686, %v3690
      %v3692 = vshrl.u32 %v3628, 16
      %v3694 = vrot.slane %v3692, 4
      %v3695 = vor.u32 %v3694, %v3690
      %v3696 = vrot.slane %v3695, 4
      %v3698 = vshll.u32 %v3629, 16
      %v3700 = vrot.slane %v3698, 5
      %v3701 = vsel %vm1237, %v3696, %v3700
      %v3703 = vshrl.u32 %v3630, 16
      %v3705 = vrot.slane %v3703, 4
      %v3706 = vshll.u32 %v3630, 16
      %v3708 = vrot.slane %v3706, 5
      %v3709 = vor.u32 %v3705, %v3708
      %v3710 = vrot.slane %v3709, 4
      %v3712 = vshll.u32 %v3631, 16
      %v3714 = vrot.slane %v3712, 5
      %v3715 = vsel %vm1237, %v3710, %v3714
      %v3716 = vshrl.u32 %v3631, 16
      %v3718 = vrot.slane %v3716, 4
      %v3719 = vor.u32 %v3718, %v3714
      %v3720 = vrot.slane %v3719, 4
      %v3722 = vshll.u32 %v3632, 16
      %v3724 = vrot.slane %v3722, 5
      %v3725 = vsel %vm1237, %v3720, %v3724
      %v3727 = vshrl.u32 %v3633, 16
      %v3729 = vrot.slane %v3727, 4
      %v3730 = vshll.u32 %v3633, 16
      %v3732 = vrot.slane %v3730, 5
      %v3733 = vor.u32 %v3729, %v3732
      %v3734 = vrot.slane %v3733, 4
      %v3736 = vshll.u32 %v3634, 16
      %v3738 = vrot.slane %v3736, 5
      %v3739 = vsel %vm1237, %v3734, %v3738
      %v3740 = vshrl.u32 %v3634, 16
      %v3742 = vrot.slane %v3740, 4
      %v3743 = vor.u32 %v3742, %v3738
      %v3744 = vrot.slane %v3743, 4
      %v3746 = vshll.u32 %v3635, 16
      %v3748 = vrot.slane %v3746, 5
      %v3749 = vsel %vm1237, %v3744, %v3748
      %v3751 = vshrl.u32 %v3636, 16
      %v3753 = vrot.slane %v3751, 4
      %v3754 = vshll.u32 %v3636, 16
      %v3756 = vrot.slane %v3754, 5
      %v3757 = vor.u32 %v3753, %v3756
      %v3758 = vrot.slane %v3757, 4
      %v3760 = vshll.u32 %v3637, 16
      %v3762 = vrot.slane %v3760, 5
      %v3763 = vsel %vm1237, %v3758, %v3762
      %v3764 = vshrl.u32 %v3637, 16
      %v3766 = vrot.slane %v3764, 4
      %v3767 = vor.u32 %v3766, %v3762
      %v3768 = vrot.slane %v3767, 4
      %v3770 = vshll.u32 %v3638, 16
      %v3772 = vrot.slane %v3770, 5
      %v3773 = vsel %vm1237, %v3768, %v3772
      %v3775 = vshrl.u32 %v3639, 16
      %v3777 = vrot.slane %v3775, 4
      %v3778 = vshll.u32 %v3639, 16
      %v3780 = vrot.slane %v3778, 5
      %v3781 = vor.u32 %v3777, %v3780
      %v3782 = vrot.slane %v3781, 4
      %v3784 = vshll.u32 %v3640, 16
      %v3786 = vrot.slane %v3784, 5
      %v3787 = vsel %vm1237, %v3782, %v3786
      %v3788 = vshrl.u32 %v3640, 16
      %v3790 = vrot.slane %v3788, 4
      %v3791 = vor.u32 %v3790, %v3786
      %v3792 = vrot.slane %v3791, 4
      %v3794 = vshll.u32 %v3641, 16
      %v3796 = vrot.slane %v3794, 5
      %v3797 = vsel %vm1237, %v3792, %v3796
      %v3799 = vshrl.u32 %v3642, 16
      %v3801 = vrot.slane %v3799, 4
      %v3802 = vshll.u32 %v3642, 16
      %v3804 = vrot.slane %v3802, 5
      %v3805 = vor.u32 %v3801, %v3804
      %v3806 = vrot.slane %v3805, 4
      %v3808 = vshll.u32 %v3643, 16
      %v3810 = vrot.slane %v3808, 5
      %v3811 = vsel %vm1237, %v3806, %v3810
      %v3812 = vshrl.u32 %v3643, 16
      %v3814 = vrot.slane %v3812, 4
      %v3815 = vor.u32 %v3814, %v3810
      %v3816 = vrot.slane %v3815, 4
      %v3818 = vshll.u32 %v3644, 16
      %v3820 = vrot.slane %v3818, 5
      %v3821 = vsel %vm1237, %v3816, %v3820
      %v3823 = vshrl.u32 %v3645, 16
      %v3825 = vrot.slane %v3823, 4
      %v3826 = vshll.u32 %v3645, 16
      %v3828 = vrot.slane %v3826, 5
      %v3829 = vor.u32 %v3825, %v3828
      %v3830 = vrot.slane %v3829, 4
      %v3832 = vshll.u32 %v3646, 16
      %v3834 = vrot.slane %v3832, 5
      %v3835 = vsel %vm1237, %v3830, %v3834
      %v3836 = vshrl.u32 %v3646, 16
      %v3838 = vrot.slane %v3836, 4
      %v3839 = vor.u32 %v3838, %v3834
      %v3840 = vrot.slane %v3839, 4
      %v3842 = vshll.u32 %v3647, 16
      %v3844 = vrot.slane %v3842, 5
      %v3845 = vsel %vm1237, %v3840, %v3844
      %v3847 = vshrl.u32 %v3648, 16
      %v3849 = vrot.slane %v3847, 4
      %v3850 = vshll.u32 %v3648, 16
      %v3852 = vrot.slane %v3850, 5
      %v3853 = vor.u32 %v3849, %v3852
      %v3854 = vrot.slane %v3853, 4
      %v3856 = vshll.u32 %v3649, 16
      %v3858 = vrot.slane %v3856, 5
      %v3859 = vsel %vm1237, %v3854, %v3858
      %v3860 = vshrl.u32 %v3649, 16
      %v3862 = vrot.slane %v3860, 4
      %v3863 = vor.u32 %v3862, %v3858
      %v3864 = vrot.slane %v3863, 4
      %v3866 = vshll.u32 %v3650, 16
      %v3868 = vrot.slane %v3866, 5
      %v3869 = vsel %vm1237, %v3864, %v3868
      %v3871 = vshrl.u32 %v3651, 16
      %v3873 = vrot.slane %v3871, 4
      %v3874 = vshll.u32 %v3651, 16
      %v3876 = vrot.slane %v3874, 5
      %v3877 = vor.u32 %v3873, %v3876
      %v3878 = vrot.slane %v3877, 4
      %v3880 = vshll.u32 %v3652, 16
      %v3882 = vrot.slane %v3880, 5
      %v3883 = vsel %vm1237, %v3878, %v3882
      %v3884 = vshrl.u32 %v3652, 16
      %v3886 = vrot.slane %v3884, 4
      %v3887 = vor.u32 %v3886, %v3882
      %v3888 = vrot.slane %v3887, 4
      %v3890 = vshll.u32 %v3653, 16
      %v3892 = vrot.slane %v3890, 5
      %v3893 = vsel %vm1237, %v3888, %v3892
      %3914 = vst [vmem:[#allocation4 + $0x8] sm:$0xf] %v3667
      %3915 = vst [vmem:[#allocation4 + $0x14] sm:$0xf] %v3677
      %3916 = vst [vmem:[#allocation4 + $0x20] sm:$0xf] %v3691
      %3917 = vst [vmem:[#allocation4 + $0x2c] sm:$0xf] %v3701
      %3918 = vst [vmem:[#allocation4 + $0x38] sm:$0xf] %v3715
      %3919 = vst [vmem:[#allocation4 + $0x44] sm:$0xf] %v3725
      %3920 = vst [vmem:[#allocation4 + $0x50] sm:$0xf] %v3739
      %3921 = vst [vmem:[#allocation4 + $0x5c] sm:$0xf] %v3749
      %3922 = vst [vmem:[#allocation4 + $0x68] sm:$0xf] %v3763
      %3923 = vst [vmem:[#allocation4 + $0x74] sm:$0xf] %v3773
      %3924 = vst [vmem:[#allocation4 + $0x80] sm:$0xf] %v3787
      %3925 = vst [vmem:[#allocation4 + $0x8c] sm:$0xf] %v3797
      %3926 = vst [vmem:[#allocation4 + $0x98] sm:$0xf] %v3811
      %3927 = vst [vmem:[#allocation4 + $0xa4] sm:$0xf] %v3821
      %3928 = vst [vmem:[#allocation4 + $0xb0] sm:$0xf] %v3835
      %3929 = vst [vmem:[#allocation4 + $0xbc] sm:$0xf] %v3845
      %3930 = vst [vmem:[#allocation4 + $0xc8] sm:$0xf] %v3859
      %3931 = vst [vmem:[#allocation4 + $0xd4] sm:$0xf] %v3869
      %3932 = vst [vmem:[#allocation4 + $0xe0] sm:$0xf] %v3883
      %3933 = vst [vmem:[#allocation4 + $0xec] sm:$0xf] %v3893
      %v3934 = vld [vmem:[#allocation4] sm:$0xff]
      %v3935 = vld [vmem:[#allocation4 + $0x8] sm:$0xf]
      %v3936 = vld [vmem:[#allocation4 + $0xc] sm:$0xff]
      %v3937 = vld [vmem:[#allocation4 + $0x14] sm:$0xf]
      %v3938 = vld [vmem:[#allocation4 + $0x18] sm:$0xff]
      %v3939 = vld [vmem:[#allocation4 + $0x20] sm:$0xf]
      %v3940 = vld [vmem:[#allocation4 + $0x24] sm:$0xff]
      %v3941 = vld [vmem:[#allocation4 + $0x2c] sm:$0xf]
      %v3942 = vld [vmem:[#allocation4 + $0x30] sm:$0xff]
      %v3943 = vld [vmem:[#allocation4 + $0x38] sm:$0xf]
      %v3944 = vld [vmem:[#allocation4 + $0x3c] sm:$0xff]
      %v3945 = vld [vmem:[#allocation4 + $0x44] sm:$0xf]
      %v3946 = vld [vmem:[#allocation4 + $0x48] sm:$0xff]
      %v3947 = vld [vmem:[#allocation4 + $0x50] sm:$0xf]
      %v3948 = vld [vmem:[#allocation4 + $0x54] sm:$0xff]
      %v3949 = vld [vmem:[#allocation4 + $0x5c] sm:$0xf]
      %v3950 = vld [vmem:[#allocation4 + $0x60] sm:$0xff]
      %v3951 = vld [vmem:[#allocation4 + $0x68] sm:$0xf]
      %v3952 = vld [vmem:[#allocation4 + $0x6c] sm:$0xff]
      %v3953 = vld [vmem:[#allocation4 + $0x74] sm:$0xf]
      %v3954 = vld [vmem:[#allocation4 + $0x78] sm:$0xff]
      %v3955 = vld [vmem:[#allocation4 + $0x80] sm:$0xf]
      %v3956 = vld [vmem:[#allocation4 + $0x84] sm:$0xff]
      %v3957 = vld [vmem:[#allocation4 + $0x8c] sm:$0xf]
      %v3958 = vld [vmem:[#allocation4 + $0x90] sm:$0xff]
      %v3959 = vld [vmem:[#allocation4 + $0x98] sm:$0xf]
      %v3960 = vld [vmem:[#allocation4 + $0x9c] sm:$0xff]
      %v3961 = vld [vmem:[#allocation4 + $0xa4] sm:$0xf]
      %v3962 = vld [vmem:[#allocation4 + $0xa8] sm:$0xff]
      %v3963 = vld [vmem:[#allocation4 + $0xb0] sm:$0xf]
      %v3964 = vld [vmem:[#allocation4 + $0xb4] sm:$0xff]
      %v3965 = vld [vmem:[#allocation4 + $0xbc] sm:$0xf]
      %v3966 = vld [vmem:[%s8] sm:$0xf]
      %v3967 = vld [vmem:[%s8 + $0x4] sm:$0xf]
      %v3968 = vld [vmem:[%s8 + $0x8] sm:$0xf]
      %v3969 = vld [vmem:[%s8 + $0xc] sm:$0xf]
      %v3970 = vld [vmem:[%s8 + $0x10] sm:$0xf]
      %v3971 = vld [vmem:[%s8 + $0x14] sm:$0xf]
      %v3972 = vld [vmem:[%s8 + $0x18] sm:$0xf]
      %v3973 = vld [vmem:[%s8 + $0x1c] sm:$0xf]
      %v3974 = vld [vmem:[%s8 + $0x20] sm:$0xf]
      %v3975 = vld [vmem:[%s8 + $0x24] sm:$0xf]
      %v3976 = vld [vmem:[%s8 + $0x28] sm:$0xf]
      %v3977 = vld [vmem:[%s8 + $0x2c] sm:$0xf]
      %v3978 = vld [vmem:[%s8 + $0x30] sm:$0xf]
      %v3979 = vld [vmem:[%s8 + $0x34] sm:$0xf]
      %v3980 = vld [vmem:[%s8 + $0x38] sm:$0xf]
      %v3981 = vld [vmem:[%s8 + $0x3c] sm:$0xf]
      %v3982 = vld [vmem:[%s8 + $0x40] sm:$0xf]
      %v3983 = vld [vmem:[%s8 + $0x44] sm:$0xf]
      %v3984 = vld [vmem:[%s8 + $0x48] sm:$0xf]
      %v3985 = vld [vmem:[%s8 + $0x4c] sm:$0xf]
      %v3986 = vld [vmem:[%s8 + $0x50] sm:$0xf]
      %v3987 = vld [vmem:[%s8 + $0x54] sm:$0xf]
      %v3988 = vld [vmem:[%s8 + $0x58] sm:$0xf]
      %v3989 = vld [vmem:[%s8 + $0x5c] sm:$0xf]
      %v3990 = vld [vmem:[%s8 + $0x60] sm:$0xf]
      %v3991 = vld [vmem:[%s8 + $0x64] sm:$0xf]
      %v3992 = vld [vmem:[%s8 + $0x68] sm:$0xf]
      %v3993 = vld [vmem:[%s8 + $0x6c] sm:$0xf]
      %v3994 = vld [vmem:[%s8 + $0x70] sm:$0xf]
      %v3995 = vld [vmem:[%s8 + $0x74] sm:$0xf]
      %v3996 = vld [vmem:[%s8 + $0x78] sm:$0xf]
      %v3997 = vld [vmem:[%s8 + $0x7c] sm:$0xf]
      %v3998 = vld [vmem:[%s8 + $0x80] sm:$0xf]
      %v3999 = vld [vmem:[%s8 + $0x84] sm:$0xf]
      %v4000 = vld [vmem:[%s8 + $0x88] sm:$0xf]
      %v4001 = vld [vmem:[%s8 + $0x8c] sm:$0xf]
      %v4002 = vld [vmem:[%s8 + $0x90] sm:$0xf]
      %v4003 = vld [vmem:[%s8 + $0x94] sm:$0xf]
      %v4004 = vld [vmem:[%s8 + $0x98] sm:$0xf]
      %v4005 = vld [vmem:[%s8 + $0x9c] sm:$0xf]
      %v4006 = vld [vmem:[%s8 + $0xa0] sm:$0xf]
      %v4007 = vld [vmem:[%s8 + $0xa4] sm:$0xf]
      %v4008 = vld [vmem:[%s8 + $0xa8] sm:$0xf]
      %v4009 = vld [vmem:[%s8 + $0xac] sm:$0xf]
      %v4010 = vld [vmem:[%s8 + $0xb0] sm:$0xf]
      %v4011 = vld [vmem:[%s8 + $0xb4] sm:$0xf]
      %v4012 = vld [vmem:[%s8 + $0xb8] sm:$0xf]
      %v4013 = vld [vmem:[%s8 + $0xbc] sm:$0xf]
      %v4014 = vld [vmem:[#allocation4 + $0xc0] sm:$0xff]
      %v4015 = vld [vmem:[#allocation4 + $0xc8] sm:$0xf]
      %v4016 = vld [vmem:[#allocation4 + $0xcc] sm:$0xff]
      %v4017 = vld [vmem:[#allocation4 + $0xd4] sm:$0xf]
      %s4018 = scalar_lea.vmem %s8, 192
      %v4019 = vld [vmem:[%s4018] sm:$0xf]
      %v4020 = vld [vmem:[%s4018 + $0x4] sm:$0xf]
      %v4021 = vld [vmem:[%s4018 + $0x8] sm:$0xf]
      %v4022 = vld [vmem:[%s4018 + $0xc] sm:$0xf]
      %v4023 = vld [vmem:[%s4018 + $0x10] sm:$0xf]
      %v4024 = vld [vmem:[%s4018 + $0x14] sm:$0xf]
      %v4025 = vld [vmem:[%s4018 + $0x18] sm:$0xf]
      %v4026 = vld [vmem:[%s4018 + $0x1c] sm:$0xf]
      %v4027 = vld [vmem:[%s4018 + $0x20] sm:$0xf]
      %v4028 = vld [vmem:[%s4018 + $0x24] sm:$0xf]
      %v4029 = vld [vmem:[%s4018 + $0x28] sm:$0xf]
      %v4030 = vld [vmem:[%s4018 + $0x2c] sm:$0xf]
      %v4031 = vld [vmem:[%s4018 + $0x30] sm:$0xf]
      %v4032 = vld [vmem:[%s4018 + $0x34] sm:$0xf]
      %v4033 = vld [vmem:[%s4018 + $0x38] sm:$0xf]
      %v4034 = vld [vmem:[%s4018 + $0x3c] sm:$0xf]
      %v4035 = vld [vmem:[%s4018 + $0x40] sm:$0xf]
      %v4036 = vld [vmem:[%s4018 + $0x44] sm:$0xf]
      %v4037 = vld [vmem:[%s4018 + $0x48] sm:$0xf]
      %v4038 = vld [vmem:[%s4018 + $0x4c] sm:$0xf]
      %v4039 = vld [vmem:[%s4018 + $0x50] sm:$0xf]
      %v4040 = vld [vmem:[%s4018 + $0x54] sm:$0xf]
      %v4041 = vld [vmem:[%s4018 + $0x58] sm:$0xf]
      %v4042 = vld [vmem:[%s4018 + $0x5c] sm:$0xf]
      %v4043 = vld [vmem:[%s4018 + $0x60] sm:$0xf]
      %v4044 = vld [vmem:[%s4018 + $0x64] sm:$0xf]
      %v4045 = vld [vmem:[%s4018 + $0x68] sm:$0xf]
      %v4046 = vld [vmem:[%s4018 + $0x6c] sm:$0xf]
      %v4047 = vld [vmem:[%s4018 + $0x70] sm:$0xf]
      %v4048 = vld [vmem:[%s4018 + $0x74] sm:$0xf]
      %v4049 = vld [vmem:[%s4018 + $0x78] sm:$0xf]
      %v4050 = vld [vmem:[%s4018 + $0x7c] sm:$0xf]
      %v4051 = vld [vmem:[%s4018 + $0x80] sm:$0xf]
      %v4052 = vld [vmem:[%s4018 + $0x84] sm:$0xf]
      %v4053 = vld [vmem:[%s4018 + $0x88] sm:$0xf]
      %v4054 = vld [vmem:[%s4018 + $0x8c] sm:$0xf]
      %v4055 = vld [vmem:[%s4018 + $0x90] sm:$0xf]
      %v4056 = vld [vmem:[%s4018 + $0x94] sm:$0xf]
      %v4057 = vld [vmem:[%s4018 + $0x98] sm:$0xf]
      %v4058 = vld [vmem:[%s4018 + $0x9c] sm:$0xf]
      %v4059 = vld [vmem:[%s4018 + $0xa0] sm:$0xf]
      %v4060 = vld [vmem:[%s4018 + $0xa4] sm:$0xf]
      %v4061 = vld [vmem:[%s4018 + $0xa8] sm:$0xf]
      %v4062 = vld [vmem:[%s4018 + $0xac] sm:$0xf]
      %v4063 = vld [vmem:[%s4018 + $0xb0] sm:$0xf]
      %v4064 = vld [vmem:[%s4018 + $0xb4] sm:$0xf]
      %v4065 = vld [vmem:[%s4018 + $0xb8] sm:$0xf]
      %v4066 = vld [vmem:[%s4018 + $0xbc] sm:$0xf]
      %v4099 = vunpack.c.l.b16 %v3938
      %v4100 = vunpack.c.h.b16 %v3938
      %v4101 = vunpack.c.l.b16 %v3939
      %v4102 = vunpack.c.l.b16 %v3940
      %v4103 = vunpack.c.h.b16 %v3940
      %v4104 = vunpack.c.l.b16 %v3941
      %v4105 = vunpack.c.l.b16 %v3942
      %v4106 = vunpack.c.h.b16 %v3942
      %v4107 = vunpack.c.l.b16 %v3943
      %v4108 = vunpack.c.l.b16 %v3944
      %v4109 = vunpack.c.h.b16 %v3944
      %v4110 = vunpack.c.l.b16 %v3945
      %v4111 = vunpack.c.l.b16 %v3946
      %v4112 = vunpack.c.h.b16 %v3946
      %v4113 = vunpack.c.l.b16 %v3947
      %v4114 = vunpack.c.l.b16 %v3948
      %v4115 = vunpack.c.h.b16 %v3948
      %v4116 = vunpack.c.l.b16 %v3949
      %v4117 = vunpack.c.l.b16 %v3950
      %v4118 = vunpack.c.h.b16 %v3950
      %v4119 = vunpack.c.l.b16 %v3951
      %v4120 = vunpack.c.l.b16 %v3952
      %v4121 = vunpack.c.h.b16 %v3952
      %v4122 = vunpack.c.l.b16 %v3953
      %v4123 = vunpack.c.l.b16 %v3954
      %v4124 = vunpack.c.h.b16 %v3954
      %v4125 = vunpack.c.l.b16 %v3955
      %v4126 = vunpack.c.l.b16 %v3956
      %v4127 = vunpack.c.h.b16 %v3956
      %v4128 = vunpack.c.l.b16 %v3957
      %v4129 = vunpack.c.l.b16 %v3958
      %v4130 = vunpack.c.h.b16 %v3958
      %v4131 = vunpack.c.l.b16 %v3959
      %v4132 = vunpack.c.l.b16 %v3960
      %v4133 = vunpack.c.h.b16 %v3960
      %v4134 = vunpack.c.l.b16 %v3961
      %v4135 = vunpack.c.l.b16 %v3962
      %v4136 = vunpack.c.h.b16 %v3962
      %v4137 = vunpack.c.l.b16 %v3963
      %v4138 = vunpack.c.l.b16 %v3964
      %v4139 = vunpack.c.h.b16 %v3964
      %v4140 = vunpack.c.l.b16 %v3965
      %v4141 = vunpack.c.l.b16 %v4014
      %v4142 = vunpack.c.h.b16 %v4014
      %v4143 = vunpack.c.l.b16 %v4015
      %v4144 = vunpack.c.l.b16 %v4016
      %v4145 = vunpack.c.h.b16 %v4016
      %v4146 = vunpack.c.l.b16 %v4017
      %v4147 = vpack.c.b16 %v4102, %v4099
      %v4148 = vpack.c.b16 %v4103, %v4100
      %v4149 = vpack.c.b16 %v4104, %v4101
      %v4150 = vpack.c.b16 %v4108, %v4105
      %v4151 = vpack.c.b16 %v4109, %v4106
      %v4152 = vpack.c.b16 %v4110, %v4107
      %v4153 = vpack.c.b16 %v4114, %v4111
      %v4154 = vpack.c.b16 %v4115, %v4112
      %v4155 = vpack.c.b16 %v4116, %v4113
      %v4156 = vpack.c.b16 %v4120, %v4117
      %v4157 = vpack.c.b16 %v4121, %v4118
      %v4158 = vpack.c.b16 %v4122, %v4119
      %v4159 = vpack.c.b16 %v4126, %v4123
      %v4160 = vpack.c.b16 %v4127, %v4124
      %v4161 = vpack.c.b16 %v4128, %v4125
      %v4162 = vpack.c.b16 %v4132, %v4129
      %v4163 = vpack.c.b16 %v4133, %v4130
      %v4164 = vpack.c.b16 %v4134, %v4131
      %v4165 = vpack.c.b16 %v4138, %v4135
      %v4166 = vpack.c.b16 %v4139, %v4136
      %v4167 = vpack.c.b16 %v4140, %v4137
      %v4168 = vpack.c.b16 %v4144, %v4141
      %v4169 = vpack.c.b16 %v4145, %v4142
      %v4170 = vpack.c.b16 %v4146, %v4143
      %v4243 = vunpack.c.l.b16 %v4019
      %v4244 = vunpack.c.l.b16 %v4020
      %v4245 = vunpack.c.l.b16 %v4021
      %v4246 = vunpack.c.l.b16 %v4022
      %v4247 = vunpack.c.l.b16 %v4023
      %v4248 = vunpack.c.l.b16 %v4024
      %v4249 = vunpack.c.l.b16 %v4025
      %v4250 = vunpack.c.l.b16 %v4026
      %v4251 = vunpack.c.l.b16 %v4027
      %v4252 = vunpack.c.l.b16 %v4028
      %v4253 = vunpack.c.l.b16 %v4029
      %v4254 = vunpack.c.l.b16 %v4030
      %v4255 = vunpack.c.l.b16 %v4031
      %v4256 = vunpack.c.l.b16 %v4032
      %v4257 = vunpack.c.l.b16 %v4033
      %v4258 = vunpack.c.l.b16 %v4034
      %v4259 = vunpack.c.l.b16 %v4035
      %v4260 = vunpack.c.l.b16 %v4036
      %v4261 = vunpack.c.l.b16 %v4037
      %v4262 = vunpack.c.l.b16 %v4038
      %v4263 = vunpack.c.l.b16 %v4039
      %v4264 = vunpack.c.l.b16 %v4040
      %v4265 = vunpack.c.l.b16 %v4041
      %v4266 = vunpack.c.l.b16 %v4042
      %v4267 = vunpack.c.l.b16 %v4043
      %v4268 = vunpack.c.l.b16 %v4044
      %v4269 = vunpack.c.l.b16 %v4045
      %v4270 = vunpack.c.l.b16 %v4046
      %v4271 = vunpack.c.l.b16 %v4047
      %v4272 = vunpack.c.l.b16 %v4048
      %v4273 = vunpack.c.l.b16 %v4049
      %v4274 = vunpack.c.l.b16 %v4050
      %v4275 = vunpack.c.l.b16 %v4051
      %v4276 = vunpack.c.l.b16 %v4052
      %v4277 = vunpack.c.l.b16 %v4053
      %v4278 = vunpack.c.l.b16 %v4054
      %v4279 = vunpack.c.l.b16 %v4055
      %v4280 = vunpack.c.l.b16 %v4056
      %v4281 = vunpack.c.l.b16 %v4057
      %v4282 = vunpack.c.l.b16 %v4058
      %v4283 = vunpack.c.l.b16 %v4059
      %v4284 = vunpack.c.l.b16 %v4060
      %v4285 = vunpack.c.l.b16 %v4061
      %v4286 = vunpack.c.l.b16 %v4062
      %v4287 = vunpack.c.l.b16 %v4063
      %v4288 = vunpack.c.l.b16 %v4064
      %v4289 = vunpack.c.l.b16 %v4065
      %v4290 = vunpack.c.l.b16 %v4066
      %v4291 = vpack.c.b16 %v4244, %v4243
      %v4292 = vpack.c.b16 %v4246, %v4245
      %v4293 = vpack.c.b16 %v4248, %v4247
      %v4294 = vpack.c.b16 %v4250, %v4249
      %v4295 = vpack.c.b16 %v4252, %v4251
      %v4296 = vpack.c.b16 %v4254, %v4253
      %v4297 = vpack.c.b16 %v4256, %v4255
      %v4298 = vpack.c.b16 %v4258, %v4257
      %v4299 = vpack.c.b16 %v4260, %v4259
      %v4300 = vpack.c.b16 %v4262, %v4261
      %v4301 = vpack.c.b16 %v4264, %v4263
      %v4302 = vpack.c.b16 %v4266, %v4265
      %v4303 = vpack.c.b16 %v4268, %v4267
      %v4304 = vpack.c.b16 %v4270, %v4269
      %v4305 = vpack.c.b16 %v4272, %v4271
      %v4306 = vpack.c.b16 %v4274, %v4273
      %v4307 = vpack.c.b16 %v4276, %v4275
      %v4308 = vpack.c.b16 %v4278, %v4277
      %v4309 = vpack.c.b16 %v4280, %v4279
      %v4310 = vpack.c.b16 %v4282, %v4281
      %v4311 = vpack.c.b16 %v4284, %v4283
      %v4312 = vpack.c.b16 %v4286, %v4285
      %v4313 = vpack.c.b16 %v4288, %v4287
      %v4314 = vpack.c.b16 %v4290, %v4289
      %4339 = vmatpush.bf16.msra.mxu0 %v4298
      %4340 = vmatpush.bf16.msra.mxu0 %v4297
      %4341 = vmatpush.bf16.msra.mxu0 %v4296
      %4342 = vmatpush.bf16.msra.mxu0 %v4295
      %4343 = vmatpush.bf16.msra.mxu0 %v4294
      %4344 = vmatpush.bf16.msra.mxu0 %v4293
      %4345 = vmatpush.bf16.msra.mxu0 %v4292
      %4346 = vmatpush.bf16.msra.mxu0 %v4291
      %4347 = vmatmul.bf16.gmra.mxu0 %v4147
      %v4348 = vpop.f32.mrf.mxu0
      %v4349 = vadd.f32 0.0, %v4348
      %v4350 = vpop.f32.mrf.mxu0
      %v4351 = vadd.f32 0.0, %v4350
      %4352 = vmatmul.bf16.gmra.mxu0 %v4150
      %v4353 = vpop.f32.mrf.mxu0
      %v4354 = vadd.f32 0.0, %v4353
      %v4355 = vpop.f32.mrf.mxu0
      %v4356 = vadd.f32 0.0, %v4355
      %4357 = vmatmul.bf16.gmra.mxu0 %v4153
      %v4358 = vpop.f32.mrf.mxu0
      %v4359 = vadd.f32 0.0, %v4358
      %v4360 = vpop.f32.mrf.mxu0
      %v4361 = vadd.f32 0.0, %v4360
      %4362 = vmatmul.bf16.gmra.mxu0 %v4156
      %v4363 = vpop.f32.mrf.mxu0
      %v4364 = vadd.f32 0.0, %v4363
      %v4365 = vpop.f32.mrf.mxu0
      %v4366 = vadd.f32 0.0, %v4365
      %4367 = vmatmul.bf16.gmra.mxu0 %v4159
      %v4368 = vpop.f32.mrf.mxu0
      %v4369 = vadd.f32 0.0, %v4368
      %v4370 = vpop.f32.mrf.mxu0
      %v4371 = vadd.f32 0.0, %v4370
      %4372 = vmatmul.bf16.gmra.mxu0 %v4162
      %v4373 = vpop.f32.mrf.mxu0
      %v4374 = vadd.f32 0.0, %v4373
      %v4375 = vpop.f32.mrf.mxu0
      %v4376 = vadd.f32 0.0, %v4375
      %4377 = vmatmul.bf16.gmra.mxu0 %v4165
      %v4378 = vpop.f32.mrf.mxu0
      %v4379 = vadd.f32 0.0, %v4378
      %v4380 = vpop.f32.mrf.mxu0
      %v4381 = vadd.f32 0.0, %v4380
      %4382 = vmatmul.bf16.gmra.mxu0 %v4168
      %v4383 = vpop.f32.mrf.mxu0
      %v4384 = vadd.f32 0.0, %v4383
      %v4385 = vpop.f32.mrf.mxu0
      %v4386 = vadd.f32 0.0, %v4385
      %4387 = vdwg.mxu0
      %4388 = vmatpush.bf16.msra.mxu0 %v4306
      %4389 = vmatpush.bf16.msra.mxu0 %v4305
      %4390 = vmatpush.bf16.msra.mxu0 %v4304
      %4391 = vmatpush.bf16.msra.mxu0 %v4303
      %4392 = vmatpush.bf16.msra.mxu0 %v4302
      %4393 = vmatpush.bf16.msra.mxu0 %v4301
      %4394 = vmatpush.bf16.msra.mxu0 %v4300
      %4395 = vmatpush.bf16.msra.mxu0 %v4299
      %4396 = vmatmul.bf16.gmra.mxu0 %v4148
      %v4397 = vpop.f32.mrf.mxu0
      %v4398 = vadd.f32 %v4349, %v4397
      %v4399 = vpop.f32.mrf.mxu0
      %v4400 = vadd.f32 %v4351, %v4399
      %4401 = vmatmul.bf16.gmra.mxu0 %v4151
      %v4402 = vpop.f32.mrf.mxu0
      %v4403 = vadd.f32 %v4354, %v4402
      %v4404 = vpop.f32.mrf.mxu0
      %v4405 = vadd.f32 %v4356, %v4404
      %4406 = vmatmul.bf16.gmra.mxu0 %v4154
      %v4407 = vpop.f32.mrf.mxu0
      %v4408 = vadd.f32 %v4359, %v4407
      %v4409 = vpop.f32.mrf.mxu0
      %v4410 = vadd.f32 %v4361, %v4409
      %4411 = vmatmul.bf16.gmra.mxu0 %v4157
      %v4412 = vpop.f32.mrf.mxu0
      %v4413 = vadd.f32 %v4364, %v4412
      %v4414 = vpop.f32.mrf.mxu0
      %v4415 = vadd.f32 %v4366, %v4414
      %4416 = vmatmul.bf16.gmra.mxu0 %v4160
      %v4417 = vpop.f32.mrf.mxu0
      %v4418 = vadd.f32 %v4369, %v4417
      %v4419 = vpop.f32.mrf.mxu0
      %v4420 = vadd.f32 %v4371, %v4419
      %4421 = vmatmul.bf16.gmra.mxu0 %v4163
      %v4422 = vpop.f32.mrf.mxu0
      %v4423 = vadd.f32 %v4374, %v4422
      %v4424 = vpop.f32.mrf.mxu0
      %v4425 = vadd.f32 %v4376, %v4424
      %4426 = vmatmul.bf16.gmra.mxu0 %v4166
      %v4427 = vpop.f32.mrf.mxu0
      %v4428 = vadd.f32 %v4379, %v4427
      %v4429 = vpop.f32.mrf.mxu0
      %v4430 = vadd.f32 %v4381, %v4429
      %4431 = vmatmul.bf16.gmra.mxu0 %v4169
      %v4432 = vpop.f32.mrf.mxu0
      %v4433 = vadd.f32 %v4384, %v4432
      %v4434 = vpop.f32.mrf.mxu0
      %v4435 = vadd.f32 %v4386, %v4434
      %4436 = vdwg.mxu0
      %4437 = vmatpush.bf16.msra.mxu0 %v4314
      %4438 = vmatpush.bf16.msra.mxu0 %v4313
      %4439 = vmatpush.bf16.msra.mxu0 %v4312
      %4440 = vmatpush.bf16.msra.mxu0 %v4311
      %4441 = vmatpush.bf16.msra.mxu0 %v4310
      %4442 = vmatpush.bf16.msra.mxu0 %v4309
      %4443 = vmatpush.bf16.msra.mxu0 %v4308
      %4444 = vmatpush.bf16.msra.mxu0 %v4307
      %4445 = vmatmul.bf16.gmra.mxu0 %v4149
      %v4446 = vpop.f32.mrf.mxu0
      %v4447 = vadd.f32 %v4398, %v4446
      %v4448 = vpop.f32.mrf.mxu0
      %v4449 = vadd.f32 %v4400, %v4448
      %4450 = vmatmul.bf16.gmra.mxu0 %v4152
      %v4451 = vpop.f32.mrf.mxu0
      %v4452 = vadd.f32 %v4403, %v4451
      %v4453 = vpop.f32.mrf.mxu0
      %v4454 = vadd.f32 %v4405, %v4453
      %4455 = vmatmul.bf16.gmra.mxu0 %v4155
      %v4456 = vpop.f32.mrf.mxu0
      %v4457 = vadd.f32 %v4408, %v4456
      %v4458 = vpop.f32.mrf.mxu0
      %v4459 = vadd.f32 %v4410, %v4458
      %4460 = vmatmul.bf16.gmra.mxu0 %v4158
      %v4461 = vpop.f32.mrf.mxu0
      %v4462 = vadd.f32 %v4413, %v4461
      %v4463 = vpop.f32.mrf.mxu0
      %v4464 = vadd.f32 %v4415, %v4463
      %4465 = vmatmul.bf16.gmra.mxu0 %v4161
      %v4466 = vpop.f32.mrf.mxu0
      %v4467 = vadd.f32 %v4418, %v4466
      %v4468 = vpop.f32.mrf.mxu0
      %v4469 = vadd.f32 %v4420, %v4468
      %4470 = vmatmul.bf16.gmra.mxu0 %v4164
      %v4471 = vpop.f32.mrf.mxu0
      %v4472 = vadd.f32 %v4423, %v4471
      %v4473 = vpop.f32.mrf.mxu0
      %v4474 = vadd.f32 %v4425, %v4473
      %4475 = vmatmul.bf16.gmra.mxu0 %v4167
      %v4476 = vpop.f32.mrf.mxu0
      %v4477 = vadd.f32 %v4428, %v4476
      %v4478 = vpop.f32.mrf.mxu0
      %v4479 = vadd.f32 %v4430, %v4478
      %4480 = vmatmul.bf16.gmra.mxu0 %v4170
      %v4481 = vpop.f32.mrf.mxu0
      %v4482 = vadd.f32 %v4433, %v4481
      %v4483 = vpop.f32.mrf.mxu0
      %v4484 = vadd.f32 %v4435, %v4483
      %4485 = vdwg.mxu0
      %v4490 = vunpack.c.l.b16 %v3934
      %v4491 = vunpack.c.h.b16 %v3934
      %v4492 = vunpack.c.l.b16 %v3935
      %v4493 = vunpack.c.l.b16 %v3936
      %v4494 = vunpack.c.h.b16 %v3936
      %v4495 = vunpack.c.l.b16 %v3937
      %v4496 = vpack.c.b16 %v4493, %v4490
      %v4497 = vpack.c.b16 %v4494, %v4491
      %v4498 = vpack.c.b16 %v4495, %v4492
      %v4550 = vunpack.c.l.b16 %v3966
      %v4551 = vunpack.c.l.b16 %v3967
      %v4552 = vunpack.c.l.b16 %v3968
      %v4553 = vunpack.c.l.b16 %v3969
      %v4554 = vunpack.c.l.b16 %v3970
      %v4555 = vunpack.c.l.b16 %v3971
      %v4556 = vunpack.c.l.b16 %v3972
      %v4557 = vunpack.c.l.b16 %v3973
      %v4558 = vunpack.c.l.b16 %v3974
      %v4559 = vunpack.c.l.b16 %v3975
      %v4560 = vunpack.c.l.b16 %v3976
      %v4561 = vunpack.c.l.b16 %v3977
      %v4562 = vunpack.c.l.b16 %v3978
      %v4563 = vunpack.c.l.b16 %v3979
      %v4564 = vunpack.c.l.b16 %v3980
      %v4565 = vunpack.c.l.b16 %v3981
      %v4566 = vunpack.c.l.b16 %v3982
      %v4567 = vunpack.c.l.b16 %v3983
      %v4568 = vunpack.c.l.b16 %v3984
      %v4569 = vunpack.c.l.b16 %v3985
      %v4570 = vunpack.c.l.b16 %v3986
      %v4571 = vunpack.c.l.b16 %v3987
      %v4572 = vunpack.c.l.b16 %v3988
      %v4573 = vunpack.c.l.b16 %v3989
      %v4574 = vunpack.c.l.b16 %v3990
      %v4575 = vunpack.c.l.b16 %v3991
      %v4576 = vunpack.c.l.b16 %v3992
      %v4577 = vunpack.c.l.b16 %v3993
      %v4578 = vunpack.c.l.b16 %v3994
      %v4579 = vunpack.c.l.b16 %v3995
      %v4580 = vunpack.c.l.b16 %v3996
      %v4581 = vunpack.c.l.b16 %v3997
      %v4582 = vunpack.c.l.b16 %v3998
      %v4583 = vunpack.c.l.b16 %v3999
      %v4584 = vunpack.c.l.b16 %v4000
      %v4585 = vunpack.c.l.b16 %v4001
      %v4586 = vunpack.c.l.b16 %v4002
      %v4587 = vunpack.c.l.b16 %v4003
      %v4588 = vunpack.c.l.b16 %v4004
      %v4589 = vunpack.c.l.b16 %v4005
      %v4590 = vunpack.c.l.b16 %v4006
      %v4591 = vunpack.c.l.b16 %v4007
      %v4592 = vunpack.c.l.b16 %v4008
      %v4593 = vunpack.c.l.b16 %v4009
      %v4594 = vunpack.c.l.b16 %v4010
      %v4595 = vunpack.c.l.b16 %v4011
      %v4596 = vunpack.c.l.b16 %v4012
      %v4597 = vunpack.c.l.b16 %v4013
      %v4598 = vpack.c.b16 %v4551, %v4550
      %v4599 = vpack.c.b16 %v4553, %v4552
      %v4600 = vpack.c.b16 %v4555, %v4554
      %v4601 = vpack.c.b16 %v4557, %v4556
      %v4602 = vpack.c.b16 %v4559, %v4558
      %v4603 = vpack.c.b16 %v4561, %v4560
      %v4604 = vpack.c.b16 %v4563, %v4562
      %v4605 = vpack.c.b16 %v4565, %v4564
      %v4606 = vpack.c.b16 %v4567, %v4566
      %v4607 = vpack.c.b16 %v4569, %v4568
      %v4608 = vpack.c.b16 %v4571, %v4570
      %v4609 = vpack.c.b16 %v4573, %v4572
      %v4610 = vpack.c.b16 %v4575, %v4574
      %v4611 = vpack.c.b16 %v4577, %v4576
      %v4612 = vpack.c.b16 %v4579, %v4578
      %v4613 = vpack.c.b16 %v4581, %v4580
      %v4614 = vpack.c.b16 %v4583, %v4582
      %v4615 = vpack.c.b16 %v4585, %v4584
      %v4616 = vpack.c.b16 %v4587, %v4586
      %v4617 = vpack.c.b16 %v4589, %v4588
      %v4618 = vpack.c.b16 %v4591, %v4590
      %v4619 = vpack.c.b16 %v4593, %v4592
      %v4620 = vpack.c.b16 %v4595, %v4594
      %v4621 = vpack.c.b16 %v4597, %v4596
      %4646 = vmatpush.bf16.msra.mxu0 %v4605
      %4647 = vmatpush.bf16.msra.mxu0 %v4604
      %4648 = vmatpush.bf16.msra.mxu0 %v4603
      %4649 = vmatpush.bf16.msra.mxu0 %v4602
      %4650 = vmatpush.bf16.msra.mxu0 %v4601
      %4651 = vmatpush.bf16.msra.mxu0 %v4600
      %4652 = vmatpush.bf16.msra.mxu0 %v4599
      %4653 = vmatpush.bf16.msra.mxu0 %v4598
      %4654 = vmatmul.bf16.gmra.mxu0 %v4496
      %v4655 = vpop.f32.mrf.mxu0
      %v4656 = vadd.f32 %v4447, %v4655
      %v4657 = vpop.f32.mrf.mxu0
      %v4658 = vadd.f32 %v4449, %v4657
      %4659 = vmatmul.bf16.gmra.mxu0 %v4147
      %v4660 = vpop.f32.mrf.mxu0
      %v4661 = vadd.f32 %v4452, %v4660
      %v4662 = vpop.f32.mrf.mxu0
      %v4663 = vadd.f32 %v4454, %v4662
      %4664 = vmatmul.bf16.gmra.mxu0 %v4150
      %v4665 = vpop.f32.mrf.mxu0
      %v4666 = vadd.f32 %v4457, %v4665
      %v4667 = vpop.f32.mrf.mxu0
      %v4668 = vadd.f32 %v4459, %v4667
      %4669 = vmatmul.bf16.gmra.mxu0 %v4153
      %v4670 = vpop.f32.mrf.mxu0
      %v4671 = vadd.f32 %v4462, %v4670
      %v4672 = vpop.f32.mrf.mxu0
      %v4673 = vadd.f32 %v4464, %v4672
      %4674 = vmatmul.bf16.gmra.mxu0 %v4156
      %v4675 = vpop.f32.mrf.mxu0
      %v4676 = vadd.f32 %v4467, %v4675
      %v4677 = vpop.f32.mrf.mxu0
      %v4678 = vadd.f32 %v4469, %v4677
      %4679 = vmatmul.bf16.gmra.mxu0 %v4159
      %v4680 = vpop.f32.mrf.mxu0
      %v4681 = vadd.f32 %v4472, %v4680
      %v4682 = vpop.f32.mrf.mxu0
      %v4683 = vadd.f32 %v4474, %v4682
      %4684 = vmatmul.bf16.gmra.mxu0 %v4162
      %v4685 = vpop.f32.mrf.mxu0
      %v4686 = vadd.f32 %v4477, %v4685
      %v4687 = vpop.f32.mrf.mxu0
      %v4688 = vadd.f32 %v4479, %v4687
      %4689 = vmatmul.bf16.gmra.mxu0 %v4165
      %v4690 = vpop.f32.mrf.mxu0
      %v4691 = vadd.f32 %v4482, %v4690
      %v4692 = vpop.f32.mrf.mxu0
      %v4693 = vadd.f32 %v4484, %v4692
      %4694 = vdwg.mxu0
      %4695 = vmatpush.bf16.msra.mxu0 %v4613
      %4696 = vmatpush.bf16.msra.mxu0 %v4612
      %4697 = vmatpush.bf16.msra.mxu0 %v4611
      %4698 = vmatpush.bf16.msra.mxu0 %v4610
      %4699 = vmatpush.bf16.msra.mxu0 %v4609
      %4700 = vmatpush.bf16.msra.mxu0 %v4608
      %4701 = vmatpush.bf16.msra.mxu0 %v4607
      %4702 = vmatpush.bf16.msra.mxu0 %v4606
      %4703 = vmatmul.bf16.gmra.mxu0 %v4497
      %v4704 = vpop.f32.mrf.mxu0
      %v4705 = vadd.f32 %v4656, %v4704
      %v4706 = vpop.f32.mrf.mxu0
      %v4707 = vadd.f32 %v4658, %v4706
      %4708 = vmatmul.bf16.gmra.mxu0 %v4148
      %v4709 = vpop.f32.mrf.mxu0
      %v4710 = vadd.f32 %v4661, %v4709
      %v4711 = vpop.f32.mrf.mxu0
      %v4712 = vadd.f32 %v4663, %v4711
      %4713 = vmatmul.bf16.gmra.mxu0 %v4151
      %v4714 = vpop.f32.mrf.mxu0
      %v4715 = vadd.f32 %v4666, %v4714
      %v4716 = vpop.f32.mrf.mxu0
      %v4717 = vadd.f32 %v4668, %v4716
      %4718 = vmatmul.bf16.gmra.mxu0 %v4154
      %v4719 = vpop.f32.mrf.mxu0
      %v4720 = vadd.f32 %v4671, %v4719
      %v4721 = vpop.f32.mrf.mxu0
      %v4722 = vadd.f32 %v4673, %v4721
      %4723 = vmatmul.bf16.gmra.mxu0 %v4157
      %v4724 = vpop.f32.mrf.mxu0
      %v4725 = vadd.f32 %v4676, %v4724
      %v4726 = vpop.f32.mrf.mxu0
      %v4727 = vadd.f32 %v4678, %v4726
      %4728 = vmatmul.bf16.gmra.mxu0 %v4160
      %v4729 = vpop.f32.mrf.mxu0
      %v4730 = vadd.f32 %v4681, %v4729
      %v4731 = vpop.f32.mrf.mxu0
      %v4732 = vadd.f32 %v4683, %v4731
      %4733 = vmatmul.bf16.gmra.mxu0 %v4163
      %v4734 = vpop.f32.mrf.mxu0
      %v4735 = vadd.f32 %v4686, %v4734
      %v4736 = vpop.f32.mrf.mxu0
      %v4737 = vadd.f32 %v4688, %v4736
      %4738 = vmatmul.bf16.gmra.mxu0 %v4166
      %v4739 = vpop.f32.mrf.mxu0
      %v4740 = vadd.f32 %v4691, %v4739
      %v4741 = vpop.f32.mrf.mxu0
      %v4742 = vadd.f32 %v4693, %v4741
      %4743 = vdwg.mxu0
      %4744 = vmatpush.bf16.msra.mxu0 %v4621
      %4745 = vmatpush.bf16.msra.mxu0 %v4620
      %4746 = vmatpush.bf16.msra.mxu0 %v4619
      %4747 = vmatpush.bf16.msra.mxu0 %v4618
      %4748 = vmatpush.bf16.msra.mxu0 %v4617
      %4749 = vmatpush.bf16.msra.mxu0 %v4616
      %4750 = vmatpush.bf16.msra.mxu0 %v4615
      %4751 = vmatpush.bf16.msra.mxu0 %v4614
      %4752 = vmatmul.bf16.gmra.mxu0 %v4498
      %v4753 = vpop.f32.mrf.mxu0
      %v4754 = vadd.f32 %v4705, %v4753
      %v4755 = vpop.f32.mrf.mxu0
      %v4756 = vadd.f32 %v4707, %v4755
      %4757 = vmatmul.bf16.gmra.mxu0 %v4149
      %v4758 = vpop.f32.mrf.mxu0
      %v4759 = vadd.f32 %v4710, %v4758
      %v4760 = vpop.f32.mrf.mxu0
      %v4761 = vadd.f32 %v4712, %v4760
      %4762 = vmatmul.bf16.gmra.mxu0 %v4152
      %v4763 = vpop.f32.mrf.mxu0
      %v4764 = vadd.f32 %v4715, %v4763
      %v4765 = vpop.f32.mrf.mxu0
      %v4766 = vadd.f32 %v4717, %v4765
      %4767 = vmatmul.bf16.gmra.mxu0 %v4155
      %v4768 = vpop.f32.mrf.mxu0
      %v4769 = vadd.f32 %v4720, %v4768
      %v4770 = vpop.f32.mrf.mxu0
      %v4771 = vadd.f32 %v4722, %v4770
      %4772 = vmatmul.bf16.gmra.mxu0 %v4158
      %v4773 = vpop.f32.mrf.mxu0
      %v4774 = vadd.f32 %v4725, %v4773
      %v4775 = vpop.f32.mrf.mxu0
      %v4776 = vadd.f32 %v4727, %v4775
      %4777 = vmatmul.bf16.gmra.mxu0 %v4161
      %v4778 = vpop.f32.mrf.mxu0
      %v4779 = vadd.f32 %v4730, %v4778
      %v4780 = vpop.f32.mrf.mxu0
      %v4781 = vadd.f32 %v4732, %v4780
      %4782 = vmatmul.bf16.gmra.mxu0 %v4164
      %v4783 = vpop.f32.mrf.mxu0
      %v4784 = vadd.f32 %v4735, %v4783
      %v4785 = vpop.f32.mrf.mxu0
      %v4786 = vadd.f32 %v4737, %v4785
      %4787 = vmatmul.bf16.gmra.mxu0 %v4167
      %v4788 = vpop.f32.mrf.mxu0
      %v4789 = vadd.f32 %v4740, %v4788
      %v4790 = vpop.f32.mrf.mxu0
      %v4791 = vadd.f32 %v4742, %v4790
      %4792 = vdwg.mxu0
      %v4793 = vld [vmem:[#allocation4 + $0x30] sm:$0xff]
      %v4794 = vld [vmem:[#allocation4 + $0x38] sm:$0xf]
      %v4795 = vld [vmem:[#allocation4 + $0x3c] sm:$0xff]
      %v4796 = vld [vmem:[#allocation4 + $0x44] sm:$0xf]
      %v4797 = vld [vmem:[#allocation4 + $0x48] sm:$0xff]
      %v4798 = vld [vmem:[#allocation4 + $0x50] sm:$0xf]
      %v4799 = vld [vmem:[#allocation4 + $0x54] sm:$0xff]
      %v4800 = vld [vmem:[#allocation4 + $0x5c] sm:$0xf]
      %v4801 = vld [vmem:[#allocation4 + $0x60] sm:$0xff]
      %v4802 = vld [vmem:[#allocation4 + $0x68] sm:$0xf]
      %v4803 = vld [vmem:[#allocation4 + $0x6c] sm:$0xff]
      %v4804 = vld [vmem:[#allocation4 + $0x74] sm:$0xf]
      %v4805 = vld [vmem:[#allocation4 + $0x78] sm:$0xff]
      %v4806 = vld [vmem:[#allocation4 + $0x80] sm:$0xf]
      %v4807 = vld [vmem:[#allocation4 + $0x84] sm:$0xff]
      %v4808 = vld [vmem:[#allocation4 + $0x8c] sm:$0xf]
      %v4809 = vld [vmem:[#allocation4 + $0x90] sm:$0xff]
      %v4810 = vld [vmem:[#allocation4 + $0x98] sm:$0xf]
      %v4811 = vld [vmem:[#allocation4 + $0x9c] sm:$0xff]
      %v4812 = vld [vmem:[#allocation4 + $0xa4] sm:$0xf]
      %v4813 = vld [vmem:[#allocation4 + $0xa8] sm:$0xff]
      %v4814 = vld [vmem:[#allocation4 + $0xb0] sm:$0xf]
      %v4815 = vld [vmem:[#allocation4 + $0xb4] sm:$0xff]
      %v4816 = vld [vmem:[#allocation4 + $0xbc] sm:$0xf]
      %v4817 = vld [vmem:[#allocation4 + $0xc0] sm:$0xff]
      %v4818 = vld [vmem:[#allocation4 + $0xc8] sm:$0xf]
      %v4819 = vld [vmem:[#allocation4 + $0xcc] sm:$0xff]
      %v4820 = vld [vmem:[#allocation4 + $0xd4] sm:$0xf]
      %v4821 = vld [vmem:[#allocation4 + $0xd8] sm:$0xff]
      %v4822 = vld [vmem:[#allocation4 + $0xe0] sm:$0xf]
      %v4823 = vld [vmem:[#allocation4 + $0xe4] sm:$0xff]
      %v4824 = vld [vmem:[#allocation4 + $0xec] sm:$0xf]
      %s4825 = scalar_lea.vmem %s8, 384
      %v4826 = vld [vmem:[%s4825] sm:$0xf]
      %v4827 = vld [vmem:[%s4825 + $0x4] sm:$0xf]
      %v4828 = vld [vmem:[%s4825 + $0x8] sm:$0xf]
      %v4829 = vld [vmem:[%s4825 + $0xc] sm:$0xf]
      %v4830 = vld [vmem:[%s4825 + $0x10] sm:$0xf]
      %v4831 = vld [vmem:[%s4825 + $0x14] sm:$0xf]
      %v4832 = vld [vmem:[%s4825 + $0x18] sm:$0xf]
      %v4833 = vld [vmem:[%s4825 + $0x1c] sm:$0xf]
      %v4834 = vld [vmem:[%s4825 + $0x20] sm:$0xf]
      %v4835 = vld [vmem:[%s4825 + $0x24] sm:$0xf]
      %v4836 = vld [vmem:[%s4825 + $0x28] sm:$0xf]
      %v4837 = vld [vmem:[%s4825 + $0x2c] sm:$0xf]
      %v4838 = vld [vmem:[%s4825 + $0x30] sm:$0xf]
      %v4839 = vld [vmem:[%s4825 + $0x34] sm:$0xf]
      %v4840 = vld [vmem:[%s4825 + $0x38] sm:$0xf]
      %v4841 = vld [vmem:[%s4825 + $0x3c] sm:$0xf]
      %v4842 = vld [vmem:[%s4825 + $0x40] sm:$0xf]
      %v4843 = vld [vmem:[%s4825 + $0x44] sm:$0xf]
      %v4844 = vld [vmem:[%s4825 + $0x48] sm:$0xf]
      %v4845 = vld [vmem:[%s4825 + $0x4c] sm:$0xf]
      %v4846 = vld [vmem:[%s4825 + $0x50] sm:$0xf]
      %v4847 = vld [vmem:[%s4825 + $0x54] sm:$0xf]
      %v4848 = vld [vmem:[%s4825 + $0x58] sm:$0xf]
      %v4849 = vld [vmem:[%s4825 + $0x5c] sm:$0xf]
      %v4850 = vld [vmem:[%s4825 + $0x60] sm:$0xf]
      %v4851 = vld [vmem:[%s4825 + $0x64] sm:$0xf]
      %v4852 = vld [vmem:[%s4825 + $0x68] sm:$0xf]
      %v4853 = vld [vmem:[%s4825 + $0x6c] sm:$0xf]
      %v4854 = vld [vmem:[%s4825 + $0x70] sm:$0xf]
      %v4855 = vld [vmem:[%s4825 + $0x74] sm:$0xf]
      %v4856 = vld [vmem:[%s4825 + $0x78] sm:$0xf]
      %v4857 = vld [vmem:[%s4825 + $0x7c] sm:$0xf]
      %v4858 = vld [vmem:[%s4825 + $0x80] sm:$0xf]
      %v4859 = vld [vmem:[%s4825 + $0x84] sm:$0xf]
      %v4860 = vld [vmem:[%s4825 + $0x88] sm:$0xf]
      %v4861 = vld [vmem:[%s4825 + $0x8c] sm:$0xf]
      %v4862 = vld [vmem:[%s4825 + $0x90] sm:$0xf]
      %v4863 = vld [vmem:[%s4825 + $0x94] sm:$0xf]
      %v4864 = vld [vmem:[%s4825 + $0x98] sm:$0xf]
      %v4865 = vld [vmem:[%s4825 + $0x9c] sm:$0xf]
      %v4866 = vld [vmem:[%s4825 + $0xa0] sm:$0xf]
      %v4867 = vld [vmem:[%s4825 + $0xa4] sm:$0xf]
      %v4868 = vld [vmem:[%s4825 + $0xa8] sm:$0xf]
      %v4869 = vld [vmem:[%s4825 + $0xac] sm:$0xf]
      %v4870 = vld [vmem:[%s4825 + $0xb0] sm:$0xf]
      %v4871 = vld [vmem:[%s4825 + $0xb4] sm:$0xf]
      %v4872 = vld [vmem:[%s4825 + $0xb8] sm:$0xf]
      %v4873 = vld [vmem:[%s4825 + $0xbc] sm:$0xf]
      %v4906 = vunpack.c.l.b16 %v4793
      %v4907 = vunpack.c.h.b16 %v4793
      %v4908 = vunpack.c.l.b16 %v4794
      %v4909 = vunpack.c.l.b16 %v4795
      %v4910 = vunpack.c.h.b16 %v4795
      %v4911 = vunpack.c.l.b16 %v4796
      %v4912 = vunpack.c.l.b16 %v4797
      %v4913 = vunpack.c.h.b16 %v4797
      %v4914 = vunpack.c.l.b16 %v4798
      %v4915 = vunpack.c.l.b16 %v4799
      %v4916 = vunpack.c.h.b16 %v4799
      %v4917 = vunpack.c.l.b16 %v4800
      %v4918 = vunpack.c.l.b16 %v4801
      %v4919 = vunpack.c.h.b16 %v4801
      %v4920 = vunpack.c.l.b16 %v4802
      %v4921 = vunpack.c.l.b16 %v4803
      %v4922 = vunpack.c.h.b16 %v4803
      %v4923 = vunpack.c.l.b16 %v4804
      %v4924 = vunpack.c.l.b16 %v4805
      %v4925 = vunpack.c.h.b16 %v4805
      %v4926 = vunpack.c.l.b16 %v4806
      %v4927 = vunpack.c.l.b16 %v4807
      %v4928 = vunpack.c.h.b16 %v4807
      %v4929 = vunpack.c.l.b16 %v4808
      %v4930 = vunpack.c.l.b16 %v4809
      %v4931 = vunpack.c.h.b16 %v4809
      %v4932 = vunpack.c.l.b16 %v4810
      %v4933 = vunpack.c.l.b16 %v4811
      %v4934 = vunpack.c.h.b16 %v4811
      %v4935 = vunpack.c.l.b16 %v4812
      %v4936 = vunpack.c.l.b16 %v4813
      %v4937 = vunpack.c.h.b16 %v4813
      %v4938 = vunpack.c.l.b16 %v4814
      %v4939 = vunpack.c.l.b16 %v4815
      %v4940 = vunpack.c.h.b16 %v4815
      %v4941 = vunpack.c.l.b16 %v4816
      %v4942 = vunpack.c.l.b16 %v4817
      %v4943 = vunpack.c.h.b16 %v4817
      %v4944 = vunpack.c.l.b16 %v4818
      %v4945 = vunpack.c.l.b16 %v4819
      %v4946 = vunpack.c.h.b16 %v4819
      %v4947 = vunpack.c.l.b16 %v4820
      %v4948 = vunpack.c.l.b16 %v4821
      %v4949 = vunpack.c.h.b16 %v4821
      %v4950 = vunpack.c.l.b16 %v4822
      %v4951 = vunpack.c.l.b16 %v4823
      %v4952 = vunpack.c.h.b16 %v4823
      %v4953 = vunpack.c.l.b16 %v4824
      %v4954 = vpack.c.b16 %v4909, %v4906
      %v4955 = vpack.c.b16 %v4910, %v4907
      %v4956 = vpack.c.b16 %v4911, %v4908
      %v4957 = vpack.c.b16 %v4915, %v4912
      %v4958 = vpack.c.b16 %v4916, %v4913
      %v4959 = vpack.c.b16 %v4917, %v4914
      %v4960 = vpack.c.b16 %v4921, %v4918
      %v4961 = vpack.c.b16 %v4922, %v4919
      %v4962 = vpack.c.b16 %v4923, %v4920
      %v4963 = vpack.c.b16 %v4927, %v4924
      %v4964 = vpack.c.b16 %v4928, %v4925
      %v4965 = vpack.c.b16 %v4929, %v4926
      %v4966 = vpack.c.b16 %v4933, %v4930
      %v4967 = vpack.c.b16 %v4934, %v4931
      %v4968 = vpack.c.b16 %v4935, %v4932
      %v4969 = vpack.c.b16 %v4939, %v4936
      %v4970 = vpack.c.b16 %v4940, %v4937
      %v4971 = vpack.c.b16 %v4941, %v4938
      %v4972 = vpack.c.b16 %v4945, %v4942
      %v4973 = vpack.c.b16 %v4946, %v4943
      %v4974 = vpack.c.b16 %v4947, %v4944
      %v4975 = vpack.c.b16 %v4951, %v4948
      %v4976 = vpack.c.b16 %v4952, %v4949
      %v4977 = vpack.c.b16 %v4953, %v4950
      %v5050 = vunpack.c.l.b16 %v4826
      %v5051 = vunpack.c.l.b16 %v4827
      %v5052 = vunpack.c.l.b16 %v4828
      %v5053 = vunpack.c.l.b16 %v4829
      %v5054 = vunpack.c.l.b16 %v4830
      %v5055 = vunpack.c.l.b16 %v4831
      %v5056 = vunpack.c.l.b16 %v4832
      %v5057 = vunpack.c.l.b16 %v4833
      %v5058 = vunpack.c.l.b16 %v4834
      %v5059 = vunpack.c.l.b16 %v4835
      %v5060 = vunpack.c.l.b16 %v4836
      %v5061 = vunpack.c.l.b16 %v4837
      %v5062 = vunpack.c.l.b16 %v4838
      %v5063 = vunpack.c.l.b16 %v4839
      %v5064 = vunpack.c.l.b16 %v4840
      %v5065 = vunpack.c.l.b16 %v4841
      %v5066 = vunpack.c.l.b16 %v4842
      %v5067 = vunpack.c.l.b16 %v4843
      %v5068 = vunpack.c.l.b16 %v4844
      %v5069 = vunpack.c.l.b16 %v4845
      %v5070 = vunpack.c.l.b16 %v4846
      %v5071 = vunpack.c.l.b16 %v4847
      %v5072 = vunpack.c.l.b16 %v4848
      %v5073 = vunpack.c.l.b16 %v4849
      %v5074 = vunpack.c.l.b16 %v4850
      %v5075 = vunpack.c.l.b16 %v4851
      %v5076 = vunpack.c.l.b16 %v4852
      %v5077 = vunpack.c.l.b16 %v4853
      %v5078 = vunpack.c.l.b16 %v4854
      %v5079 = vunpack.c.l.b16 %v4855
      %v5080 = vunpack.c.l.b16 %v4856
      %v5081 = vunpack.c.l.b16 %v4857
      %v5082 = vunpack.c.l.b16 %v4858
      %v5083 = vunpack.c.l.b16 %v4859
      %v5084 = vunpack.c.l.b16 %v4860
      %v5085 = vunpack.c.l.b16 %v4861
      %v5086 = vunpack.c.l.b16 %v4862
      %v5087 = vunpack.c.l.b16 %v4863
      %v5088 = vunpack.c.l.b16 %v4864
      %v5089 = vunpack.c.l.b16 %v4865
      %v5090 = vunpack.c.l.b16 %v4866
      %v5091 = vunpack.c.l.b16 %v4867
      %v5092 = vunpack.c.l.b16 %v4868
      %v5093 = vunpack.c.l.b16 %v4869
      %v5094 = vunpack.c.l.b16 %v4870
      %v5095 = vunpack.c.l.b16 %v4871
      %v5096 = vunpack.c.l.b16 %v4872
      %v5097 = vunpack.c.l.b16 %v4873
      %v5098 = vpack.c.b16 %v5051, %v5050
      %v5099 = vpack.c.b16 %v5053, %v5052
      %v5100 = vpack.c.b16 %v5055, %v5054
      %v5101 = vpack.c.b16 %v5057, %v5056
      %v5102 = vpack.c.b16 %v5059, %v5058
      %v5103 = vpack.c.b16 %v5061, %v5060
      %v5104 = vpack.c.b16 %v5063, %v5062
      %v5105 = vpack.c.b16 %v5065, %v5064
      %v5106 = vpack.c.b16 %v5067, %v5066
      %v5107 = vpack.c.b16 %v5069, %v5068
      %v5108 = vpack.c.b16 %v5071, %v5070
      %v5109 = vpack.c.b16 %v5073, %v5072
      %v5110 = vpack.c.b16 %v5075, %v5074
      %v5111 = vpack.c.b16 %v5077, %v5076
      %v5112 = vpack.c.b16 %v5079, %v5078
      %v5113 = vpack.c.b16 %v5081, %v5080
      %v5114 = vpack.c.b16 %v5083, %v5082
      %v5115 = vpack.c.b16 %v5085, %v5084
      %v5116 = vpack.c.b16 %v5087, %v5086
      %v5117 = vpack.c.b16 %v5089, %v5088
      %v5118 = vpack.c.b16 %v5091, %v5090
      %v5119 = vpack.c.b16 %v5093, %v5092
      %v5120 = vpack.c.b16 %v5095, %v5094
      %v5121 = vpack.c.b16 %v5097, %v5096
      %5146 = vmatpush.bf16.msra.mxu0 %v5105
      %5147 = vmatpush.bf16.msra.mxu0 %v5104
      %5148 = vmatpush.bf16.msra.mxu0 %v5103
      %5149 = vmatpush.bf16.msra.mxu0 %v5102
      %5150 = vmatpush.bf16.msra.mxu0 %v5101
      %5151 = vmatpush.bf16.msra.mxu0 %v5100
      %5152 = vmatpush.bf16.msra.mxu0 %v5099
      %5153 = vmatpush.bf16.msra.mxu0 %v5098
      %5154 = vmatmul.bf16.gmra.mxu0 %v4954
      %v5155 = vpop.f32.mrf.mxu0
      %v5156 = vadd.f32 0.0, %v5155
      %v5157 = vpop.f32.mrf.mxu0
      %v5158 = vadd.f32 0.0, %v5157
      %5159 = vmatmul.bf16.gmra.mxu0 %v4957
      %v5160 = vpop.f32.mrf.mxu0
      %v5161 = vadd.f32 0.0, %v5160
      %v5162 = vpop.f32.mrf.mxu0
      %v5163 = vadd.f32 0.0, %v5162
      %5164 = vmatmul.bf16.gmra.mxu0 %v4960
      %v5165 = vpop.f32.mrf.mxu0
      %v5166 = vadd.f32 0.0, %v5165
      %v5167 = vpop.f32.mrf.mxu0
      %v5168 = vadd.f32 0.0, %v5167
      %5169 = vmatmul.bf16.gmra.mxu0 %v4963
      %v5170 = vpop.f32.mrf.mxu0
      %v5171 = vadd.f32 0.0, %v5170
      %v5172 = vpop.f32.mrf.mxu0
      %v5173 = vadd.f32 0.0, %v5172
      %5174 = vmatmul.bf16.gmra.mxu0 %v4966
      %v5175 = vpop.f32.mrf.mxu0
      %v5176 = vadd.f32 0.0, %v5175
      %v5177 = vpop.f32.mrf.mxu0
      %v5178 = vadd.f32 0.0, %v5177
      %5179 = vmatmul.bf16.gmra.mxu0 %v4969
      %v5180 = vpop.f32.mrf.mxu0
      %v5181 = vadd.f32 0.0, %v5180
      %v5182 = vpop.f32.mrf.mxu0
      %v5183 = vadd.f32 0.0, %v5182
      %5184 = vmatmul.bf16.gmra.mxu0 %v4972
      %v5185 = vpop.f32.mrf.mxu0
      %v5186 = vadd.f32 0.0, %v5185
      %v5187 = vpop.f32.mrf.mxu0
      %v5188 = vadd.f32 0.0, %v5187
      %5189 = vmatmul.bf16.gmra.mxu0 %v4975
      %v5190 = vpop.f32.mrf.mxu0
      %v5191 = vadd.f32 0.0, %v5190
      %v5192 = vpop.f32.mrf.mxu0
      %v5193 = vadd.f32 0.0, %v5192
      %5194 = vdwg.mxu0
      %5195 = vmatpush.bf16.msra.mxu0 %v5113
      %5196 = vmatpush.bf16.msra.mxu0 %v5112
      %5197 = vmatpush.bf16.msra.mxu0 %v5111
      %5198 = vmatpush.bf16.msra.mxu0 %v5110
      %5199 = vmatpush.bf16.msra.mxu0 %v5109
      %5200 = vmatpush.bf16.msra.mxu0 %v5108
      %5201 = vmatpush.bf16.msra.mxu0 %v5107
      %5202 = vmatpush.bf16.msra.mxu0 %v5106
      %5203 = vmatmul.bf16.gmra.mxu0 %v4955
      %v5204 = vpop.f32.mrf.mxu0
      %v5205 = vadd.f32 %v5156, %v5204
      %v5206 = vpop.f32.mrf.mxu0
      %v5207 = vadd.f32 %v5158, %v5206
      %5208 = vmatmul.bf16.gmra.mxu0 %v4958
      %v5209 = vpop.f32.mrf.mxu0
      %v5210 = vadd.f32 %v5161, %v5209
      %v5211 = vpop.f32.mrf.mxu0
      %v5212 = vadd.f32 %v5163, %v5211
      %5213 = vmatmul.bf16.gmra.mxu0 %v4961
      %v5214 = vpop.f32.mrf.mxu0
      %v5215 = vadd.f32 %v5166, %v5214
      %v5216 = vpop.f32.mrf.mxu0
      %v5217 = vadd.f32 %v5168, %v5216
      %5218 = vmatmul.bf16.gmra.mxu0 %v4964
      %v5219 = vpop.f32.mrf.mxu0
      %v5220 = vadd.f32 %v5171, %v5219
      %v5221 = vpop.f32.mrf.mxu0
      %v5222 = vadd.f32 %v5173, %v5221
      %5223 = vmatmul.bf16.gmra.mxu0 %v4967
      %v5224 = vpop.f32.mrf.mxu0
      %v5225 = vadd.f32 %v5176, %v5224
      %v5226 = vpop.f32.mrf.mxu0
      %v5227 = vadd.f32 %v5178, %v5226
      %5228 = vmatmul.bf16.gmra.mxu0 %v4970
      %v5229 = vpop.f32.mrf.mxu0
      %v5230 = vadd.f32 %v5181, %v5229
      %v5231 = vpop.f32.mrf.mxu0
      %v5232 = vadd.f32 %v5183, %v5231
      %5233 = vmatmul.bf16.gmra.mxu0 %v4973
      %v5234 = vpop.f32.mrf.mxu0
      %v5235 = vadd.f32 %v5186, %v5234
      %v5236 = vpop.f32.mrf.mxu0
      %v5237 = vadd.f32 %v5188, %v5236
      %5238 = vmatmul.bf16.gmra.mxu0 %v4976
      %v5239 = vpop.f32.mrf.mxu0
      %v5240 = vadd.f32 %v5191, %v5239
      %v5241 = vpop.f32.mrf.mxu0
      %v5242 = vadd.f32 %v5193, %v5241
      %5243 = vdwg.mxu0
      %5244 = vmatpush.bf16.msra.mxu0 %v5121
      %5245 = vmatpush.bf16.msra.mxu0 %v5120
      %5246 = vmatpush.bf16.msra.mxu0 %v5119
      %5247 = vmatpush.bf16.msra.mxu0 %v5118
      %5248 = vmatpush.bf16.msra.mxu0 %v5117
      %5249 = vmatpush.bf16.msra.mxu0 %v5116
      %5250 = vmatpush.bf16.msra.mxu0 %v5115
      %5251 = vmatpush.bf16.msra.mxu0 %v5114
      %5252 = vmatmul.bf16.gmra.mxu0 %v4956
      %v5253 = vpop.f32.mrf.mxu0
      %v5254 = vadd.f32 %v5205, %v5253
      %v5255 = vpop.f32.mrf.mxu0
      %v5256 = vadd.f32 %v5207, %v5255
      %5257 = vmatmul.bf16.gmra.mxu0 %v4959
      %v5258 = vpop.f32.mrf.mxu0
      %v5259 = vadd.f32 %v5210, %v5258
      %v5260 = vpop.f32.mrf.mxu0
      %v5261 = vadd.f32 %v5212, %v5260
      %5262 = vmatmul.bf16.gmra.mxu0 %v4962
      %v5263 = vpop.f32.mrf.mxu0
      %v5264 = vadd.f32 %v5215, %v5263
      %v5265 = vpop.f32.mrf.mxu0
      %v5266 = vadd.f32 %v5217, %v5265
      %5267 = vmatmul.bf16.gmra.mxu0 %v4965
      %v5268 = vpop.f32.mrf.mxu0
      %v5269 = vadd.f32 %v5220, %v5268
      %v5270 = vpop.f32.mrf.mxu0
      %v5271 = vadd.f32 %v5222, %v5270
      %5272 = vmatmul.bf16.gmra.mxu0 %v4968
      %v5273 = vpop.f32.mrf.mxu0
      %v5274 = vadd.f32 %v5225, %v5273
      %v5275 = vpop.f32.mrf.mxu0
      %v5276 = vadd.f32 %v5227, %v5275
      %5277 = vmatmul.bf16.gmra.mxu0 %v4971
      %v5278 = vpop.f32.mrf.mxu0
      %v5279 = vadd.f32 %v5230, %v5278
      %v5280 = vpop.f32.mrf.mxu0
      %v5281 = vadd.f32 %v5232, %v5280
      %5282 = vmatmul.bf16.gmra.mxu0 %v4974
      %v5283 = vpop.f32.mrf.mxu0
      %v5284 = vadd.f32 %v5235, %v5283
      %v5285 = vpop.f32.mrf.mxu0
      %v5286 = vadd.f32 %v5237, %v5285
      %5287 = vmatmul.bf16.gmra.mxu0 %v4977
      %v5288 = vpop.f32.mrf.mxu0
      %v5289 = vadd.f32 %v5240, %v5288
      %v5290 = vpop.f32.mrf.mxu0
      %v5291 = vadd.f32 %v5242, %v5290
      %5292 = vdwg.mxu0
      %v5293 = vadd.f32 %v4754, %v5254
      %v5294 = vadd.f32 %v4756, %v5256
      %v5295 = vadd.f32 %v4759, %v5259
      %v5296 = vadd.f32 %v4761, %v5261
      %v5297 = vadd.f32 %v4764, %v5264
      %v5298 = vadd.f32 %v4766, %v5266
      %v5299 = vadd.f32 %v4769, %v5269
      %v5300 = vadd.f32 %v4771, %v5271
      %v5301 = vadd.f32 %v4774, %v5274
      %v5302 = vadd.f32 %v4776, %v5276
      %v5303 = vadd.f32 %v4779, %v5279
      %v5304 = vadd.f32 %v4781, %v5281
      %v5305 = vadd.f32 %v4784, %v5284
      %v5306 = vadd.f32 %v4786, %v5286
      %v5307 = vadd.f32 %v4789, %v5289
      %v5308 = vadd.f32 %v4791, %v5291
      %v5309 = vld [vmem:[%s9] sm:$0x1]
      %v5311 = vperm.slane %v5309, 0
      %v5313 = vmul.f32 %v5293, %v5311
      %v5314 = vmul.f32 %v5294, %v5311
      %v5315 = vmul.f32 %v5295, %v5311
      %v5316 = vmul.f32 %v5296, %v5311
      %v5317 = vmul.f32 %v5297, %v5311
      %v5318 = vmul.f32 %v5298, %v5311
      %v5319 = vmul.f32 %v5299, %v5311
      %v5320 = vmul.f32 %v5300, %v5311
      %v5321 = vmul.f32 %v5301, %v5311
      %v5322 = vmul.f32 %v5302, %v5311
      %v5323 = vmul.f32 %v5303, %v5311
      %v5324 = vmul.f32 %v5304, %v5311
      %v5325 = vmul.f32 %v5305, %v5311
      %v5326 = vmul.f32 %v5306, %v5311
      %v5327 = vmul.f32 %v5307, %v5311
      %v5328 = vmul.f32 %v5308, %v5311
      %v5329 = vld [vmem:[%s10] sm:$0x1]
      %v5331 = vperm.slane %v5329, 0
      %v5333 = vadd.f32 %v5313, %v5331
      %v5334 = vadd.f32 %v5314, %v5331
      %v5335 = vadd.f32 %v5315, %v5331
      %v5336 = vadd.f32 %v5316, %v5331
      %v5337 = vadd.f32 %v5317, %v5331
      %v5338 = vadd.f32 %v5318, %v5331
      %v5339 = vadd.f32 %v5319, %v5331
      %v5340 = vadd.f32 %v5320, %v5331
      %v5341 = vadd.f32 %v5321, %v5331
      %v5342 = vadd.f32 %v5322, %v5331
      %v5343 = vadd.f32 %v5323, %v5331
      %v5344 = vadd.f32 %v5324, %v5331
      %v5345 = vadd.f32 %v5325, %v5331
      %v5346 = vadd.f32 %v5326, %v5331
      %v5347 = vadd.f32 %v5327, %v5331
      %v5348 = vadd.f32 %v5328, %v5331
      %v5349 = vld [vmem:[%s598] sm:$0xf]
      %v5350 = vld [vmem:[%s598 + $0x4] sm:$0xf]
      %v5351 = vld [vmem:[%s598 + $0x8] sm:$0xf]
      %v5352 = vld [vmem:[%s598 + $0xc] sm:$0xf]
      %v5353 = vld [vmem:[%s598 + $0x10] sm:$0xf]
      %v5354 = vld [vmem:[%s598 + $0x14] sm:$0xf]
      %v5355 = vld [vmem:[%s598 + $0x18] sm:$0xf]
      %v5356 = vld [vmem:[%s598 + $0x1c] sm:$0xf]
      %v5357 = vld [vmem:[%s598 + $0x20] sm:$0xf]
      %v5358 = vld [vmem:[%s598 + $0x24] sm:$0xf]
      %v5359 = vld [vmem:[%s598 + $0x28] sm:$0xf]
      %v5360 = vld [vmem:[%s598 + $0x2c] sm:$0xf]
      %v5361 = vld [vmem:[%s598 + $0x30] sm:$0xf]
      %v5362 = vld [vmem:[%s598 + $0x34] sm:$0xf]
      %v5363 = vld [vmem:[%s598 + $0x38] sm:$0xf]
      %v5364 = vld [vmem:[%s598 + $0x3c] sm:$0xf]
      %v5365 = vunpack.c.l.bf16 %v5349
      %v5366 = vunpack.c.l.bf16 %v5350
      %v5367 = vunpack.c.l.bf16 %v5351
      %v5368 = vunpack.c.l.bf16 %v5352
      %v5369 = vunpack.c.l.bf16 %v5353
      %v5370 = vunpack.c.l.bf16 %v5354
      %v5371 = vunpack.c.l.bf16 %v5355
      %v5372 = vunpack.c.l.bf16 %v5356
      %v5373 = vunpack.c.l.bf16 %v5357
      %v5374 = vunpack.c.l.bf16 %v5358
      %v5375 = vunpack.c.l.bf16 %v5359
      %v5376 = vunpack.c.l.bf16 %v5360
      %v5377 = vunpack.c.l.bf16 %v5361
      %v5378 = vunpack.c.l.bf16 %v5362
      %v5379 = vunpack.c.l.bf16 %v5363
      %v5380 = vunpack.c.l.bf16 %v5364
      %v5381 = vadd.f32 %v5333, %v5365
      %v5382 = vadd.f32 %v5334, %v5366
      %v5383 = vadd.f32 %v5335, %v5367
      %v5384 = vadd.f32 %v5336, %v5368
      %v5385 = vadd.f32 %v5337, %v5369
      %v5386 = vadd.f32 %v5338, %v5370
      %v5387 = vadd.f32 %v5339, %v5371
      %v5388 = vadd.f32 %v5340, %v5372
      %v5389 = vadd.f32 %v5341, %v5373
      %v5390 = vadd.f32 %v5342, %v5374
      %v5391 = vadd.f32 %v5343, %v5375
      %v5392 = vadd.f32 %v5344, %v5376
      %v5393 = vadd.f32 %v5345, %v5377
      %v5394 = vadd.f32 %v5346, %v5378
      %v5395 = vadd.f32 %v5347, %v5379
      %v5396 = vadd.f32 %v5348, %v5380
      %v5397 = vmax.f32 %v5381, 0.0
      %v5398 = vmax.f32 %v5382, 0.0
      %v5399 = vmax.f32 %v5383, 0.0
      %v5400 = vmax.f32 %v5384, 0.0
      %v5401 = vmax.f32 %v5385, 0.0
      %v5402 = vmax.f32 %v5386, 0.0
      %v5403 = vmax.f32 %v5387, 0.0
      %v5404 = vmax.f32 %v5388, 0.0
      %v5405 = vmax.f32 %v5389, 0.0
      %v5406 = vmax.f32 %v5390, 0.0
      %v5407 = vmax.f32 %v5391, 0.0
      %v5408 = vmax.f32 %v5392, 0.0
      %v5409 = vmax.f32 %v5393, 0.0
      %v5410 = vmax.f32 %v5394, 0.0
      %v5411 = vmax.f32 %v5395, 0.0
      %v5412 = vmax.f32 %v5396, 0.0
      %v5413 = vpack.c.bf16 %v5397, %v5397
      %v5414 = vpack.c.bf16 %v5398, %v5398
      %v5415 = vpack.c.bf16 %v5399, %v5399
      %v5416 = vpack.c.bf16 %v5400, %v5400
      %v5417 = vpack.c.bf16 %v5401, %v5401
      %v5418 = vpack.c.bf16 %v5402, %v5402
      %v5419 = vpack.c.bf16 %v5403, %v5403
      %v5420 = vpack.c.bf16 %v5404, %v5404
      %v5421 = vpack.c.bf16 %v5405, %v5405
      %v5422 = vpack.c.bf16 %v5406, %v5406
      %v5423 = vpack.c.bf16 %v5407, %v5407
      %v5424 = vpack.c.bf16 %v5408, %v5408
      %v5425 = vpack.c.bf16 %v5409, %v5409
      %v5426 = vpack.c.bf16 %v5410, %v5410
      %v5427 = vpack.c.bf16 %v5411, %v5411
      %v5428 = vpack.c.bf16 %v5412, %v5412
      %5429 = vst [vmem:[%s677] sm:$0xf] %v5413
      %5430 = vst [vmem:[%s677 + $0x4] sm:$0xf] %v5414
      %5431 = vst [vmem:[%s677 + $0x8] sm:$0xf] %v5415
      %5432 = vst [vmem:[%s677 + $0xc] sm:$0xf] %v5416
      %5433 = vst [vmem:[%s677 + $0x10] sm:$0xf] %v5417
      %5434 = vst [vmem:[%s677 + $0x14] sm:$0xf] %v5418
      %5435 = vst [vmem:[%s677 + $0x18] sm:$0xf] %v5419
      %5436 = vst [vmem:[%s677 + $0x1c] sm:$0xf] %v5420
      %5437 = vst [vmem:[%s677 + $0x20] sm:$0xf] %v5421
      %5438 = vst [vmem:[%s677 + $0x24] sm:$0xf] %v5422
      %5439 = vst [vmem:[%s677 + $0x28] sm:$0xf] %v5423
      %5440 = vst [vmem:[%s677 + $0x2c] sm:$0xf] %v5424
      %5441 = vst [vmem:[%s677 + $0x30] sm:$0xf] %v5425
      %5442 = vst [vmem:[%s677 + $0x34] sm:$0xf] %v5426
      %5443 = vst [vmem:[%s677 + $0x38] sm:$0xf] %v5427
      %5444 = vst [vmem:[%s677 + $0x3c] sm:$0xf] %v5428
      %s5445 = smul.u32 8, %s27
      %p5446 = scmp.lt.s32.totalorder %s26, 1
      %s5447 = scalar_select %p5446, %s26, 1
      %p5448 = scmp.lt.s32.totalorder %s5445, 15
      %s5449 = scalar_select %p5448, %s5445, 15
      %s5450 = smul.addr %s5449, 2
      %s5451 = smul.addr %s5447, 32
      %s5452 = sadd.s32 %s5450, %s5451
      %s5453 = smul.addr %s5452, 4
      %s5454 = scalar_lea.vmem %s11, %s5453
      // Predicated region
      $region81: #{basic_block_forward.1} parent=63 // pred_check
        %p5455 = pneg %p352
      $region82: #{basic_block_forward.1} parent=63 // pred_check_branch
        %5457 = sbr.rel (%p5455) target = $region84
      $region83: #{basic_block_forward.1} parent=63 // pred_region
        %s5458 = smul.u32 8, %s27
      $region84: #{basic_block_forward.1} parent=63 // pred_fallthru
        _
    $region64: #{basic_block_forward.1} parent=5 // pred_fallthru
      _
    %p5459 = scmp.le.s32.totalorder 2, %s17
    // Predicated region
    $region85: #{basic_block_forward.1} parent=5 // pred_check
      %p5460 = pneg %p5459
    $region86: #{basic_block_forward.1} parent=5 // pred_check_branch
      %5462 = sbr.rel (%p5460) target = $region88
    $region87: #{basic_block_forward.1} parent=5 // pred_region
      %s5463 = ssub.s32 %s17, 2
      // Predicated region
      $region89: #{basic_block_forward.1} parent=87 // pred_check
        %p5464 = pneg %p358
      $region90: #{basic_block_forward.1} parent=87 // pred_check_branch
        %5466 = sbr.rel (%p5464) target = $region92
      $region91: #{basic_block_forward.1} parent=87 // pred_region
        %s5467 = smul.u32 8, %s29
        %p5468 = scmp.lt.s32.totalorder %s28, 1
        %s5469 = scalar_select %p5468, %s28, 1
        %p5470 = scmp.lt.s32.totalorder %s5467, 15
        %s5471 = scalar_select %p5470, %s5467, 15
        %s5472 = smul.addr %s5471, 2
        %s5473 = smul.addr %s5469, 32
        %s5474 = sadd.s32 %s5472, %s5473
        %s5475 = smul.addr %s5474, 4
        %s5476 = scalar_lea.vmem %s11, %s5475
      $region92: #{basic_block_forward.1} parent=87 // pred_fallthru
        _
    $region88: #{basic_block_forward.1} parent=5 // pred_fallthru
      _
  $region6: #{basic_block_forward.1} parent=0 // loop_footer
    %s21 = sadd.s32 1, %s17
  $region7: #{basic_block_forward.1} parent=0 // loop_footer_branch
    %16 = sbr.rel target = $region3
  $region8: #{basic_block_forward.1} parent=0 // loop_exit
    _

</llo_original>
